<compile_context>
chip_gen: v6e
topology: v6e:2x2x1
jax: 0.10.0
libtpu: 0.0.40
codegen_flags: <defaults>
</compile_context>

<pallas_src>
import jax
import jax.numpy as jnp
from jax import lax
from jax.experimental import pallas as pl
from jax.experimental.pallas import tpu as pltpu

# ----------------------------- config ------------------------------------
B = 2             # batch
T = 16            # sequence length
INPUT_DIM = 256   # module input_dim
DIM = 128         # transformer dim (TransformerConfig(dim=128, ...))
DEPTH = 2         # transformer depth
HEADS = 4
HEAD_DIM = DIM // HEADS
FFN_DIM = 4 * DIM
OUTPUT_DIM = 256  # module output_dim
LN_EPS = 1e-5
NEG_INF = -1e9
BT = B * T


# --------------------------- helpers --------------------------------------
def _layernorm(x, g, b):
    mu = jnp.mean(x, axis=-1, keepdims=True)
    var = jnp.mean(jnp.square(x - mu), axis=-1, keepdims=True)
    return (x - mu) * lax.rsqrt(var + LN_EPS) * g + b


# --------------------------- pallas kernel --------------------------------
def transformer_kernel(
    x_ref, mask_ref, kbias_ref,
    w_in_ref, b_in_ref,
    ln1g_ref, ln1b_ref,
    wqkv_ref, bqkv_ref, wo_ref, bo_ref,
    ln2g_ref, ln2b_ref,
    wf1_ref, bf1_ref, wf2_ref, bf2_ref,
    lnfg_ref, lnfb_ref,
    w_out_ref, b_out_ref,
    o_ref,
):
    bf16 = jnp.bfloat16

    # Whole batch in one invocation: flatten (B, T, F) -> (B*T, F).
    x = x_ref[...].reshape(BT, INPUT_DIM)
    mask = mask_ref[...].reshape(BT, 1)
    key_bias = kbias_ref[...]                     # (HEADS*B, T, T) f32, 0 / -1e9

    # Input projection: INPUT_DIM -> DIM (bf16 MXU, f32 accumulation).
    h = jnp.dot(x.astype(bf16), w_in_ref[...],
                preferred_element_type=jnp.float32) + b_in_ref[...]

    for l in range(DEPTH):                        # static unrolled layer loop
        # ---------------- self-attention block (pre-norm) ----------------
        y = _layernorm(h, ln1g_ref[l], ln1b_ref[l]).astype(bf16)
        # Fused QKV matmul; 1/sqrt(HEAD_DIM) already folded into the Q columns.
        qkv = jnp.dot(y, wqkv_ref[l], preferred_element_type=jnp.float32) + bqkv_ref[l]
        qkv = qkv.astype(bf16)                    # single cast for q, k and v

        # Pack heads into a leading batch axis, (h, b)-major: (HEADS*B, T, HEAD_DIM).
        # Only lane slices + an axis-0 concat — no in-kernel transposes.
        def split_heads(off):
            return jnp.concatenate(
                [qkv[:, off + i * HEAD_DIM: off + (i + 1) * HEAD_DIM]
                 .reshape(B, T, HEAD_DIM) for i in range(HEADS)],
                axis=0)

        q = split_heads(0)
        k = split_heads(DIM)
        v = split_heads(2 * DIM)

        # One batched score matmul + ONE softmax stream for all (head, batch) pairs.
        s = jnp.einsum('bqd,bkd->bqk', q, k,
                       preferred_element_type=jnp.float32)       # (HB, T, T)
        s = s + key_bias
        s = s - jnp.max(s, axis=-1, keepdims=True)
        p = jnp.exp(s)
        p = p * pl.reciprocal(jnp.sum(p, axis=-1, keepdims=True), approx=True)

        ctx = jnp.einsum('bqk,bkd->bqd', p.astype(bf16), v,
                         preferred_element_type=jnp.float32)     # (HB, T, HEAD_DIM)

        # Output projection: head-batched matmul summed over heads
        # (== einsum 'bhtd,hdf->btf'); rows of W_o are head-major so the
        # (HEADS, B*T, HEAD_DIM) reshape lines up with wo_ref[l] = (HEADS, HEAD_DIM, DIM).
        ctx = ctx.reshape(HEADS, BT, HEAD_DIM).astype(bf16)
        out_h = jnp.einsum('hmd,hdf->hmf', ctx, wo_ref[l],
                           preferred_element_type=jnp.float32)   # (HEADS, B*T, DIM)
        h = h + jnp.sum(out_h, axis=0) + bo_ref[l]

        # ---------------- feed-forward block (pre-norm) ----------------
        y = _layernorm(h, ln2g_ref[l], ln2b_ref[l]).astype(bf16)
        f = jnp.dot(y, wf1_ref[l], preferred_element_type=jnp.float32) + bf1_ref[l]
        f = jax.nn.gelu(f, approximate=True).astype(bf16)
        h = h + jnp.dot(f, wf2_ref[l], preferred_element_type=jnp.float32) + bf2_ref[l]

    # Final norm + output linear + output mask.
    h = _layernorm(h, lnfg_ref[...], lnfb_ref[...]).astype(bf16)
    out = jnp.dot(h, w_out_ref[...], preferred_element_type=jnp.float32) + b_out_ref[...]
    out = out * mask
    o_ref[...] = out.reshape(B, T, OUTPUT_DIM).astype(o_ref.dtype)


# ------------------------------ wrapper ------------------------------------
def init_params(key):
    ks = jax.random.split(key, 9)

    def w(k, shape, scale=0.02):
        return jax.random.normal(k, shape, jnp.float32) * scale

    return dict(
        w_in=w(ks[0], (INPUT_DIM, DIM)),
        b_in=jnp.zeros((DIM,), jnp.float32),
        ln1_g=jnp.ones((DEPTH, DIM), jnp.float32),
        ln1_b=jnp.zeros((DEPTH, DIM), jnp.float32),
        wq=w(ks[1], (DEPTH, DIM, DIM)), bq=jnp.zeros((DEPTH, DIM), jnp.float32),
        wk=w(ks[2], (DEPTH, DIM, DIM)), bk=jnp.zeros((DEPTH, DIM), jnp.float32),
        wv=w(ks[3], (DEPTH, DIM, DIM)), bv=jnp.zeros((DEPTH, DIM), jnp.float32),
        wo=w(ks[4], (DEPTH, DIM, DIM)), bo=jnp.zeros((DEPTH, DIM), jnp.float32),
        ln2_g=jnp.ones((DEPTH, DIM), jnp.float32),
        ln2_b=jnp.zeros((DEPTH, DIM), jnp.float32),
        wf1=w(ks[5], (DEPTH, DIM, FFN_DIM)), bf1=jnp.zeros((DEPTH, FFN_DIM), jnp.float32),
        wf2=w(ks[6], (DEPTH, FFN_DIM, DIM)), bf2=jnp.zeros((DEPTH, DIM), jnp.float32),
        lnf_g=jnp.ones((DIM,), jnp.float32),
        lnf_b=jnp.zeros((DIM,), jnp.float32),
        w_out=w(ks[7], (DIM, OUTPUT_DIM)),
        b_out=w(ks[8], (OUTPUT_DIM,), 0.01),
    )


def _prepare_weights(params):
    """Trace-time prep (zero runtime cost): fuse QKV, fold the attention scale into
    the Q columns, reshape W_o to head-major blocks, cast matrices to bf16, and make
    all 1-D vectors 2-D so every in-kernel operand is rank >= 2."""
    bf = jnp.bfloat16
    scale = 1.0 / (HEAD_DIM ** 0.5)
    wqkv = jnp.concatenate(
        [params["wq"] * scale, params["wk"], params["wv"]], axis=-1).astype(bf)
    bqkv = jnp.concatenate(
        [params["bq"] * scale, params["bk"], params["bv"]], axis=-1)[:, None, :]
    wo = params["wo"].reshape(DEPTH, HEADS, HEAD_DIM, DIM).astype(bf)
    return [
        params["w_in"].astype(bf), params["b_in"][None, :],
        params["ln1_g"][:, None, :], params["ln1_b"][:, None, :],
        wqkv, bqkv,
        wo, params["bo"][:, None, :],
        params["ln2_g"][:, None, :], params["ln2_b"][:, None, :],
        params["wf1"].astype(bf), params["bf1"][:, None, :],
        params["wf2"].astype(bf), params["bf2"][:, None, :],
        params["lnf_g"][None, :], params["lnf_b"][None, :],
        params["w_out"].astype(bf), params["b_out"][None, :],
    ]


def transformer_temporal_forward(params, x, mask=None):
    """Pallas-kernel forward; x: [B, T, INPUT_DIM], mask: [B, T, 1] or None."""
    bs, tt, _ = x.shape
    assert (bs, tt) == (B, T), "config shapes are static for this kernel"
    if mask is None:
        mask = jnp.ones((bs, tt, 1), jnp.float32)
    mask = mask.astype(jnp.float32)

    # Additive key-padding bias at the exact (HEADS*B, T, T) score layout.
    kb = jnp.where(mask[..., 0] > 0.5, 0.0, NEG_INF)           # (B, T)
    kb = jnp.broadcast_to(kb[:, None, :], (B, T, T))           # (B, Tq, Tk)
    kb = jnp.tile(kb, (HEADS, 1, 1))                           # (HEADS*B, T, T)

    weights = _prepare_weights(params)

    vmem = pl.BlockSpec(memory_space=pltpu.MemorySpace.VMEM)
    # Single invocation (no grid): ~1 MiB of bf16 weights + tiny activations fit VMEM,
    # weights DMA'd exactly once, no per-grid-step overhead (best default on all gens).
    return pl.pallas_call(
        transformer_kernel,
        out_shape=jax.ShapeDtypeStruct((bs, tt, OUTPUT_DIM), jnp.float32),
        in_specs=[vmem] * (3 + len(weights)),
        out_specs=vmem,
    )(x, mask, kb, *weights)


# ----------------------- pure-JAX reference (for checking) -----------------
def reference_forward(params, x, mask):
    bf = jnp.bfloat16

    def mm(a, w):
        return jnp.dot(a.astype(bf), w.astype(bf), preferred_element_type=jnp.float32)

    def one(xb, mb):
        key_bias = jnp.where(jnp.transpose(mb) > 0.5, 0.0, NEG_INF)   # (1, T)
        h = mm(xb, params["w_in"]) + params["b_in"]
        scale = 1.0 / (HEAD_DIM ** 0.5)
        for l in range(DEPTH):
            y = _layernorm(h, params["ln1_g"][l], params["ln1_b"][l])
            q = mm(y, params["wq"][l]) + params["bq"][l]
            k = mm(y, params["wk"][l]) + params["bk"][l]
            v = mm(y, params["wv"][l]) + params["bv"][l]
            acc = jnp.zeros((T, DIM), jnp.float32)
            for hd in range(HEADS):
                sl = slice(hd * HEAD_DIM, (hd + 1) * HEAD_DIM)
                s = jnp.dot(q[:, sl].astype(bf), jnp.transpose(k[:, sl].astype(bf)),
                            preferred_element_type=jnp.float32) * scale + key_bias
                p = jax.nn.softmax(s, axis=-1)
                ctx = jnp.dot(p.astype(bf), v[:, sl].astype(bf),
                              preferred_element_type=jnp.float32)
                acc = acc + mm(ctx, params["wo"][l][sl, :])
            h = h + acc + params["bo"][l]
            y = _layernorm(h, params["ln2_g"][l], params["ln2_b"][l])
            f = jax.nn.gelu(mm(y, params["wf1"][l]) + params["bf1"][l], approximate=True)
            h = h + mm(f, params["wf2"][l]) + params["bf2"][l]
        h = _layernorm(h, params["lnf_g"], params["lnf_b"])
        out = mm(h, params["w_out"]) + params["b_out"]
        return out * mb

    return jax.vmap(one)(x, mask)


# ------------------------------- main --------------------------------------
if __name__ == "__main__":
    key = jax.random.PRNGKey(0)
    k_p, k_x = jax.random.split(key)
    params = init_params(k_p)

    x = jax.random.normal(k_x, (B, T, INPUT_DIM), jnp.float32)
    # deterministic mask: last few frames of batch 1 are padding
    lengths = jnp.array([T, T - 4])
    mask = (jnp.arange(T)[None, :] < lengths[:, None]).astype(jnp.float32)[..., None]

    out = transformer_temporal_forward(params, x, mask)
    out = jax.block_until_ready(out)

    ref = reference_forward(params, x, mask)
    err = float(jnp.max(jnp.abs(out - ref)))
    assert jnp.all(jnp.isfinite(out)), "non-finite output"
    # tolerance covers bf16 weights + pl.reciprocal(approx=True) softmax normalization
    assert err < 2e-2, f"mismatch vs reference: {err}"

    print("KERNEL_OK")
</pallas_src>

<mosaic_0001>
module attributes {stable_mosaic.version = 11 : i64} {
  func.func @transformer_kernel(%arg0: memref<2x16x256xf32, #tpu.memory_space<vmem>>, %arg1: memref<2x16x1xf32, #tpu.memory_space<vmem>>, %arg2: memref<8x16x16xf32, #tpu.memory_space<vmem>>, %arg3: memref<256x128xbf16, #tpu.memory_space<vmem>>, %arg4: memref<1x128xf32, #tpu.memory_space<vmem>>, %arg5: memref<2x1x128xf32, #tpu.memory_space<vmem>>, %arg6: memref<2x1x128xf32, #tpu.memory_space<vmem>>, %arg7: memref<2x128x384xbf16, #tpu.memory_space<vmem>>, %arg8: memref<2x1x384xf32, #tpu.memory_space<vmem>>, %arg9: memref<2x4x32x128xbf16, #tpu.memory_space<vmem>>, %arg10: memref<2x1x128xf32, #tpu.memory_space<vmem>>, %arg11: memref<2x1x128xf32, #tpu.memory_space<vmem>>, %arg12: memref<2x1x128xf32, #tpu.memory_space<vmem>>, %arg13: memref<2x128x512xbf16, #tpu.memory_space<vmem>>, %arg14: memref<2x1x512xf32, #tpu.memory_space<vmem>>, %arg15: memref<2x512x128xbf16, #tpu.memory_space<vmem>>, %arg16: memref<2x1x128xf32, #tpu.memory_space<vmem>>, %arg17: memref<1x128xf32, #tpu.memory_space<vmem>>, %arg18: memref<1x128xf32, #tpu.memory_space<vmem>>, %arg19: memref<128x256xbf16, #tpu.memory_space<vmem>>, %arg20: memref<1x256xf32, #tpu.memory_space<vmem>>, %arg21: memref<2x16x256xf32, #tpu.memory_space<vmem>>) attributes {dimension_semantics = [], scalar_prefetch = 0 : i64, scratch_operands = 0 : i64, tpu.core_type = #tpu.core_type<tc>} {
    %c0 = arith.constant 0 : index
    %c0_0 = arith.constant 0 : index
    %c0_1 = arith.constant 0 : index
    %0 = vector.load %arg0[%c0, %c0_0, %c0_1] : memref<2x16x256xf32, #tpu.memory_space<vmem>>, vector<2x16x256xf32>
    %1 = vector.shape_cast %0 : vector<2x16x256xf32> to vector<32x256xf32>
    %c0_2 = arith.constant 0 : index
    %c0_3 = arith.constant 0 : index
    %c0_4 = arith.constant 0 : index
    %2 = vector.load %arg1[%c0_2, %c0_3, %c0_4] : memref<2x16x1xf32, #tpu.memory_space<vmem>>, vector<2x16x1xf32>
    %3 = vector.shape_cast %2 : vector<2x16x1xf32> to vector<32x1xf32>
    %c0_5 = arith.constant 0 : index
    %c0_6 = arith.constant 0 : index
    %c0_7 = arith.constant 0 : index
    %4 = vector.load %arg2[%c0_5, %c0_6, %c0_7] : memref<8x16x16xf32, #tpu.memory_space<vmem>>, vector<8x16x16xf32>
    %5 = arith.truncf %1 : vector<32x256xf32> to vector<32x256xbf16>
    %c0_8 = arith.constant 0 : index
    %c0_9 = arith.constant 0 : index
    %6 = vector.load %arg3[%c0_8, %c0_9] : memref<256x128xbf16, #tpu.memory_space<vmem>>, vector<256x128xbf16>
    %cst = arith.constant dense<0.000000e+00> : vector<32x128xf32>
    %7 = tpu.matmul %5, %6, %cst {dimension_numbers = #tpu.dot_dimension_numbers<[1], [0], [0], [1], [0, 0, 1, 1], [], []>} : vector<32x256xbf16>, vector<256x128xbf16>, vector<32x128xf32> -> vector<32x128xf32>
    %c0_10 = arith.constant 0 : index
    %c0_11 = arith.constant 0 : index
    %8 = vector.load %arg4[%c0_10, %c0_11] : memref<1x128xf32, #tpu.memory_space<vmem>>, vector<1x128xf32>
    %9 = vector.broadcast %8 : vector<1x128xf32> to vector<32x128xf32>
    %10 = arith.addf %7, %9 : vector<32x128xf32>
    %c0_12 = arith.constant 0 : index
    %c0_13 = arith.constant 0 : index
    %c0_14 = arith.constant 0 : index
    %11 = vector.load %arg5[%c0_12, %c0_13, %c0_14] : memref<2x1x128xf32, #tpu.memory_space<vmem>>, vector<1x1x128xf32>
    %12 = vector.shape_cast %11 : vector<1x1x128xf32> to vector<1x128xf32>
    %c0_15 = arith.constant 0 : index
    %c0_16 = arith.constant 0 : index
    %c0_17 = arith.constant 0 : index
    %13 = vector.load %arg6[%c0_15, %c0_16, %c0_17] : memref<2x1x128xf32, #tpu.memory_space<vmem>>, vector<1x1x128xf32>
    %14 = vector.shape_cast %13 : vector<1x1x128xf32> to vector<1x128xf32>
    %cst_18 = arith.constant dense<0.000000e+00> : vector<32xf32>
    %15 = vector.multi_reduction <add>, %10, %cst_18 [1] : vector<32x128xf32> to vector<32xf32>
    %16 = vector.shape_cast %15 : vector<32xf32> to vector<32x1xf32>
    %cst_19 = arith.constant 1.280000e+02 : f32
    %17 = vector.broadcast %cst_19 : f32 to vector<32x1xf32>
    %18 = arith.divf %16, %17 : vector<32x1xf32>
    %19 = vector.broadcast %18 : vector<32x1xf32> to vector<32x128xf32>
    %20 = arith.subf %10, %19 : vector<32x128xf32>
    %21 = arith.mulf %20, %20 : vector<32x128xf32>
    %cst_20 = arith.constant dense<0.000000e+00> : vector<32xf32>
    %22 = vector.multi_reduction <add>, %21, %cst_20 [1] : vector<32x128xf32> to vector<32xf32>
    %23 = vector.shape_cast %22 : vector<32xf32> to vector<32x1xf32>
    %cst_21 = arith.constant 1.280000e+02 : f32
    %24 = vector.broadcast %cst_21 : f32 to vector<32x1xf32>
    %25 = arith.divf %23, %24 : vector<32x1xf32>
    %26 = vector.broadcast %18 : vector<32x1xf32> to vector<32x128xf32>
    %27 = arith.subf %10, %26 : vector<32x128xf32>
    %cst_22 = arith.constant 9.99999974E-6 : f32
    %28 = vector.broadcast %cst_22 : f32 to vector<32x1xf32>
    %29 = arith.addf %25, %28 : vector<32x1xf32>
    %30 = math.rsqrt %29 : vector<32x1xf32>
    %31 = vector.broadcast %30 : vector<32x1xf32> to vector<32x128xf32>
    %32 = arith.mulf %27, %31 : vector<32x128xf32>
    %33 = vector.broadcast %12 : vector<1x128xf32> to vector<32x128xf32>
    %34 = arith.mulf %32, %33 : vector<32x128xf32>
    %35 = vector.broadcast %14 : vector<1x128xf32> to vector<32x128xf32>
    %36 = arith.addf %34, %35 : vector<32x128xf32>
    %37 = arith.truncf %36 : vector<32x128xf32> to vector<32x128xbf16>
    %c0_23 = arith.constant 0 : index
    %c0_24 = arith.constant 0 : index
    %c0_25 = arith.constant 0 : index
    %38 = vector.load %arg7[%c0_23, %c0_24, %c0_25] : memref<2x128x384xbf16, #tpu.memory_space<vmem>>, vector<1x128x384xbf16>
    %39 = vector.shape_cast %38 : vector<1x128x384xbf16> to vector<128x384xbf16>
    %cst_26 = arith.constant dense<0.000000e+00> : vector<32x384xf32>
    %40 = tpu.matmul %37, %39, %cst_26 {dimension_numbers = #tpu.dot_dimension_numbers<[1], [0], [0], [1], [0, 0, 1, 1], [], []>} : vector<32x128xbf16>, vector<128x384xbf16>, vector<32x384xf32> -> vector<32x384xf32>
    %c0_27 = arith.constant 0 : index
    %c0_28 = arith.constant 0 : index
    %c0_29 = arith.constant 0 : index
    %41 = vector.load %arg8[%c0_27, %c0_28, %c0_29] : memref<2x1x384xf32, #tpu.memory_space<vmem>>, vector<1x1x384xf32>
    %42 = vector.shape_cast %41 : vector<1x1x384xf32> to vector<1x384xf32>
    %43 = vector.broadcast %42 : vector<1x384xf32> to vector<32x384xf32>
    %44 = arith.addf %40, %43 : vector<32x384xf32>
    %45 = arith.truncf %44 : vector<32x384xf32> to vector<32x384xbf16>
    %46 = vector.extract_strided_slice %45 {offsets = [0, 0], sizes = [32, 32], strides = [1, 1]} : vector<32x384xbf16> to vector<32x32xbf16>
    %47 = vector.shape_cast %46 : vector<32x32xbf16> to vector<2x16x32xbf16>
    %48 = vector.extract_strided_slice %45 {offsets = [0, 32], sizes = [32, 32], strides = [1, 1]} : vector<32x384xbf16> to vector<32x32xbf16>
    %49 = vector.shape_cast %48 : vector<32x32xbf16> to vector<2x16x32xbf16>
    %50 = vector.extract_strided_slice %45 {offsets = [0, 64], sizes = [32, 32], strides = [1, 1]} : vector<32x384xbf16> to vector<32x32xbf16>
    %51 = vector.shape_cast %50 : vector<32x32xbf16> to vector<2x16x32xbf16>
    %52 = vector.extract_strided_slice %45 {offsets = [0, 96], sizes = [32, 32], strides = [1, 1]} : vector<32x384xbf16> to vector<32x32xbf16>
    %53 = vector.shape_cast %52 : vector<32x32xbf16> to vector<2x16x32xbf16>
    %54 = tpu.concatenate %47, %49, %51, %53 in 0 : vector<2x16x32xbf16>, vector<2x16x32xbf16>, vector<2x16x32xbf16>, vector<2x16x32xbf16> -> vector<8x16x32xbf16>
    %55 = vector.extract_strided_slice %45 {offsets = [0, 128], sizes = [32, 32], strides = [1, 1]} : vector<32x384xbf16> to vector<32x32xbf16>
    %56 = vector.shape_cast %55 : vector<32x32xbf16> to vector<2x16x32xbf16>
    %57 = vector.extract_strided_slice %45 {offsets = [0, 160], sizes = [32, 32], strides = [1, 1]} : vector<32x384xbf16> to vector<32x32xbf16>
    %58 = vector.shape_cast %57 : vector<32x32xbf16> to vector<2x16x32xbf16>
    %59 = vector.extract_strided_slice %45 {offsets = [0, 192], sizes = [32, 32], strides = [1, 1]} : vector<32x384xbf16> to vector<32x32xbf16>
    %60 = vector.shape_cast %59 : vector<32x32xbf16> to vector<2x16x32xbf16>
    %61 = vector.extract_strided_slice %45 {offsets = [0, 224], sizes = [32, 32], strides = [1, 1]} : vector<32x384xbf16> to vector<32x32xbf16>
    %62 = vector.shape_cast %61 : vector<32x32xbf16> to vector<2x16x32xbf16>
    %63 = tpu.concatenate %56, %58, %60, %62 in 0 : vector<2x16x32xbf16>, vector<2x16x32xbf16>, vector<2x16x32xbf16>, vector<2x16x32xbf16> -> vector<8x16x32xbf16>
    %64 = vector.extract_strided_slice %45 {offsets = [0, 256], sizes = [32, 32], strides = [1, 1]} : vector<32x384xbf16> to vector<32x32xbf16>
    %65 = vector.shape_cast %64 : vector<32x32xbf16> to vector<2x16x32xbf16>
    %66 = vector.extract_strided_slice %45 {offsets = [0, 288], sizes = [32, 32], strides = [1, 1]} : vector<32x384xbf16> to vector<32x32xbf16>
    %67 = vector.shape_cast %66 : vector<32x32xbf16> to vector<2x16x32xbf16>
    %68 = vector.extract_strided_slice %45 {offsets = [0, 320], sizes = [32, 32], strides = [1, 1]} : vector<32x384xbf16> to vector<32x32xbf16>
    %69 = vector.shape_cast %68 : vector<32x32xbf16> to vector<2x16x32xbf16>
    %70 = vector.extract_strided_slice %45 {offsets = [0, 352], sizes = [32, 32], strides = [1, 1]} : vector<32x384xbf16> to vector<32x32xbf16>
    %71 = vector.shape_cast %70 : vector<32x32xbf16> to vector<2x16x32xbf16>
    %72 = tpu.concatenate %65, %67, %69, %71 in 0 : vector<2x16x32xbf16>, vector<2x16x32xbf16>, vector<2x16x32xbf16>, vector<2x16x32xbf16> -> vector<8x16x32xbf16>
    "tpu.trace_start"() <{level = 10 : i32, message = "bqd,bkd->bqk"}> : () -> ()
    %cst_30 = arith.constant dense<0.000000e+00> : vector<8x16x16xf32>
    %73 = tpu.matmul %54, %63, %cst_30 {dimension_numbers = #tpu.dot_dimension_numbers<[2], [2], [1], [1], [0, 0, 0, 1, 1, 1], [0], [0]>} : vector<8x16x32xbf16>, vector<8x16x32xbf16>, vector<8x16x16xf32> -> vector<8x16x16xf32>
    "tpu.trace_stop"() : () -> ()
    %74 = arith.addf %73, %4 : vector<8x16x16xf32>
    %cst_31 = arith.constant dense<0xFF800000> : vector<8x16xf32>
    %75 = vector.multi_reduction <maximumf>, %74, %cst_31 [2] : vector<8x16x16xf32> to vector<8x16xf32>
    %76 = vector.shape_cast %75 : vector<8x16xf32> to vector<8x16x1xf32>
    %77 = vector.broadcast %76 : vector<8x16x1xf32> to vector<8x16x16xf32>
    %78 = arith.subf %74, %77 : vector<8x16x16xf32>
    %79 = math.exp %78 : vector<8x16x16xf32>
    %cst_32 = arith.constant dense<0.000000e+00> : vector<8x16xf32>
    %80 = vector.multi_reduction <add>, %79, %cst_32 [2] : vector<8x16x16xf32> to vector<8x16xf32>
    %81 = vector.shape_cast %80 : vector<8x16xf32> to vector<8x16x1xf32>
    %82 = tpu.reciprocal %81 {approx = true} : vector<8x16x1xf32> -> vector<8x16x1xf32>
    %83 = vector.broadcast %82 : vector<8x16x1xf32> to vector<8x16x16xf32>
    %84 = arith.mulf %79, %83 : vector<8x16x16xf32>
    %85 = arith.truncf %84 : vector<8x16x16xf32> to vector<8x16x16xbf16>
    "tpu.trace_start"() <{level = 10 : i32, message = "bqk,bkd->bqd"}> : () -> ()
    %cst_33 = arith.constant dense<0.000000e+00> : vector<8x16x32xf32>
    %86 = tpu.matmul %85, %72, %cst_33 {dimension_numbers = #tpu.dot_dimension_numbers<[2], [1], [1], [2], [0, 0, 0, 1, 1, 2], [0], [0]>} : vector<8x16x16xbf16>, vector<8x16x32xbf16>, vector<8x16x32xf32> -> vector<8x16x32xf32>
    "tpu.trace_stop"() : () -> ()
    %87 = vector.shape_cast %86 : vector<8x16x32xf32> to vector<4x32x32xf32>
    %88 = arith.truncf %87 : vector<4x32x32xf32> to vector<4x32x32xbf16>
    %c0_34 = arith.constant 0 : index
    %c0_35 = arith.constant 0 : index
    %c0_36 = arith.constant 0 : index
    %c0_37 = arith.constant 0 : index
    %89 = vector.load %arg9[%c0_34, %c0_35, %c0_36, %c0_37] : memref<2x4x32x128xbf16, #tpu.memory_space<vmem>>, vector<1x4x32x128xbf16>
    %90 = vector.shape_cast %89 : vector<1x4x32x128xbf16> to vector<4x32x128xbf16>
    "tpu.trace_start"() <{level = 10 : i32, message = "hmd,hdf->hmf"}> : () -> ()
    %cst_38 = arith.constant dense<0.000000e+00> : vector<4x32x128xf32>
    %91 = tpu.matmul %88, %90, %cst_38 {dimension_numbers = #tpu.dot_dimension_numbers<[2], [1], [1], [2], [0, 0, 0, 1, 1, 2], [0], [0]>} : vector<4x32x32xbf16>, vector<4x32x128xbf16>, vector<4x32x128xf32> -> vector<4x32x128xf32>
    "tpu.trace_stop"() : () -> ()
    %cst_39 = arith.constant dense<0.000000e+00> : vector<32x128xf32>
    %92 = vector.multi_reduction <add>, %91, %cst_39 [0] : vector<4x32x128xf32> to vector<32x128xf32>
    %93 = arith.addf %10, %92 : vector<32x128xf32>
    %c0_40 = arith.constant 0 : index
    %c0_41 = arith.constant 0 : index
    %c0_42 = arith.constant 0 : index
    %94 = vector.load %arg10[%c0_40, %c0_41, %c0_42] : memref<2x1x128xf32, #tpu.memory_space<vmem>>, vector<1x1x128xf32>
    %95 = vector.shape_cast %94 : vector<1x1x128xf32> to vector<1x128xf32>
    %96 = vector.broadcast %95 : vector<1x128xf32> to vector<32x128xf32>
    %97 = arith.addf %93, %96 : vector<32x128xf32>
    %c0_43 = arith.constant 0 : index
    %c0_44 = arith.constant 0 : index
    %c0_45 = arith.constant 0 : index
    %98 = vector.load %arg11[%c0_43, %c0_44, %c0_45] : memref<2x1x128xf32, #tpu.memory_space<vmem>>, vector<1x1x128xf32>
    %99 = vector.shape_cast %98 : vector<1x1x128xf32> to vector<1x128xf32>
    %c0_46 = arith.constant 0 : index
    %c0_47 = arith.constant 0 : index
    %c0_48 = arith.constant 0 : index
    %100 = vector.load %arg12[%c0_46, %c0_47, %c0_48] : memref<2x1x128xf32, #tpu.memory_space<vmem>>, vector<1x1x128xf32>
    %101 = vector.shape_cast %100 : vector<1x1x128xf32> to vector<1x128xf32>
    %cst_49 = arith.constant dense<0.000000e+00> : vector<32xf32>
    %102 = vector.multi_reduction <add>, %97, %cst_49 [1] : vector<32x128xf32> to vector<32xf32>
    %103 = vector.shape_cast %102 : vector<32xf32> to vector<32x1xf32>
    %cst_50 = arith.constant 1.280000e+02 : f32
    %104 = vector.broadcast %cst_50 : f32 to vector<32x1xf32>
    %105 = arith.divf %103, %104 : vector<32x1xf32>
    %106 = vector.broadcast %105 : vector<32x1xf32> to vector<32x128xf32>
    %107 = arith.subf %97, %106 : vector<32x128xf32>
    %108 = arith.mulf %107, %107 : vector<32x128xf32>
    %cst_51 = arith.constant dense<0.000000e+00> : vector<32xf32>
    %109 = vector.multi_reduction <add>, %108, %cst_51 [1] : vector<32x128xf32> to vector<32xf32>
    %110 = vector.shape_cast %109 : vector<32xf32> to vector<32x1xf32>
    %cst_52 = arith.constant 1.280000e+02 : f32
    %111 = vector.broadcast %cst_52 : f32 to vector<32x1xf32>
    %112 = arith.divf %110, %111 : vector<32x1xf32>
    %113 = vector.broadcast %105 : vector<32x1xf32> to vector<32x128xf32>
    %114 = arith.subf %97, %113 : vector<32x128xf32>
    %cst_53 = arith.constant 9.99999974E-6 : f32
    %115 = vector.broadcast %cst_53 : f32 to vector<32x1xf32>
    %116 = arith.addf %112, %115 : vector<32x1xf32>
    %117 = math.rsqrt %116 : vector<32x1xf32>
    %118 = vector.broadcast %117 : vector<32x1xf32> to vector<32x128xf32>
    %119 = arith.mulf %114, %118 : vector<32x128xf32>
    %120 = vector.broadcast %99 : vector<1x128xf32> to vector<32x128xf32>
    %121 = arith.mulf %119, %120 : vector<32x128xf32>
    %122 = vector.broadcast %101 : vector<1x128xf32> to vector<32x128xf32>
    %123 = arith.addf %121, %122 : vector<32x128xf32>
    %124 = arith.truncf %123 : vector<32x128xf32> to vector<32x128xbf16>
    %c0_54 = arith.constant 0 : index
    %c0_55 = arith.constant 0 : index
    %c0_56 = arith.constant 0 : index
    %125 = vector.load %arg13[%c0_54, %c0_55, %c0_56] : memref<2x128x512xbf16, #tpu.memory_space<vmem>>, vector<1x128x512xbf16>
    %126 = vector.shape_cast %125 : vector<1x128x512xbf16> to vector<128x512xbf16>
    %cst_57 = arith.constant dense<0.000000e+00> : vector<32x512xf32>
    %127 = tpu.matmul %124, %126, %cst_57 {dimension_numbers = #tpu.dot_dimension_numbers<[1], [0], [0], [1], [0, 0, 1, 1], [], []>} : vector<32x128xbf16>, vector<128x512xbf16>, vector<32x512xf32> -> vector<32x512xf32>
    %c0_58 = arith.constant 0 : index
    %c0_59 = arith.constant 0 : index
    %c0_60 = arith.constant 0 : index
    %128 = vector.load %arg14[%c0_58, %c0_59, %c0_60] : memref<2x1x512xf32, #tpu.memory_space<vmem>>, vector<1x1x512xf32>
    %129 = vector.shape_cast %128 : vector<1x1x512xf32> to vector<1x512xf32>
    %130 = vector.broadcast %129 : vector<1x512xf32> to vector<32x512xf32>
    %131 = arith.addf %127, %130 : vector<32x512xf32>
    %132 = arith.mulf %131, %131 : vector<32x512xf32>
    %133 = arith.mulf %131, %132 : vector<32x512xf32>
    %cst_61 = arith.constant 4.471500e-02 : f32
    %134 = vector.broadcast %cst_61 : f32 to vector<32x512xf32>
    %135 = arith.mulf %134, %133 : vector<32x512xf32>
    %136 = arith.addf %131, %135 : vector<32x512xf32>
    %cst_62 = arith.constant 0.797884583 : f32
    %137 = vector.broadcast %cst_62 : f32 to vector<32x512xf32>
    %138 = arith.mulf %137, %136 : vector<32x512xf32>
    %139 = math.tanh %138 : vector<32x512xf32>
    %cst_63 = arith.constant 1.000000e+00 : f32
    %140 = vector.broadcast %cst_63 : f32 to vector<32x512xf32>
    %141 = arith.addf %140, %139 : vector<32x512xf32>
    %cst_64 = arith.constant 5.000000e-01 : f32
    %142 = vector.broadcast %cst_64 : f32 to vector<32x512xf32>
    %143 = arith.mulf %142, %141 : vector<32x512xf32>
    %144 = arith.mulf %131, %143 : vector<32x512xf32>
    %145 = arith.truncf %144 : vector<32x512xf32> to vector<32x512xbf16>
    %c0_65 = arith.constant 0 : index
    %c0_66 = arith.constant 0 : index
    %c0_67 = arith.constant 0 : index
    %146 = vector.load %arg15[%c0_65, %c0_66, %c0_67] : memref<2x512x128xbf16, #tpu.memory_space<vmem>>, vector<1x512x128xbf16>
    %147 = vector.shape_cast %146 : vector<1x512x128xbf16> to vector<512x128xbf16>
    %cst_68 = arith.constant dense<0.000000e+00> : vector<32x128xf32>
    %148 = tpu.matmul %145, %147, %cst_68 {dimension_numbers = #tpu.dot_dimension_numbers<[1], [0], [0], [1], [0, 0, 1, 1], [], []>} : vector<32x512xbf16>, vector<512x128xbf16>, vector<32x128xf32> -> vector<32x128xf32>
    %149 = arith.addf %97, %148 : vector<32x128xf32>
    %c0_69 = arith.constant 0 : index
    %c0_70 = arith.constant 0 : index
    %c0_71 = arith.constant 0 : index
    %150 = vector.load %arg16[%c0_69, %c0_70, %c0_71] : memref<2x1x128xf32, #tpu.memory_space<vmem>>, vector<1x1x128xf32>
    %151 = vector.shape_cast %150 : vector<1x1x128xf32> to vector<1x128xf32>
    %152 = vector.broadcast %151 : vector<1x128xf32> to vector<32x128xf32>
    %153 = arith.addf %149, %152 : vector<32x128xf32>
    %c1 = arith.constant 1 : index
    %c0_72 = arith.constant 0 : index
    %c0_73 = arith.constant 0 : index
    %154 = vector.load %arg5[%c1, %c0_72, %c0_73] : memref<2x1x128xf32, #tpu.memory_space<vmem>>, vector<1x1x128xf32>
    %155 = vector.shape_cast %154 : vector<1x1x128xf32> to vector<1x128xf32>
    %c1_74 = arith.constant 1 : index
    %c0_75 = arith.constant 0 : index
    %c0_76 = arith.constant 0 : index
    %156 = vector.load %arg6[%c1_74, %c0_75, %c0_76] : memref<2x1x128xf32, #tpu.memory_space<vmem>>, vector<1x1x128xf32>
    %157 = vector.shape_cast %156 : vector<1x1x128xf32> to vector<1x128xf32>
    %cst_77 = arith.constant dense<0.000000e+00> : vector<32xf32>
    %158 = vector.multi_reduction <add>, %153, %cst_77 [1] : vector<32x128xf32> to vector<32xf32>
    %159 = vector.shape_cast %158 : vector<32xf32> to vector<32x1xf32>
    %cst_78 = arith.constant 1.280000e+02 : f32
    %160 = vector.broadcast %cst_78 : f32 to vector<32x1xf32>
    %161 = arith.divf %159, %160 : vector<32x1xf32>
    %162 = vector.broadcast %161 : vector<32x1xf32> to vector<32x128xf32>
    %163 = arith.subf %153, %162 : vector<32x128xf32>
    %164 = arith.mulf %163, %163 : vector<32x128xf32>
    %cst_79 = arith.constant dense<0.000000e+00> : vector<32xf32>
    %165 = vector.multi_reduction <add>, %164, %cst_79 [1] : vector<32x128xf32> to vector<32xf32>
    %166 = vector.shape_cast %165 : vector<32xf32> to vector<32x1xf32>
    %cst_80 = arith.constant 1.280000e+02 : f32
    %167 = vector.broadcast %cst_80 : f32 to vector<32x1xf32>
    %168 = arith.divf %166, %167 : vector<32x1xf32>
    %169 = vector.broadcast %161 : vector<32x1xf32> to vector<32x128xf32>
    %170 = arith.subf %153, %169 : vector<32x128xf32>
    %cst_81 = arith.constant 9.99999974E-6 : f32
    %171 = vector.broadcast %cst_81 : f32 to vector<32x1xf32>
    %172 = arith.addf %168, %171 : vector<32x1xf32>
    %173 = math.rsqrt %172 : vector<32x1xf32>
    %174 = vector.broadcast %173 : vector<32x1xf32> to vector<32x128xf32>
    %175 = arith.mulf %170, %174 : vector<32x128xf32>
    %176 = vector.broadcast %155 : vector<1x128xf32> to vector<32x128xf32>
    %177 = arith.mulf %175, %176 : vector<32x128xf32>
    %178 = vector.broadcast %157 : vector<1x128xf32> to vector<32x128xf32>
    %179 = arith.addf %177, %178 : vector<32x128xf32>
    %180 = arith.truncf %179 : vector<32x128xf32> to vector<32x128xbf16>
    %c1_82 = arith.constant 1 : index
    %c0_83 = arith.constant 0 : index
    %c0_84 = arith.constant 0 : index
    %181 = vector.load %arg7[%c1_82, %c0_83, %c0_84] : memref<2x128x384xbf16, #tpu.memory_space<vmem>>, vector<1x128x384xbf16>
    %182 = vector.shape_cast %181 : vector<1x128x384xbf16> to vector<128x384xbf16>
    %cst_85 = arith.constant dense<0.000000e+00> : vector<32x384xf32>
    %183 = tpu.matmul %180, %182, %cst_85 {dimension_numbers = #tpu.dot_dimension_numbers<[1], [0], [0], [1], [0, 0, 1, 1], [], []>} : vector<32x128xbf16>, vector<128x384xbf16>, vector<32x384xf32> -> vector<32x384xf32>
    %c1_86 = arith.constant 1 : index
    %c0_87 = arith.constant 0 : index
    %c0_88 = arith.constant 0 : index
    %184 = vector.load %arg8[%c1_86, %c0_87, %c0_88] : memref<2x1x384xf32, #tpu.memory_space<vmem>>, vector<1x1x384xf32>
    %185 = vector.shape_cast %184 : vector<1x1x384xf32> to vector<1x384xf32>
    %186 = vector.broadcast %185 : vector<1x384xf32> to vector<32x384xf32>
    %187 = arith.addf %183, %186 : vector<32x384xf32>
    %188 = arith.truncf %187 : vector<32x384xf32> to vector<32x384xbf16>
    %189 = vector.extract_strided_slice %188 {offsets = [0, 0], sizes = [32, 32], strides = [1, 1]} : vector<32x384xbf16> to vector<32x32xbf16>
    %190 = vector.shape_cast %189 : vector<32x32xbf16> to vector<2x16x32xbf16>
    %191 = vector.extract_strided_slice %188 {offsets = [0, 32], sizes = [32, 32], strides = [1, 1]} : vector<32x384xbf16> to vector<32x32xbf16>
    %192 = vector.shape_cast %191 : vector<32x32xbf16> to vector<2x16x32xbf16>
    %193 = vector.extract_strided_slice %188 {offsets = [0, 64], sizes = [32, 32], strides = [1, 1]} : vector<32x384xbf16> to vector<32x32xbf16>
    %194 = vector.shape_cast %193 : vector<32x32xbf16> to vector<2x16x32xbf16>
    %195 = vector.extract_strided_slice %188 {offsets = [0, 96], sizes = [32, 32], strides = [1, 1]} : vector<32x384xbf16> to vector<32x32xbf16>
    %196 = vector.shape_cast %195 : vector<32x32xbf16> to vector<2x16x32xbf16>
    %197 = tpu.concatenate %190, %192, %194, %196 in 0 : vector<2x16x32xbf16>, vector<2x16x32xbf16>, vector<2x16x32xbf16>, vector<2x16x32xbf16> -> vector<8x16x32xbf16>
    %198 = vector.extract_strided_slice %188 {offsets = [0, 128], sizes = [32, 32], strides = [1, 1]} : vector<32x384xbf16> to vector<32x32xbf16>
    %199 = vector.shape_cast %198 : vector<32x32xbf16> to vector<2x16x32xbf16>
    %200 = vector.extract_strided_slice %188 {offsets = [0, 160], sizes = [32, 32], strides = [1, 1]} : vector<32x384xbf16> to vector<32x32xbf16>
    %201 = vector.shape_cast %200 : vector<32x32xbf16> to vector<2x16x32xbf16>
    %202 = vector.extract_strided_slice %188 {offsets = [0, 192], sizes = [32, 32], strides = [1, 1]} : vector<32x384xbf16> to vector<32x32xbf16>
    %203 = vector.shape_cast %202 : vector<32x32xbf16> to vector<2x16x32xbf16>
    %204 = vector.extract_strided_slice %188 {offsets = [0, 224], sizes = [32, 32], strides = [1, 1]} : vector<32x384xbf16> to vector<32x32xbf16>
    %205 = vector.shape_cast %204 : vector<32x32xbf16> to vector<2x16x32xbf16>
    %206 = tpu.concatenate %199, %201, %203, %205 in 0 : vector<2x16x32xbf16>, vector<2x16x32xbf16>, vector<2x16x32xbf16>, vector<2x16x32xbf16> -> vector<8x16x32xbf16>
    %207 = vector.extract_strided_slice %188 {offsets = [0, 256], sizes = [32, 32], strides = [1, 1]} : vector<32x384xbf16> to vector<32x32xbf16>
    %208 = vector.shape_cast %207 : vector<32x32xbf16> to vector<2x16x32xbf16>
    %209 = vector.extract_strided_slice %188 {offsets = [0, 288], sizes = [32, 32], strides = [1, 1]} : vector<32x384xbf16> to vector<32x32xbf16>
    %210 = vector.shape_cast %209 : vector<32x32xbf16> to vector<2x16x32xbf16>
    %211 = vector.extract_strided_slice %188 {offsets = [0, 320], sizes = [32, 32], strides = [1, 1]} : vector<32x384xbf16> to vector<32x32xbf16>
    %212 = vector.shape_cast %211 : vector<32x32xbf16> to vector<2x16x32xbf16>
    %213 = vector.extract_strided_slice %188 {offsets = [0, 352], sizes = [32, 32], strides = [1, 1]} : vector<32x384xbf16> to vector<32x32xbf16>
    %214 = vector.shape_cast %213 : vector<32x32xbf16> to vector<2x16x32xbf16>
    %215 = tpu.concatenate %208, %210, %212, %214 in 0 : vector<2x16x32xbf16>, vector<2x16x32xbf16>, vector<2x16x32xbf16>, vector<2x16x32xbf16> -> vector<8x16x32xbf16>
    "tpu.trace_start"() <{level = 10 : i32, message = "bqd,bkd->bqk"}> : () -> ()
    %cst_89 = arith.constant dense<0.000000e+00> : vector<8x16x16xf32>
    %216 = tpu.matmul %197, %206, %cst_89 {dimension_numbers = #tpu.dot_dimension_numbers<[2], [2], [1], [1], [0, 0, 0, 1, 1, 1], [0], [0]>} : vector<8x16x32xbf16>, vector<8x16x32xbf16>, vector<8x16x16xf32> -> vector<8x16x16xf32>
    "tpu.trace_stop"() : () -> ()
    %217 = arith.addf %216, %4 : vector<8x16x16xf32>
    %cst_90 = arith.constant dense<0xFF800000> : vector<8x16xf32>
    %218 = vector.multi_reduction <maximumf>, %217, %cst_90 [2] : vector<8x16x16xf32> to vector<8x16xf32>
    %219 = vector.shape_cast %218 : vector<8x16xf32> to vector<8x16x1xf32>
    %220 = vector.broadcast %219 : vector<8x16x1xf32> to vector<8x16x16xf32>
    %221 = arith.subf %217, %220 : vector<8x16x16xf32>
    %222 = math.exp %221 : vector<8x16x16xf32>
    %cst_91 = arith.constant dense<0.000000e+00> : vector<8x16xf32>
    %223 = vector.multi_reduction <add>, %222, %cst_91 [2] : vector<8x16x16xf32> to vector<8x16xf32>
    %224 = vector.shape_cast %223 : vector<8x16xf32> to vector<8x16x1xf32>
    %225 = tpu.reciprocal %224 {approx = true} : vector<8x16x1xf32> -> vector<8x16x1xf32>
    %226 = vector.broadcast %225 : vector<8x16x1xf32> to vector<8x16x16xf32>
    %227 = arith.mulf %222, %226 : vector<8x16x16xf32>
    %228 = arith.truncf %227 : vector<8x16x16xf32> to vector<8x16x16xbf16>
    "tpu.trace_start"() <{level = 10 : i32, message = "bqk,bkd->bqd"}> : () -> ()
    %cst_92 = arith.constant dense<0.000000e+00> : vector<8x16x32xf32>
    %229 = tpu.matmul %228, %215, %cst_92 {dimension_numbers = #tpu.dot_dimension_numbers<[2], [1], [1], [2], [0, 0, 0, 1, 1, 2], [0], [0]>} : vector<8x16x16xbf16>, vector<8x16x32xbf16>, vector<8x16x32xf32> -> vector<8x16x32xf32>
    "tpu.trace_stop"() : () -> ()
    %230 = vector.shape_cast %229 : vector<8x16x32xf32> to vector<4x32x32xf32>
    %231 = arith.truncf %230 : vector<4x32x32xf32> to vector<4x32x32xbf16>
    %c1_93 = arith.constant 1 : index
    %c0_94 = arith.constant 0 : index
    %c0_95 = arith.constant 0 : index
    %c0_96 = arith.constant 0 : index
    %232 = vector.load %arg9[%c1_93, %c0_94, %c0_95, %c0_96] : memref<2x4x32x128xbf16, #tpu.memory_space<vmem>>, vector<1x4x32x128xbf16>
    %233 = vector.shape_cast %232 : vector<1x4x32x128xbf16> to vector<4x32x128xbf16>
    "tpu.trace_start"() <{level = 10 : i32, message = "hmd,hdf->hmf"}> : () -> ()
    %cst_97 = arith.constant dense<0.000000e+00> : vector<4x32x128xf32>
    %234 = tpu.matmul %231, %233, %cst_97 {dimension_numbers = #tpu.dot_dimension_numbers<[2], [1], [1], [2], [0, 0, 0, 1, 1, 2], [0], [0]>} : vector<4x32x32xbf16>, vector<4x32x128xbf16>, vector<4x32x128xf32> -> vector<4x32x128xf32>
    "tpu.trace_stop"() : () -> ()
    %cst_98 = arith.constant dense<0.000000e+00> : vector<32x128xf32>
    %235 = vector.multi_reduction <add>, %234, %cst_98 [0] : vector<4x32x128xf32> to vector<32x128xf32>
    %236 = arith.addf %153, %235 : vector<32x128xf32>
    %c1_99 = arith.constant 1 : index
    %c0_100 = arith.constant 0 : index
    %c0_101 = arith.constant 0 : index
    %237 = vector.load %arg10[%c1_99, %c0_100, %c0_101] : memref<2x1x128xf32, #tpu.memory_space<vmem>>, vector<1x1x128xf32>
    %238 = vector.shape_cast %237 : vector<1x1x128xf32> to vector<1x128xf32>
    %239 = vector.broadcast %238 : vector<1x128xf32> to vector<32x128xf32>
    %240 = arith.addf %236, %239 : vector<32x128xf32>
    %c1_102 = arith.constant 1 : index
    %c0_103 = arith.constant 0 : index
    %c0_104 = arith.constant 0 : index
    %241 = vector.load %arg11[%c1_102, %c0_103, %c0_104] : memref<2x1x128xf32, #tpu.memory_space<vmem>>, vector<1x1x128xf32>
    %242 = vector.shape_cast %241 : vector<1x1x128xf32> to vector<1x128xf32>
    %c1_105 = arith.constant 1 : index
    %c0_106 = arith.constant 0 : index
    %c0_107 = arith.constant 0 : index
    %243 = vector.load %arg12[%c1_105, %c0_106, %c0_107] : memref<2x1x128xf32, #tpu.memory_space<vmem>>, vector<1x1x128xf32>
    %244 = vector.shape_cast %243 : vector<1x1x128xf32> to vector<1x128xf32>
    %cst_108 = arith.constant dense<0.000000e+00> : vector<32xf32>
    %245 = vector.multi_reduction <add>, %240, %cst_108 [1] : vector<32x128xf32> to vector<32xf32>
    %246 = vector.shape_cast %245 : vector<32xf32> to vector<32x1xf32>
    %cst_109 = arith.constant 1.280000e+02 : f32
    %247 = vector.broadcast %cst_109 : f32 to vector<32x1xf32>
    %248 = arith.divf %246, %247 : vector<32x1xf32>
    %249 = vector.broadcast %248 : vector<32x1xf32> to vector<32x128xf32>
    %250 = arith.subf %240, %249 : vector<32x128xf32>
    %251 = arith.mulf %250, %250 : vector<32x128xf32>
    %cst_110 = arith.constant dense<0.000000e+00> : vector<32xf32>
    %252 = vector.multi_reduction <add>, %251, %cst_110 [1] : vector<32x128xf32> to vector<32xf32>
    %253 = vector.shape_cast %252 : vector<32xf32> to vector<32x1xf32>
    %cst_111 = arith.constant 1.280000e+02 : f32
    %254 = vector.broadcast %cst_111 : f32 to vector<32x1xf32>
    %255 = arith.divf %253, %254 : vector<32x1xf32>
    %256 = vector.broadcast %248 : vector<32x1xf32> to vector<32x128xf32>
    %257 = arith.subf %240, %256 : vector<32x128xf32>
    %cst_112 = arith.constant 9.99999974E-6 : f32
    %258 = vector.broadcast %cst_112 : f32 to vector<32x1xf32>
    %259 = arith.addf %255, %258 : vector<32x1xf32>
    %260 = math.rsqrt %259 : vector<32x1xf32>
    %261 = vector.broadcast %260 : vector<32x1xf32> to vector<32x128xf32>
    %262 = arith.mulf %257, %261 : vector<32x128xf32>
    %263 = vector.broadcast %242 : vector<1x128xf32> to vector<32x128xf32>
    %264 = arith.mulf %262, %263 : vector<32x128xf32>
    %265 = vector.broadcast %244 : vector<1x128xf32> to vector<32x128xf32>
    %266 = arith.addf %264, %265 : vector<32x128xf32>
    %267 = arith.truncf %266 : vector<32x128xf32> to vector<32x128xbf16>
    %c1_113 = arith.constant 1 : index
    %c0_114 = arith.constant 0 : index
    %c0_115 = arith.constant 0 : index
    %268 = vector.load %arg13[%c1_113, %c0_114, %c0_115] : memref<2x128x512xbf16, #tpu.memory_space<vmem>>, vector<1x128x512xbf16>
    %269 = vector.shape_cast %268 : vector<1x128x512xbf16> to vector<128x512xbf16>
    %cst_116 = arith.constant dense<0.000000e+00> : vector<32x512xf32>
    %270 = tpu.matmul %267, %269, %cst_116 {dimension_numbers = #tpu.dot_dimension_numbers<[1], [0], [0], [1], [0, 0, 1, 1], [], []>} : vector<32x128xbf16>, vector<128x512xbf16>, vector<32x512xf32> -> vector<32x512xf32>
    %c1_117 = arith.constant 1 : index
    %c0_118 = arith.constant 0 : index
    %c0_119 = arith.constant 0 : index
    %271 = vector.load %arg14[%c1_117, %c0_118, %c0_119] : memref<2x1x512xf32, #tpu.memory_space<vmem>>, vector<1x1x512xf32>
    %272 = vector.shape_cast %271 : vector<1x1x512xf32> to vector<1x512xf32>
    %273 = vector.broadcast %272 : vector<1x512xf32> to vector<32x512xf32>
    %274 = arith.addf %270, %273 : vector<32x512xf32>
    %275 = arith.mulf %274, %274 : vector<32x512xf32>
    %276 = arith.mulf %274, %275 : vector<32x512xf32>
    %cst_120 = arith.constant 4.471500e-02 : f32
    %277 = vector.broadcast %cst_120 : f32 to vector<32x512xf32>
    %278 = arith.mulf %277, %276 : vector<32x512xf32>
    %279 = arith.addf %274, %278 : vector<32x512xf32>
    %cst_121 = arith.constant 0.797884583 : f32
    %280 = vector.broadcast %cst_121 : f32 to vector<32x512xf32>
    %281 = arith.mulf %280, %279 : vector<32x512xf32>
    %282 = math.tanh %281 : vector<32x512xf32>
    %cst_122 = arith.constant 1.000000e+00 : f32
    %283 = vector.broadcast %cst_122 : f32 to vector<32x512xf32>
    %284 = arith.addf %283, %282 : vector<32x512xf32>
    %cst_123 = arith.constant 5.000000e-01 : f32
    %285 = vector.broadcast %cst_123 : f32 to vector<32x512xf32>
    %286 = arith.mulf %285, %284 : vector<32x512xf32>
    %287 = arith.mulf %274, %286 : vector<32x512xf32>
    %288 = arith.truncf %287 : vector<32x512xf32> to vector<32x512xbf16>
    %c1_124 = arith.constant 1 : index
    %c0_125 = arith.constant 0 : index
    %c0_126 = arith.constant 0 : index
    %289 = vector.load %arg15[%c1_124, %c0_125, %c0_126] : memref<2x512x128xbf16, #tpu.memory_space<vmem>>, vector<1x512x128xbf16>
    %290 = vector.shape_cast %289 : vector<1x512x128xbf16> to vector<512x128xbf16>
    %cst_127 = arith.constant dense<0.000000e+00> : vector<32x128xf32>
    %291 = tpu.matmul %288, %290, %cst_127 {dimension_numbers = #tpu.dot_dimension_numbers<[1], [0], [0], [1], [0, 0, 1, 1], [], []>} : vector<32x512xbf16>, vector<512x128xbf16>, vector<32x128xf32> -> vector<32x128xf32>
    %292 = arith.addf %240, %291 : vector<32x128xf32>
    %c1_128 = arith.constant 1 : index
    %c0_129 = arith.constant 0 : index
    %c0_130 = arith.constant 0 : index
    %293 = vector.load %arg16[%c1_128, %c0_129, %c0_130] : memref<2x1x128xf32, #tpu.memory_space<vmem>>, vector<1x1x128xf32>
    %294 = vector.shape_cast %293 : vector<1x1x128xf32> to vector<1x128xf32>
    %295 = vector.broadcast %294 : vector<1x128xf32> to vector<32x128xf32>
    %296 = arith.addf %292, %295 : vector<32x128xf32>
    %c0_131 = arith.constant 0 : index
    %c0_132 = arith.constant 0 : index
    %297 = vector.load %arg17[%c0_131, %c0_132] : memref<1x128xf32, #tpu.memory_space<vmem>>, vector<1x128xf32>
    %c0_133 = arith.constant 0 : index
    %c0_134 = arith.constant 0 : index
    %298 = vector.load %arg18[%c0_133, %c0_134] : memref<1x128xf32, #tpu.memory_space<vmem>>, vector<1x128xf32>
    %cst_135 = arith.constant dense<0.000000e+00> : vector<32xf32>
    %299 = vector.multi_reduction <add>, %296, %cst_135 [1] : vector<32x128xf32> to vector<32xf32>
    %300 = vector.shape_cast %299 : vector<32xf32> to vector<32x1xf32>
    %cst_136 = arith.constant 1.280000e+02 : f32
    %301 = vector.broadcast %cst_136 : f32 to vector<32x1xf32>
    %302 = arith.divf %300, %301 : vector<32x1xf32>
    %303 = vector.broadcast %302 : vector<32x1xf32> to vector<32x128xf32>
    %304 = arith.subf %296, %303 : vector<32x128xf32>
    %305 = arith.mulf %304, %304 : vector<32x128xf32>
    %cst_137 = arith.constant dense<0.000000e+00> : vector<32xf32>
    %306 = vector.multi_reduction <add>, %305, %cst_137 [1] : vector<32x128xf32> to vector<32xf32>
    %307 = vector.shape_cast %306 : vector<32xf32> to vector<32x1xf32>
    %cst_138 = arith.constant 1.280000e+02 : f32
    %308 = vector.broadcast %cst_138 : f32 to vector<32x1xf32>
    %309 = arith.divf %307, %308 : vector<32x1xf32>
    %310 = vector.broadcast %302 : vector<32x1xf32> to vector<32x128xf32>
    %311 = arith.subf %296, %310 : vector<32x128xf32>
    %cst_139 = arith.constant 9.99999974E-6 : f32
    %312 = vector.broadcast %cst_139 : f32 to vector<32x1xf32>
    %313 = arith.addf %309, %312 : vector<32x1xf32>
    %314 = math.rsqrt %313 : vector<32x1xf32>
    %315 = vector.broadcast %314 : vector<32x1xf32> to vector<32x128xf32>
    %316 = arith.mulf %311, %315 : vector<32x128xf32>
    %317 = vector.broadcast %297 : vector<1x128xf32> to vector<32x128xf32>
    %318 = arith.mulf %316, %317 : vector<32x128xf32>
    %319 = vector.broadcast %298 : vector<1x128xf32> to vector<32x128xf32>
    %320 = arith.addf %318, %319 : vector<32x128xf32>
    %321 = arith.truncf %320 : vector<32x128xf32> to vector<32x128xbf16>
    %c0_140 = arith.constant 0 : index
    %c0_141 = arith.constant 0 : index
    %322 = vector.load %arg19[%c0_140, %c0_141] : memref<128x256xbf16, #tpu.memory_space<vmem>>, vector<128x256xbf16>
    %cst_142 = arith.constant dense<0.000000e+00> : vector<32x256xf32>
    %323 = tpu.matmul %321, %322, %cst_142 {dimension_numbers = #tpu.dot_dimension_numbers<[1], [0], [0], [1], [0, 0, 1, 1], [], []>} : vector<32x128xbf16>, vector<128x256xbf16>, vector<32x256xf32> -> vector<32x256xf32>
    %c0_143 = arith.constant 0 : index
    %c0_144 = arith.constant 0 : index
    %324 = vector.load %arg20[%c0_143, %c0_144] : memref<1x256xf32, #tpu.memory_space<vmem>>, vector<1x256xf32>
    %325 = vector.broadcast %324 : vector<1x256xf32> to vector<32x256xf32>
    %326 = arith.addf %323, %325 : vector<32x256xf32>
    %327 = vector.broadcast %3 : vector<32x1xf32> to vector<32x256xf32>
    %328 = arith.mulf %326, %327 : vector<32x256xf32>
    %329 = vector.shape_cast %328 : vector<32x256xf32> to vector<2x16x256xf32>
    %c0_145 = arith.constant 0 : index
    %c0_146 = arith.constant 0 : index
    %c0_147 = arith.constant 0 : index
    %330 = vector.load %arg21[%c0_145, %c0_146, %c0_147] : memref<2x16x256xf32, #tpu.memory_space<vmem>>, vector<2x16x256xf32>
    tpu.vector_store %arg21[%c0_145, %c0_146, %c0_147], %329 {strides = array<i32>} : memref<2x16x256xf32, #tpu.memory_space<vmem>>, vector<2x16x256xf32>,
    return
  }
}

</mosaic_0001>

<llo_original>
// kernel: tpu_custom_call.1
$region0: #{tpu_custom_call.1}
  #allocation0 [shape = 'u32[]', space=smem, size = 0x4, offset = 0x4, fixed_abs, tag = 'smem constant byte address 0x4 - core index']
  #allocation1 [shape = 'u32[144,128]{1,0:T(1,128)}', space=vmem, size = 0x12000, scoped, tag = 'internal scratch']
  %s0 = inlined_call_operand.hbm [shape: f32[2,16,256], index: 0, kind: input, shape index: {}]
  %s1 = inlined_call_operand.vmem [shape: f32[2,16,1], index: 1, kind: input, shape index: {}]
  %s2 = inlined_call_operand.hbm [shape: f32[8,16,16], index: 2, kind: input, shape index: {}]
  %s3 = inlined_call_operand.hbm [shape: bf16[256,128], index: 3, kind: input, shape index: {}]
  %s4 = inlined_call_operand.vmem [shape: f32[1,128], index: 4, kind: input, shape index: {}]
  %s5 = inlined_call_operand.vmem [shape: f32[2,1,128], index: 5, kind: input, shape index: {}]
  %s6 = inlined_call_operand.vmem [shape: f32[2,1,128], index: 6, kind: input, shape index: {}]
  %s7 = inlined_call_operand.hbm [shape: bf16[2,128,384], index: 7, kind: input, shape index: {}]
  %s8 = inlined_call_operand.vmem [shape: f32[2,1,384], index: 8, kind: input, shape index: {}]
  %s9 = inlined_call_operand.hbm [shape: bf16[2,4,32,128], index: 9, kind: input, shape index: {}]
  %s10 = inlined_call_operand.vmem [shape: f32[2,1,128], index: 10, kind: input, shape index: {}]
  %s11 = inlined_call_operand.vmem [shape: f32[2,1,128], index: 11, kind: input, shape index: {}]
  %s12 = inlined_call_operand.vmem [shape: f32[2,1,128], index: 12, kind: input, shape index: {}]
  %s13 = inlined_call_operand.hbm [shape: bf16[2,128,512], index: 13, kind: input, shape index: {}]
  %s14 = inlined_call_operand.vmem [shape: f32[2,1,512], index: 14, kind: input, shape index: {}]
  %s15 = inlined_call_operand.hbm [shape: bf16[2,512,128], index: 15, kind: input, shape index: {}]
  %s16 = inlined_call_operand.vmem [shape: f32[2,1,128], index: 16, kind: input, shape index: {}]
  %s17 = inlined_call_operand.vmem [shape: f32[1,128], index: 17, kind: input, shape index: {}]
  %s18 = inlined_call_operand.vmem [shape: f32[1,128], index: 18, kind: input, shape index: {}]
  %s19 = inlined_call_operand.hbm [shape: bf16[128,256], index: 19, kind: input, shape index: {}]
  %s20 = inlined_call_operand.vmem [shape: f32[1,256], index: 20, kind: input, shape index: {}]
  %s21 = inlined_call_operand.hbm [shape: f32[2,16,256], index: 21, kind: output, shape index: {}]
  %s22 = sld [smem:[#allocation0]]
  $region126: #{tpu_custom_call.1} parent=0
    _
  %s24 = ssub.s32 1, %s22
  %s25 = scalar_select 0, %s24, %s22
  $region1: #{tpu_custom_call.1} parent=0
    #allocation2 [shape = 'u8[32768]{0}', space=vmem, size = 0x8000, scoped, tag = 'input window, operand 0, single buffered']
    #allocation3 [shape = 's32[1]{0}', space=sflag, size = 0x4, scoped, tag = 'scoped memory for tpu_custom_call.1']
    #allocation4 [shape = 's32[1]{0}', space=sflag, size = 0x4, scoped, tag = 'scoped memory for tpu_custom_call.1']
    #allocation5 [shape = 'u8[65536]{0}', space=vmem, size = 0x10000, scoped, tag = 'input window, operand 2, single buffered']
    #allocation6 [shape = 's32[1]{0}', space=sflag, size = 0x4, scoped, tag = 'scoped memory for tpu_custom_call.1']
    #allocation7 [shape = 'u8[65536]{0}', space=vmem, size = 0x10000, scoped, tag = 'input window, operand 3, single buffered']
    #allocation8 [shape = 'u8[196608]{0}', space=vmem, size = 0x30000, scoped, tag = 'input window, operand 7, single buffered']
    #allocation9 [shape = 's32[1]{0}', space=sflag, size = 0x4, scoped, tag = 'scoped memory for tpu_custom_call.1']
    #allocation10 [shape = 'u8[65536]{0}', space=vmem, size = 0x10000, scoped, tag = 'input window, operand 9, single buffered']
    #allocation11 [shape = 'u8[262144]{0}', space=vmem, size = 0x40000, scoped, tag = 'input window, operand 13, single buffered']
    #allocation12 [shape = 's32[1]{0}', space=sflag, size = 0x4, scoped, tag = 'scoped memory for tpu_custom_call.1']
    #allocation13 [shape = 'u8[262144]{0}', space=vmem, size = 0x40000, scoped, tag = 'input window, operand 15, single buffered']
    #allocation14 [shape = 'u8[65536]{0}', space=vmem, size = 0x10000, scoped, tag = 'input window, operand 19, single buffered']
    #allocation15 [shape = 's32[1]{0}', space=sflag, size = 0x4, scoped, tag = 'scoped memory for tpu_custom_call.1']
    #allocation16 [shape = 'u8[32768]{0}', space=vmem, size = 0x8000, scoped, tag = 'output window, operand 0, single buffered']
    %26 = vsyncpa [#allocation3], 0
    %27 = vsyncpa [#allocation6], 0
    %28 = vsyncpa [#allocation9], 0
    %29 = vsyncpa [#allocation12], 0
    %30 = vsyncpa [#allocation15], 0
    %31 = vsyncpa [#allocation4], 0
    // Predicated region
    $region2: #{tpu_custom_call.1} parent=1 // pred_check
      _
    $region3: #{tpu_custom_call.1} parent=1 // pred_check_branch
      %33 = sbr.rel (0) target = $region5
    $region4: #{tpu_custom_call.1} parent=1 // pred_region
      %s35 = ssub.s32 1024, 1024
      %36 = vsyncadd [#allocation3], %s35
      %s37 = sshll.u32 [#allocation2], 4
      %s38 = int_to_ptr.vmem [resolvable:$true] %s37
      %43 = dma.hbm_to_vmem [thread:$0]  %s0, 1024, %s38, [#allocation3], 256, 256, 16
    $region5: #{tpu_custom_call.1} parent=1 // pred_fallthru
      _
    // Predicated region
    $region6: #{tpu_custom_call.1} parent=1 // pred_check
      _
    $region7: #{tpu_custom_call.1} parent=1 // pred_check_branch
      %45 = sbr.rel (0) target = $region9
    $region8: #{tpu_custom_call.1} parent=1 // pred_region
      _
    $region9: #{tpu_custom_call.1} parent=1 // pred_fallthru
      _
    // Predicated region
    $region10: #{tpu_custom_call.1} parent=1 // pred_check
      _
    $region11: #{tpu_custom_call.1} parent=1 // pred_check_branch
      %47 = sbr.rel (0) target = $region13
    $region12: #{tpu_custom_call.1} parent=1 // pred_region
      %s49 = ssub.s32 2048, 2048
      %50 = vsyncadd [#allocation6], %s49
      %s51 = sshll.u32 [#allocation5], 4
      %s52 = int_to_ptr.vmem [resolvable:$true] %s51
      %57 = dma.hbm_to_vmem [thread:$0]  %s2, 2048, %s52, [#allocation6], 128, 128, 8
    $region13: #{tpu_custom_call.1} parent=1 // pred_fallthru
      _
    // Predicated region
    $region14: #{tpu_custom_call.1} parent=1 // pred_check
      _
    $region15: #{tpu_custom_call.1} parent=1 // pred_check_branch
      %59 = sbr.rel (0) target = $region17
    $region16: #{tpu_custom_call.1} parent=1 // pred_region
      %s61 = ssub.s32 2048, 2048
      %62 = vsyncadd [#allocation6], %s61
      %s63 = sshll.u32 [#allocation7], 4
      %s64 = int_to_ptr.vmem [resolvable:$true] %s63
      %69 = dma.hbm_to_vmem [thread:$0]  %s3, 2048, %s64, [#allocation6], 64, 64, 4
    $region17: #{tpu_custom_call.1} parent=1 // pred_fallthru
      _
    // Predicated region
    $region18: #{tpu_custom_call.1} parent=1 // pred_check
      _
    $region19: #{tpu_custom_call.1} parent=1 // pred_check_branch
      %71 = sbr.rel (0) target = $region21
    $region20: #{tpu_custom_call.1} parent=1 // pred_region
      _
    $region21: #{tpu_custom_call.1} parent=1 // pred_fallthru
      _
    // Predicated region
    $region22: #{tpu_custom_call.1} parent=1 // pred_check
      _
    $region23: #{tpu_custom_call.1} parent=1 // pred_check_branch
      %73 = sbr.rel (0) target = $region25
    $region24: #{tpu_custom_call.1} parent=1 // pred_region
      _
    $region25: #{tpu_custom_call.1} parent=1 // pred_fallthru
      _
    // Predicated region
    $region26: #{tpu_custom_call.1} parent=1 // pred_check
      _
    $region27: #{tpu_custom_call.1} parent=1 // pred_check_branch
      %75 = sbr.rel (0) target = $region29
    $region28: #{tpu_custom_call.1} parent=1 // pred_region
      _
    $region29: #{tpu_custom_call.1} parent=1 // pred_fallthru
      _
    // Predicated region
    $region30: #{tpu_custom_call.1} parent=1 // pred_check
      _
    $region31: #{tpu_custom_call.1} parent=1 // pred_check_branch
      %77 = sbr.rel (0) target = $region33
    $region32: #{tpu_custom_call.1} parent=1 // pred_region
      %s79 = ssub.s32 6144, 6144
      %80 = vsyncadd [#allocation9], %s79
      %s81 = sshll.u32 [#allocation8], 4
      %s82 = int_to_ptr.vmem [resolvable:$true] %s81
      %87 = dma.hbm_to_vmem [thread:$0]  %s7, 6144, %s82, [#allocation9], 192, 192, 12
    $region33: #{tpu_custom_call.1} parent=1 // pred_fallthru
      _
    // Predicated region
    $region34: #{tpu_custom_call.1} parent=1 // pred_check
      _
    $region35: #{tpu_custom_call.1} parent=1 // pred_check_branch
      %89 = sbr.rel (0) target = $region37
    $region36: #{tpu_custom_call.1} parent=1 // pred_region
      _
    $region37: #{tpu_custom_call.1} parent=1 // pred_fallthru
      _
    // Predicated region
    $region38: #{tpu_custom_call.1} parent=1 // pred_check
      _
    $region39: #{tpu_custom_call.1} parent=1 // pred_check_branch
      %91 = sbr.rel (0) target = $region41
    $region40: #{tpu_custom_call.1} parent=1 // pred_region
      %s93 = ssub.s32 2048, 2048
      %94 = vsyncadd [#allocation9], %s93
      %s95 = sshll.u32 [#allocation10], 4
      %s96 = int_to_ptr.vmem [resolvable:$true] %s95
      %101 = dma.hbm_to_vmem [thread:$0]  %s9, 2048, %s96, [#allocation9], 64, 64, 4
    $region41: #{tpu_custom_call.1} parent=1 // pred_fallthru
      _
    // Predicated region
    $region42: #{tpu_custom_call.1} parent=1 // pred_check
      _
    $region43: #{tpu_custom_call.1} parent=1 // pred_check_branch
      %103 = sbr.rel (0) target = $region45
    $region44: #{tpu_custom_call.1} parent=1 // pred_region
      _
    $region45: #{tpu_custom_call.1} parent=1 // pred_fallthru
      _
    // Predicated region
    $region46: #{tpu_custom_call.1} parent=1 // pred_check
      _
    $region47: #{tpu_custom_call.1} parent=1 // pred_check_branch
      %105 = sbr.rel (0) target = $region49
    $region48: #{tpu_custom_call.1} parent=1 // pred_region
      _
    $region49: #{tpu_custom_call.1} parent=1 // pred_fallthru
      _
    // Predicated region
    $region50: #{tpu_custom_call.1} parent=1 // pred_check
      _
    $region51: #{tpu_custom_call.1} parent=1 // pred_check_branch
      %107 = sbr.rel (0) target = $region53
    $region52: #{tpu_custom_call.1} parent=1 // pred_region
      _
    $region53: #{tpu_custom_call.1} parent=1 // pred_fallthru
      _
    // Predicated region
    $region54: #{tpu_custom_call.1} parent=1 // pred_check
      _
    $region55: #{tpu_custom_call.1} parent=1 // pred_check_branch
      %109 = sbr.rel (0) target = $region57
    $region56: #{tpu_custom_call.1} parent=1 // pred_region
      %s111 = ssub.s32 8192, 8192
      %112 = vsyncadd [#allocation12], %s111
      %s113 = sshll.u32 [#allocation11], 4
      %s114 = int_to_ptr.vmem [resolvable:$true] %s113
      %119 = dma.hbm_to_vmem [thread:$0]  %s13, 8192, %s114, [#allocation12], 256, 256, 16
    $region57: #{tpu_custom_call.1} parent=1 // pred_fallthru
      _
    // Predicated region
    $region58: #{tpu_custom_call.1} parent=1 // pred_check
      _
    $region59: #{tpu_custom_call.1} parent=1 // pred_check_branch
      %121 = sbr.rel (0) target = $region61
    $region60: #{tpu_custom_call.1} parent=1 // pred_region
      _
    $region61: #{tpu_custom_call.1} parent=1 // pred_fallthru
      _
    // Predicated region
    $region62: #{tpu_custom_call.1} parent=1 // pred_check
      _
    $region63: #{tpu_custom_call.1} parent=1 // pred_check_branch
      %123 = sbr.rel (0) target = $region65
    $region64: #{tpu_custom_call.1} parent=1 // pred_region
      %s125 = ssub.s32 8192, 8192
      %126 = vsyncadd [#allocation12], %s125
      %s127 = sshll.u32 [#allocation13], 4
      %s128 = int_to_ptr.vmem [resolvable:$true] %s127
      %133 = dma.hbm_to_vmem [thread:$0]  %s15, 8192, %s128, [#allocation12], 64, 64, 4
    $region65: #{tpu_custom_call.1} parent=1 // pred_fallthru
      _
    // Predicated region
    $region66: #{tpu_custom_call.1} parent=1 // pred_check
      _
    $region67: #{tpu_custom_call.1} parent=1 // pred_check_branch
      %135 = sbr.rel (0) target = $region69
    $region68: #{tpu_custom_call.1} parent=1 // pred_region
      _
    $region69: #{tpu_custom_call.1} parent=1 // pred_fallthru
      _
    // Predicated region
    $region70: #{tpu_custom_call.1} parent=1 // pred_check
      _
    $region71: #{tpu_custom_call.1} parent=1 // pred_check_branch
      %137 = sbr.rel (0) target = $region73
    $region72: #{tpu_custom_call.1} parent=1 // pred_region
      _
    $region73: #{tpu_custom_call.1} parent=1 // pred_fallthru
      _
    // Predicated region
    $region74: #{tpu_custom_call.1} parent=1 // pred_check
      _
    $region75: #{tpu_custom_call.1} parent=1 // pred_check_branch
      %139 = sbr.rel (0) target = $region77
    $region76: #{tpu_custom_call.1} parent=1 // pred_region
      _
    $region77: #{tpu_custom_call.1} parent=1 // pred_fallthru
      _
    // Predicated region
    $region78: #{tpu_custom_call.1} parent=1 // pred_check
      _
    $region79: #{tpu_custom_call.1} parent=1 // pred_check_branch
      %141 = sbr.rel (0) target = $region81
    $region80: #{tpu_custom_call.1} parent=1 // pred_region
      %s143 = ssub.s32 2048, 2048
      %144 = vsyncadd [#allocation15], %s143
      %s145 = sshll.u32 [#allocation14], 4
      %s146 = int_to_ptr.vmem [resolvable:$true] %s145
      %151 = dma.hbm_to_vmem [thread:$0]  %s19, 2048, %s146, [#allocation15], 128, 128, 8
    $region81: #{tpu_custom_call.1} parent=1 // pred_fallthru
      _
    // Predicated region
    $region82: #{tpu_custom_call.1} parent=1 // pred_check
      _
    $region83: #{tpu_custom_call.1} parent=1 // pred_check_branch
      %153 = sbr.rel (0) target = $region85
    $region84: #{tpu_custom_call.1} parent=1 // pred_region
      _
    $region85: #{tpu_custom_call.1} parent=1 // pred_fallthru
      _
    // Predicated region
    $region86: #{tpu_custom_call.1} parent=1 // pred_check
      _
    $region87: #{tpu_custom_call.1} parent=1 // pred_check_branch
      %155 = sbr.rel (0) target = $region89
    $region88: #{tpu_custom_call.1} parent=1 // pred_region
      %156 = dma.done [#allocation3], 1024
    $region89: #{tpu_custom_call.1} parent=1 // pred_fallthru
      _
    // Predicated region
    $region90: #{tpu_custom_call.1} parent=1 // pred_check
      _
    $region91: #{tpu_custom_call.1} parent=1 // pred_check_branch
      %158 = sbr.rel (0) target = $region93
    $region92: #{tpu_custom_call.1} parent=1 // pred_region
      %159 = dma.done [#allocation6], 2048
    $region93: #{tpu_custom_call.1} parent=1 // pred_fallthru
      _
    // Predicated region
    $region94: #{tpu_custom_call.1} parent=1 // pred_check
      _
    $region95: #{tpu_custom_call.1} parent=1 // pred_check_branch
      %161 = sbr.rel (0) target = $region97
    $region96: #{tpu_custom_call.1} parent=1 // pred_region
      %162 = dma.done [#allocation6], 2048
    $region97: #{tpu_custom_call.1} parent=1 // pred_fallthru
      _
    // Predicated region
    $region98: #{tpu_custom_call.1} parent=1 // pred_check
      _
    $region99: #{tpu_custom_call.1} parent=1 // pred_check_branch
      %164 = sbr.rel (0) target = $region101
    $region100: #{tpu_custom_call.1} parent=1 // pred_region
      %165 = dma.done [#allocation9], 6144
    $region101: #{tpu_custom_call.1} parent=1 // pred_fallthru
      _
    // Predicated region
    $region102: #{tpu_custom_call.1} parent=1 // pred_check
      _
    $region103: #{tpu_custom_call.1} parent=1 // pred_check_branch
      %167 = sbr.rel (0) target = $region105
    $region104: #{tpu_custom_call.1} parent=1 // pred_region
      %168 = dma.done [#allocation9], 2048
    $region105: #{tpu_custom_call.1} parent=1 // pred_fallthru
      _
    // Predicated region
    $region106: #{tpu_custom_call.1} parent=1 // pred_check
      _
    $region107: #{tpu_custom_call.1} parent=1 // pred_check_branch
      %170 = sbr.rel (0) target = $region109
    $region108: #{tpu_custom_call.1} parent=1 // pred_region
      %171 = dma.done [#allocation12], 8192
    $region109: #{tpu_custom_call.1} parent=1 // pred_fallthru
      _
    // Predicated region
    $region110: #{tpu_custom_call.1} parent=1 // pred_check
      _
    $region111: #{tpu_custom_call.1} parent=1 // pred_check_branch
      %173 = sbr.rel (0) target = $region113
    $region112: #{tpu_custom_call.1} parent=1 // pred_region
      %174 = dma.done [#allocation12], 8192
    $region113: #{tpu_custom_call.1} parent=1 // pred_fallthru
      _
    // Predicated region
    $region114: #{tpu_custom_call.1} parent=1 // pred_check
      _
    $region115: #{tpu_custom_call.1} parent=1 // pred_check_branch
      %176 = sbr.rel (0) target = $region117
    $region116: #{tpu_custom_call.1} parent=1 // pred_region
      %177 = dma.done [#allocation15], 2048
    $region117: #{tpu_custom_call.1} parent=1 // pred_fallthru
      _
    %v179 = vld [vmem:[#allocation2] sm:$0xff]
    %v180 = vld [vmem:[#allocation2 + $0x8] sm:$0xff]
    %v181 = vld [vmem:[#allocation2 + $0x10] sm:$0xff]
    %v182 = vld [vmem:[#allocation2 + $0x18] sm:$0xff]
    %v183 = vld [vmem:[#allocation2 + $0x20] sm:$0xff]
    %v184 = vld [vmem:[#allocation2 + $0x28] sm:$0xff]
    %v185 = vld [vmem:[#allocation2 + $0x30] sm:$0xff]
    %v186 = vld [vmem:[#allocation2 + $0x38] sm:$0xff]
    %v187 = vld [vmem:[%s1] sm:$0xff]
    %v188 = vld [vmem:[%s1 + $0x8] sm:$0xff]
    %v189 = vld [vmem:[%s1 + $0x10] sm:$0xff]
    %v190 = vld [vmem:[%s1 + $0x18] sm:$0xff]
    %v191 = vld [vmem:[#allocation5] sm:$0xff]
    %v192 = vld [vmem:[#allocation5 + $0x8] sm:$0xff]
    %v193 = vld [vmem:[#allocation5 + $0x10] sm:$0xff]
    %v194 = vld [vmem:[#allocation5 + $0x18] sm:$0xff]
    %v195 = vld [vmem:[#allocation5 + $0x20] sm:$0xff]
    %v196 = vld [vmem:[#allocation5 + $0x28] sm:$0xff]
    %v197 = vld [vmem:[#allocation5 + $0x30] sm:$0xff]
    %v198 = vld [vmem:[#allocation5 + $0x38] sm:$0xff]
    %v199 = vld [vmem:[#allocation5 + $0x40] sm:$0xff]
    %v200 = vld [vmem:[#allocation5 + $0x48] sm:$0xff]
    %v201 = vld [vmem:[#allocation5 + $0x50] sm:$0xff]
    %v202 = vld [vmem:[#allocation5 + $0x58] sm:$0xff]
    %v203 = vld [vmem:[#allocation5 + $0x60] sm:$0xff]
    %v204 = vld [vmem:[#allocation5 + $0x68] sm:$0xff]
    %v205 = vld [vmem:[#allocation5 + $0x70] sm:$0xff]
    %v206 = vld [vmem:[#allocation5 + $0x78] sm:$0xff]
    %v207 = vpack.c.bf16 %v181, %v179
    %v208 = vpack.c.bf16 %v182, %v180
    %v209 = vpack.c.bf16 %v185, %v183
    %v210 = vpack.c.bf16 %v186, %v184
    %v211 = vld [vmem:[#allocation7] sm:$0xf]
    %v212 = vld [vmem:[#allocation7 + $0x4] sm:$0xf]
    %v213 = vld [vmem:[#allocation7 + $0x8] sm:$0xf]
    %v214 = vld [vmem:[#allocation7 + $0xc] sm:$0xf]
    %v215 = vld [vmem:[#allocation7 + $0x10] sm:$0xf]
    %v216 = vld [vmem:[#allocation7 + $0x14] sm:$0xf]
    %v217 = vld [vmem:[#allocation7 + $0x18] sm:$0xf]
    %v218 = vld [vmem:[#allocation7 + $0x1c] sm:$0xf]
    %v219 = vld [vmem:[#allocation7 + $0x20] sm:$0xf]
    %v220 = vld [vmem:[#allocation7 + $0x24] sm:$0xf]
    %v221 = vld [vmem:[#allocation7 + $0x28] sm:$0xf]
    %v222 = vld [vmem:[#allocation7 + $0x2c] sm:$0xf]
    %v223 = vld [vmem:[#allocation7 + $0x30] sm:$0xf]
    %v224 = vld [vmem:[#allocation7 + $0x34] sm:$0xf]
    %v225 = vld [vmem:[#allocation7 + $0x38] sm:$0xf]
    %v226 = vld [vmem:[#allocation7 + $0x3c] sm:$0xf]
    %v227 = vld [vmem:[#allocation7 + $0x40] sm:$0xf]
    %v228 = vld [vmem:[#allocation7 + $0x44] sm:$0xf]
    %v229 = vld [vmem:[#allocation7 + $0x48] sm:$0xf]
    %v230 = vld [vmem:[#allocation7 + $0x4c] sm:$0xf]
    %v231 = vld [vmem:[#allocation7 + $0x50] sm:$0xf]
    %v232 = vld [vmem:[#allocation7 + $0x54] sm:$0xf]
    %v233 = vld [vmem:[#allocation7 + $0x58] sm:$0xf]
    %v234 = vld [vmem:[#allocation7 + $0x5c] sm:$0xf]
    %v235 = vld [vmem:[#allocation7 + $0x60] sm:$0xf]
    %v236 = vld [vmem:[#allocation7 + $0x64] sm:$0xf]
    %v237 = vld [vmem:[#allocation7 + $0x68] sm:$0xf]
    %v238 = vld [vmem:[#allocation7 + $0x6c] sm:$0xf]
    %v239 = vld [vmem:[#allocation7 + $0x70] sm:$0xf]
    %v240 = vld [vmem:[#allocation7 + $0x74] sm:$0xf]
    %v241 = vld [vmem:[#allocation7 + $0x78] sm:$0xf]
    %v242 = vld [vmem:[#allocation7 + $0x7c] sm:$0xf]
    %v243 = vld [vmem:[%s4] sm:$0x1]
    %v245 = vlaneseq
    %v246 = vshrl.u32 %v245, 7
    %v247 = vsub.s32 0, %v246
    %v248 = vrot.slane %v243, %v247
    %v282 = vunpack.c.l.b16 %v211
    %v283 = vunpack.c.l.b16 %v212
    %v284 = vunpack.c.l.b16 %v213
    %v285 = vunpack.c.l.b16 %v214
    %v286 = vunpack.c.l.b16 %v215
    %v287 = vunpack.c.l.b16 %v216
    %v288 = vunpack.c.l.b16 %v217
    %v289 = vunpack.c.l.b16 %v218
    %v290 = vunpack.c.l.b16 %v219
    %v291 = vunpack.c.l.b16 %v220
    %v292 = vunpack.c.l.b16 %v221
    %v293 = vunpack.c.l.b16 %v222
    %v294 = vunpack.c.l.b16 %v223
    %v295 = vunpack.c.l.b16 %v224
    %v296 = vunpack.c.l.b16 %v225
    %v297 = vunpack.c.l.b16 %v226
    %v298 = vunpack.c.l.b16 %v227
    %v299 = vunpack.c.l.b16 %v228
    %v300 = vunpack.c.l.b16 %v229
    %v301 = vunpack.c.l.b16 %v230
    %v302 = vunpack.c.l.b16 %v231
    %v303 = vunpack.c.l.b16 %v232
    %v304 = vunpack.c.l.b16 %v233
    %v305 = vunpack.c.l.b16 %v234
    %v306 = vunpack.c.l.b16 %v235
    %v307 = vunpack.c.l.b16 %v236
    %v308 = vunpack.c.l.b16 %v237
    %v309 = vunpack.c.l.b16 %v238
    %v310 = vunpack.c.l.b16 %v239
    %v311 = vunpack.c.l.b16 %v240
    %v312 = vunpack.c.l.b16 %v241
    %v313 = vunpack.c.l.b16 %v242
    %v314 = vpack.c.b16 %v283, %v282
    %v315 = vpack.c.b16 %v285, %v284
    %v316 = vpack.c.b16 %v287, %v286
    %v317 = vpack.c.b16 %v289, %v288
    %v318 = vpack.c.b16 %v291, %v290
    %v319 = vpack.c.b16 %v293, %v292
    %v320 = vpack.c.b16 %v295, %v294
    %v321 = vpack.c.b16 %v297, %v296
    %v322 = vpack.c.b16 %v299, %v298
    %v323 = vpack.c.b16 %v301, %v300
    %v324 = vpack.c.b16 %v303, %v302
    %v325 = vpack.c.b16 %v305, %v304
    %v326 = vpack.c.b16 %v307, %v306
    %v327 = vpack.c.b16 %v309, %v308
    %v328 = vpack.c.b16 %v311, %v310
    %v329 = vpack.c.b16 %v313, %v312
    %346 = vmatprep.subr.bf16.mxu0 0
    %347 = vmatpush1.bf16.msra.mxu0 %v321
    %348 = vmatprep.subr.bf16.mxu0 0
    %349 = vmatpush1.bf16.msra.mxu0 %v320
    %350 = vmatprep.subr.bf16.mxu0 0
    %351 = vmatpush1.bf16.msra.mxu0 %v319
    %352 = vmatprep.subr.bf16.mxu0 0
    %353 = vmatpush1.bf16.msra.mxu0 %v318
    %354 = vmatprep.subr.bf16.mxu0 0
    %355 = vmatpush1.bf16.msra.mxu0 %v317
    %356 = vmatprep.subr.bf16.mxu0 0
    %357 = vmatpush1.bf16.msra.mxu0 %v316
    %358 = vmatprep.subr.bf16.mxu0 0
    %359 = vmatpush1.bf16.msra.mxu0 %v315
    %360 = vmatprep.subr.bf16.mxu0 0
    %361 = vmatpush1.bf16.msra.mxu0 %v314
    %362 = vmatprep.subr.bf16.mxu0 0
    %363 = vmatpush2.bf16.msra.mxu0 %v329
    %364 = vmatprep.subr.bf16.mxu0 0
    %365 = vmatpush2.bf16.msra.mxu0 %v328
    %366 = vmatprep.subr.bf16.mxu0 0
    %367 = vmatpush2.bf16.msra.mxu0 %v327
    %368 = vmatprep.subr.bf16.mxu0 0
    %369 = vmatpush2.bf16.msra.mxu0 %v326
    %370 = vmatprep.subr.bf16.mxu0 0
    %371 = vmatpush2.bf16.msra.mxu0 %v325
    %372 = vmatprep.subr.bf16.mxu0 0
    %373 = vmatpush2.bf16.msra.mxu0 %v324
    %374 = vmatprep.subr.bf16.mxu0 0
    %375 = vmatpush2.bf16.msra.mxu0 %v323
    %376 = vmatprep.subr.bf16.mxu0 0
    %377 = vmatpush2.bf16.msra.mxu0 %v322
    %378 = vmatprep.mubr.bf16.mxu0 %v208
    %379 = vmatmul.mubr.bf16.gmra.mxu0 %v207
    %v380 = vpop.f32.mrf.mxu0
    %v381 = vadd.f32 %v248, %v380
    %v382 = vpop.f32.mrf.mxu0
    %v383 = vpop.f32.mrf.mxu0
    %v384 = vadd.f32 %v248, %v383
    %v385 = vpop.f32.mrf.mxu0
    %386 = vmatprep.mubr.bf16.mxu0 %v210
    %387 = vmatmul.mubr.bf16.gmra.mxu0 %v209
    %v388 = vpop.f32.mrf.mxu0
    %v389 = vadd.f32 %v248, %v388
    %v390 = vpop.f32.mrf.mxu0
    %v391 = vpop.f32.mrf.mxu0
    %v392 = vadd.f32 %v248, %v391
    %v393 = vpop.f32.mrf.mxu0
    %394 = vdwg.mxu0
    %v395 = vld [vmem:[%s5] sm:$0x1]
    %v396 = vld [vmem:[%s6] sm:$0x1]
    %397 = vadd.xlane.f32.xlu0 %v381
    %v398 = vpop.xlane.xlu0 %397
    %399 = vadd.xlane.f32.xlu0 %v384
    %v400 = vpop.xlane.xlu0 %399
    %401 = vadd.xlane.f32.xlu0 %v389
    %v402 = vpop.xlane.xlu0 %401
    %403 = vadd.xlane.f32.xlu0 %v392
    %v404 = vpop.xlane.xlu0 %403
    %v405 = vrcp.pop 128.0
    %v406 = vmul.f32 %v398, %v405
    %v407 = vmul.f32 %v400, %v405
    %v408 = vmul.f32 %v402, %v405
    %v409 = vmul.f32 %v404, %v405
    %v410 = vsub.f32 %v381, %v406
    %v411 = vsub.f32 %v384, %v407
    %v412 = vsub.f32 %v389, %v408
    %v413 = vsub.f32 %v392, %v409
    %v414 = vmul.f32 %v410, %v410
    %v415 = vmul.f32 %v411, %v411
    %v416 = vmul.f32 %v412, %v412
    %v417 = vmul.f32 %v413, %v413
    %418 = vadd.xlane.f32.xlu0 %v414
    %v419 = vpop.xlane.xlu0 %418
    %420 = vadd.xlane.f32.xlu0 %v415
    %v421 = vpop.xlane.xlu0 %420
    %422 = vadd.xlane.f32.xlu0 %v416
    %v423 = vpop.xlane.xlu0 %422
    %424 = vadd.xlane.f32.xlu0 %v417
    %v425 = vpop.xlane.xlu0 %424
    %v426 = vmul.f32 %v419, %v405
    %v427 = vmul.f32 %v421, %v405
    %v428 = vmul.f32 %v423, %v405
    %v429 = vmul.f32 %v425, %v405
    %v430 = vadd.f32 %v426, 1e-05
    %v431 = vadd.f32 %v427, 1e-05
    %v432 = vadd.f32 %v428, 1e-05
    %v433 = vadd.f32 %v429, 1e-05
    %v434 = vrsqrt.pop %v430
    %v435 = vrsqrt.pop %v431
    %v436 = vrsqrt.pop %v432
    %v437 = vrsqrt.pop %v433
    %v438 = vmul.f32 %v410, %v434
    %v439 = vmul.f32 %v411, %v435
    %v440 = vmul.f32 %v412, %v436
    %v441 = vmul.f32 %v413, %v437
    %v443 = vlaneseq
    %v444 = vshrl.u32 %v443, 7
    %v445 = vsub.s32 0, %v444
    %v446 = vrot.slane %v395, %v445
    %v448 = vmul.f32 %v438, %v446
    %v449 = vmul.f32 %v439, %v446
    %v450 = vmul.f32 %v440, %v446
    %v451 = vmul.f32 %v441, %v446
    %v453 = vlaneseq
    %v454 = vshrl.u32 %v453, 7
    %v455 = vsub.s32 0, %v454
    %v456 = vrot.slane %v396, %v455
    %v458 = vadd.f32 %v448, %v456
    %v459 = vadd.f32 %v449, %v456
    %v460 = vadd.f32 %v450, %v456
    %v461 = vadd.f32 %v451, %v456
    %v462 = vpack.c.bf16 %v459, %v458
    %v463 = vpack.c.bf16 %v461, %v460
    %v464 = vld [vmem:[#allocation8] sm:$0xff]
    %v465 = vld [vmem:[#allocation8 + $0x8] sm:$0xf]
    %v466 = vld [vmem:[#allocation8 + $0xc] sm:$0xff]
    %v467 = vld [vmem:[#allocation8 + $0x14] sm:$0xf]
    %v468 = vld [vmem:[#allocation8 + $0x18] sm:$0xff]
    %v469 = vld [vmem:[#allocation8 + $0x20] sm:$0xf]
    %v470 = vld [vmem:[#allocation8 + $0x24] sm:$0xff]
    %v471 = vld [vmem:[#allocation8 + $0x2c] sm:$0xf]
    %v472 = vld [vmem:[#allocation8 + $0x30] sm:$0xff]
    %v473 = vld [vmem:[#allocation8 + $0x38] sm:$0xf]
    %v474 = vld [vmem:[#allocation8 + $0x3c] sm:$0xff]
    %v475 = vld [vmem:[#allocation8 + $0x44] sm:$0xf]
    %v476 = vld [vmem:[#allocation8 + $0x48] sm:$0xff]
    %v477 = vld [vmem:[#allocation8 + $0x50] sm:$0xf]
    %v478 = vld [vmem:[#allocation8 + $0x54] sm:$0xff]
    %v479 = vld [vmem:[#allocation8 + $0x5c] sm:$0xf]
    %v480 = vld [vmem:[#allocation8 + $0x60] sm:$0xff]
    %v481 = vld [vmem:[#allocation8 + $0x68] sm:$0xf]
    %v482 = vld [vmem:[#allocation8 + $0x6c] sm:$0xff]
    %v483 = vld [vmem:[#allocation8 + $0x74] sm:$0xf]
    %v484 = vld [vmem:[#allocation8 + $0x78] sm:$0xff]
    %v485 = vld [vmem:[#allocation8 + $0x80] sm:$0xf]
    %v486 = vld [vmem:[#allocation8 + $0x84] sm:$0xff]
    %v487 = vld [vmem:[#allocation8 + $0x8c] sm:$0xf]
    %v488 = vld [vmem:[#allocation8 + $0x90] sm:$0xff]
    %v489 = vld [vmem:[#allocation8 + $0x98] sm:$0xf]
    %v490 = vld [vmem:[#allocation8 + $0x9c] sm:$0xff]
    %v491 = vld [vmem:[#allocation8 + $0xa4] sm:$0xf]
    %v492 = vld [vmem:[#allocation8 + $0xa8] sm:$0xff]
    %v493 = vld [vmem:[#allocation8 + $0xb0] sm:$0xf]
    %v494 = vld [vmem:[#allocation8 + $0xb4] sm:$0xff]
    %v495 = vld [vmem:[#allocation8 + $0xbc] sm:$0xf]
    %v496 = vld [vmem:[%s8] sm:$0x7]
    %v498 = vlaneseq
    %v499 = vshrl.u32 %v498, 7
    %v500 = vsub.s32 0, %v499
    %v501 = vrot.slane %v496, %v500
    %v502 = vlaneseq
    %v503 = vshrl.u32 %v502, 7
    %v504 = vsub.s32 1, %v503
    %v505 = vrot.slane %v496, %v504
    %v506 = vlaneseq
    %v507 = vshrl.u32 %v506, 7
    %v508 = vsub.s32 2, %v507
    %v509 = vrot.slane %v496, %v508
    %v545 = vunpack.c.l.b16 %v464
    %v546 = vunpack.c.h.b16 %v464
    %v547 = vunpack.c.l.b16 %v465
    %v548 = vunpack.c.l.b16 %v466
    %v549 = vunpack.c.h.b16 %v466
    %v550 = vunpack.c.l.b16 %v467
    %v551 = vunpack.c.l.b16 %v468
    %v552 = vunpack.c.h.b16 %v468
    %v553 = vunpack.c.l.b16 %v469
    %v554 = vunpack.c.l.b16 %v470
    %v555 = vunpack.c.h.b16 %v470
    %v556 = vunpack.c.l.b16 %v471
    %v557 = vunpack.c.l.b16 %v472
    %v558 = vunpack.c.h.b16 %v472
    %v559 = vunpack.c.l.b16 %v473
    %v560 = vunpack.c.l.b16 %v474
    %v561 = vunpack.c.h.b16 %v474
    %v562 = vunpack.c.l.b16 %v475
    %v563 = vunpack.c.l.b16 %v476
    %v564 = vunpack.c.h.b16 %v476
    %v565 = vunpack.c.l.b16 %v477
    %v566 = vunpack.c.l.b16 %v478
    %v567 = vunpack.c.h.b16 %v478
    %v568 = vunpack.c.l.b16 %v479
    %v569 = vunpack.c.l.b16 %v480
    %v570 = vunpack.c.h.b16 %v480
    %v571 = vunpack.c.l.b16 %v481
    %v572 = vunpack.c.l.b16 %v482
    %v573 = vunpack.c.h.b16 %v482
    %v574 = vunpack.c.l.b16 %v483
    %v575 = vunpack.c.l.b16 %v484
    %v576 = vunpack.c.h.b16 %v484
    %v577 = vunpack.c.l.b16 %v485
    %v578 = vunpack.c.l.b16 %v486
    %v579 = vunpack.c.h.b16 %v486
    %v580 = vunpack.c.l.b16 %v487
    %v581 = vunpack.c.l.b16 %v488
    %v582 = vunpack.c.h.b16 %v488
    %v583 = vunpack.c.l.b16 %v489
    %v584 = vunpack.c.l.b16 %v490
    %v585 = vunpack.c.h.b16 %v490
    %v586 = vunpack.c.l.b16 %v491
    %v587 = vunpack.c.l.b16 %v492
    %v588 = vunpack.c.h.b16 %v492
    %v589 = vunpack.c.l.b16 %v493
    %v590 = vunpack.c.l.b16 %v494
    %v591 = vunpack.c.h.b16 %v494
    %v592 = vunpack.c.l.b16 %v495
    %v593 = vpack.c.b16 %v548, %v545
    %v594 = vpack.c.b16 %v549, %v546
    %v595 = vpack.c.b16 %v550, %v547
    %v596 = vpack.c.b16 %v554, %v551
    %v597 = vpack.c.b16 %v555, %v552
    %v598 = vpack.c.b16 %v556, %v553
    %v599 = vpack.c.b16 %v560, %v557
    %v600 = vpack.c.b16 %v561, %v558
    %v601 = vpack.c.b16 %v562, %v559
    %v602 = vpack.c.b16 %v566, %v563
    %v603 = vpack.c.b16 %v567, %v564
    %v604 = vpack.c.b16 %v568, %v565
    %v605 = vpack.c.b16 %v572, %v569
    %v606 = vpack.c.b16 %v573, %v570
    %v607 = vpack.c.b16 %v574, %v571
    %v608 = vpack.c.b16 %v578, %v575
    %v609 = vpack.c.b16 %v579, %v576
    %v610 = vpack.c.b16 %v580, %v577
    %v611 = vpack.c.b16 %v584, %v581
    %v612 = vpack.c.b16 %v585, %v582
    %v613 = vpack.c.b16 %v586, %v583
    %v614 = vpack.c.b16 %v590, %v587
    %v615 = vpack.c.b16 %v591, %v588
    %v616 = vpack.c.b16 %v592, %v589
    %641 = vmatprep.subr.bf16.mxu0 %v615
    %642 = vmatpush1.bf16.msra.mxu0 %v614
    %643 = vmatprep.subr.bf16.mxu0 %v612
    %644 = vmatpush1.bf16.msra.mxu0 %v611
    %645 = vmatprep.subr.bf16.mxu0 %v609
    %646 = vmatpush1.bf16.msra.mxu0 %v608
    %647 = vmatprep.subr.bf16.mxu0 %v606
    %648 = vmatpush1.bf16.msra.mxu0 %v605
    %649 = vmatprep.subr.bf16.mxu0 %v603
    %650 = vmatpush1.bf16.msra.mxu0 %v602
    %651 = vmatprep.subr.bf16.mxu0 %v600
    %652 = vmatpush1.bf16.msra.mxu0 %v599
    %653 = vmatprep.subr.bf16.mxu0 %v597
    %654 = vmatpush1.bf16.msra.mxu0 %v596
    %655 = vmatprep.subr.bf16.mxu0 %v594
    %656 = vmatpush1.bf16.msra.mxu0 %v593
    %657 = vmatprep.subr.bf16.mxu0 0
    %658 = vmatpush2.bf16.msra.mxu0 0
    %659 = vmatprep.subr.bf16.mxu0 0
    %660 = vmatpush2.bf16.msra.mxu0 0
    %661 = vmatprep.subr.bf16.mxu0 0
    %662 = vmatpush2.bf16.msra.mxu0 0
    %663 = vmatprep.subr.bf16.mxu0 0
    %664 = vmatpush2.bf16.msra.mxu0 0
    %665 = vmatprep.subr.bf16.mxu0 0
    %666 = vmatpush2.bf16.msra.mxu0 0
    %667 = vmatprep.subr.bf16.mxu0 0
    %668 = vmatpush2.bf16.msra.mxu0 0
    %669 = vmatprep.subr.bf16.mxu0 0
    %670 = vmatpush2.bf16.msra.mxu0 0
    %671 = vmatprep.subr.bf16.mxu0 0
    %672 = vmatpush2.bf16.msra.mxu0 0
    %673 = vmatprep.mubr.bf16.mxu0 0
    %674 = vmatmul.mubr.bf16.gmra.mxu0 %v462
    %v675 = vpop.f32.mrf.mxu0
    %v676 = vadd.f32 %v501, %v675
    %v677 = vpop.f32.mrf.mxu0
    %v678 = vadd.f32 %v505, %v677
    %v679 = vpop.f32.mrf.mxu0
    %v680 = vadd.f32 %v501, %v679
    %v681 = vpop.f32.mrf.mxu0
    %v682 = vadd.f32 %v505, %v681
    %683 = vmatprep.mubr.bf16.mxu0 0
    %684 = vmatmul.mubr.bf16.gmra.mxu0 %v463
    %v685 = vpop.f32.mrf.mxu0
    %v686 = vadd.f32 %v501, %v685
    %v687 = vpop.f32.mrf.mxu0
    %v688 = vadd.f32 %v505, %v687
    %v689 = vpop.f32.mrf.mxu0
    %v690 = vadd.f32 %v501, %v689
    %v691 = vpop.f32.mrf.mxu0
    %v692 = vadd.f32 %v505, %v691
    %693 = vdwg.mxu0
    %694 = vmatprep.subr.bf16.mxu0 0
    %695 = vmatpush1.bf16.msra.mxu0 %v616
    %696 = vmatprep.subr.bf16.mxu0 0
    %697 = vmatpush1.bf16.msra.mxu0 %v613
    %698 = vmatprep.subr.bf16.mxu0 0
    %699 = vmatpush1.bf16.msra.mxu0 %v610
    %700 = vmatprep.subr.bf16.mxu0 0
    %701 = vmatpush1.bf16.msra.mxu0 %v607
    %702 = vmatprep.subr.bf16.mxu0 0
    %703 = vmatpush1.bf16.msra.mxu0 %v604
    %704 = vmatprep.subr.bf16.mxu0 0
    %705 = vmatpush1.bf16.msra.mxu0 %v601
    %706 = vmatprep.subr.bf16.mxu0 0
    %707 = vmatpush1.bf16.msra.mxu0 %v598
    %708 = vmatprep.subr.bf16.mxu0 0
    %709 = vmatpush1.bf16.msra.mxu0 %v595
    %710 = vmatprep.subr.bf16.mxu0 0
    %711 = vmatpush2.bf16.msra.mxu0 0
    %712 = vmatprep.subr.bf16.mxu0 0
    %713 = vmatpush2.bf16.msra.mxu0 0
    %714 = vmatprep.subr.bf16.mxu0 0
    %715 = vmatpush2.bf16.msra.mxu0 0
    %716 = vmatprep.subr.bf16.mxu0 0
    %717 = vmatpush2.bf16.msra.mxu0 0
    %718 = vmatprep.subr.bf16.mxu0 0
    %719 = vmatpush2.bf16.msra.mxu0 0
    %720 = vmatprep.subr.bf16.mxu0 0
    %721 = vmatpush2.bf16.msra.mxu0 0
    %722 = vmatprep.subr.bf16.mxu0 0
    %723 = vmatpush2.bf16.msra.mxu0 0
    %724 = vmatprep.subr.bf16.mxu0 0
    %725 = vmatpush2.bf16.msra.mxu0 0
    %726 = vmatprep.mubr.bf16.mxu0 0
    %727 = vmatmul.mubr.bf16.gmra.mxu0 %v462
    %v728 = vpop.f32.mrf.mxu0
    %v729 = vadd.f32 %v509, %v728
    %v730 = vpop.f32.mrf.mxu0
    %v731 = vpop.f32.mrf.mxu0
    %v732 = vadd.f32 %v509, %v731
    %v733 = vpop.f32.mrf.mxu0
    %734 = vmatprep.mubr.bf16.mxu0 0
    %735 = vmatmul.mubr.bf16.gmra.mxu0 %v463
    %v736 = vpop.f32.mrf.mxu0
    %v737 = vadd.f32 %v509, %v736
    %v738 = vpop.f32.mrf.mxu0
    %v739 = vpop.f32.mrf.mxu0
    %v740 = vadd.f32 %v509, %v739
    %v741 = vpop.f32.mrf.mxu0
    %742 = vdwg.mxu0
    %v743 = vpack.c.bf16 %v680, %v676
    %v744 = vpack.c.bf16 %v682, %v678
    %v745 = vpack.c.bf16 %v732, %v729
    %v746 = vpack.c.bf16 %v690, %v686
    %v747 = vpack.c.bf16 %v692, %v688
    %v748 = vpack.c.bf16 %v740, %v737
    %751 = vrot.lane.b32.xlu0 %v743, 96
    %v752 = vpop.permute.xlu0 %751
    %753 = vrot.lane.b32.xlu0 %v746, 96
    %v754 = vpop.permute.xlu0 %753
    %755 = vrot.lane.b32.xlu0 %v743, 64
    %v756 = vpop.permute.xlu0 %755
    %757 = vrot.lane.b32.xlu0 %v746, 64
    %v758 = vpop.permute.xlu0 %757
    %759 = vrot.lane.b32.xlu0 %v743, 32
    %v760 = vpop.permute.xlu0 %759
    %761 = vrot.lane.b32.xlu0 %v746, 32
    %v762 = vpop.permute.xlu0 %761
    %765 = vrot.lane.b32.xlu0 %v744, 96
    %v766 = vpop.permute.xlu0 %765
    %767 = vrot.lane.b32.xlu0 %v747, 96
    %v768 = vpop.permute.xlu0 %767
    %769 = vrot.lane.b32.xlu0 %v744, 64
    %v770 = vpop.permute.xlu0 %769
    %771 = vrot.lane.b32.xlu0 %v747, 64
    %v772 = vpop.permute.xlu0 %771
    %773 = vrot.lane.b32.xlu0 %v744, 32
    %v774 = vpop.permute.xlu0 %773
    %775 = vrot.lane.b32.xlu0 %v747, 32
    %v776 = vpop.permute.xlu0 %775
    %779 = vrot.lane.b32.xlu0 %v745, 96
    %v780 = vpop.permute.xlu0 %779
    %781 = vrot.lane.b32.xlu0 %v748, 96
    %v782 = vpop.permute.xlu0 %781
    %785 = vrot.lane.b32.xlu0 %v745, 64
    %v786 = vpop.permute.xlu0 %785
    %787 = vrot.lane.b32.xlu0 %v748, 64
    %v788 = vpop.permute.xlu0 %787
    %791 = vrot.lane.b32.xlu0 %v745, 32
    %v792 = vpop.permute.xlu0 %791
    %793 = vrot.lane.b32.xlu0 %v748, 32
    %v794 = vpop.permute.xlu0 %793
    %vm797 = vcmask 261120
    %v799 = vsel %vm797, %v743, 0
    %v802 = vsel %vm797, %v744, 0
    %804 = vmatprep.subr.bf16.mxu0 0
    %805 = vmatpush1.bf16.xpose.msra.mxu0 0
    %806 = vmatprep.subr.bf16.mxu0 0
    %807 = vmatpush1.bf16.xpose.msra.mxu0 0
    %808 = vmatprep.subr.bf16.mxu0 0
    %809 = vmatpush1.bf16.xpose.msra.mxu0 0
    %810 = vmatprep.subr.bf16.mxu0 0
    %811 = vmatpush1.bf16.xpose.msra.mxu0 0
    %812 = vmatprep.subr.bf16.mxu0 0
    %813 = vmatpush1.bf16.xpose.msra.mxu0 0
    %814 = vmatprep.subr.bf16.mxu0 0
    %815 = vmatpush1.bf16.xpose.msra.mxu0 0
    %816 = vmatprep.subr.bf16.mxu0 0
    %817 = vmatpush1.bf16.xpose.msra.mxu0 0
    %818 = vmatprep.subr.bf16.mxu0 0
    %819 = vmatpush1.bf16.xpose.msra.mxu0 %v802
    %820 = vmatprep.subr.bf16.mxu0 0
    %821 = vmatpush2.bf16.xpose.msra.mxu0 0
    %822 = vmatprep.subr.bf16.mxu0 0
    %823 = vmatpush2.bf16.xpose.msra.mxu0 0
    %824 = vmatprep.subr.bf16.mxu0 0
    %825 = vmatpush2.bf16.xpose.msra.mxu0 0
    %826 = vmatprep.subr.bf16.mxu0 0
    %827 = vmatpush2.bf16.xpose.msra.mxu0 0
    %828 = vmatprep.subr.bf16.mxu0 0
    %829 = vmatpush2.bf16.xpose.msra.mxu0 0
    %830 = vmatprep.subr.bf16.mxu0 0
    %831 = vmatpush2.bf16.xpose.msra.mxu0 0
    %832 = vmatprep.subr.bf16.mxu0 0
    %833 = vmatpush2.bf16.xpose.msra.mxu0 0
    %834 = vmatprep.subr.bf16.mxu0 0
    %835 = vmatpush2.bf16.xpose.msra.mxu0 0
    %836 = vmatprep.mubr.bf16.mxu0 0
    %837 = vmatmul.mubr.bf16.gmra.mxu0 %v799
    %v838 = vpop.f32.mrf.mxu0
    %v839 = vadd.f32 %v191, %v838
    %v840 = vpop.f32.mrf.mxu0
    %v841 = vpop.f32.mrf.mxu0
    %v842 = vadd.f32 %v192, %v841
    %v843 = vpop.f32.mrf.mxu0
    %844 = vdwg.mxu0
    %v846 = vsel %vm797, %v746, 0
    %v849 = vsel %vm797, %v747, 0
    %851 = vmatprep.subr.bf16.mxu0 0
    %852 = vmatpush1.bf16.xpose.msra.mxu0 0
    %853 = vmatprep.subr.bf16.mxu0 0
    %854 = vmatpush1.bf16.xpose.msra.mxu0 0
    %855 = vmatprep.subr.bf16.mxu0 0
    %856 = vmatpush1.bf16.xpose.msra.mxu0 0
    %857 = vmatprep.subr.bf16.mxu0 0
    %858 = vmatpush1.bf16.xpose.msra.mxu0 0
    %859 = vmatprep.subr.bf16.mxu0 0
    %860 = vmatpush1.bf16.xpose.msra.mxu0 0
    %861 = vmatprep.subr.bf16.mxu0 0
    %862 = vmatpush1.bf16.xpose.msra.mxu0 0
    %863 = vmatprep.subr.bf16.mxu0 0
    %864 = vmatpush1.bf16.xpose.msra.mxu0 0
    %865 = vmatprep.subr.bf16.mxu0 0
    %866 = vmatpush1.bf16.xpose.msra.mxu0 %v849
    %867 = vmatprep.subr.bf16.mxu0 0
    %868 = vmatpush2.bf16.xpose.msra.mxu0 0
    %869 = vmatprep.subr.bf16.mxu0 0
    %870 = vmatpush2.bf16.xpose.msra.mxu0 0
    %871 = vmatprep.subr.bf16.mxu0 0
    %872 = vmatpush2.bf16.xpose.msra.mxu0 0
    %873 = vmatprep.subr.bf16.mxu0 0
    %874 = vmatpush2.bf16.xpose.msra.mxu0 0
    %875 = vmatprep.subr.bf16.mxu0 0
    %876 = vmatpush2.bf16.xpose.msra.mxu0 0
    %877 = vmatprep.subr.bf16.mxu0 0
    %878 = vmatpush2.bf16.xpose.msra.mxu0 0
    %879 = vmatprep.subr.bf16.mxu0 0
    %880 = vmatpush2.bf16.xpose.msra.mxu0 0
    %881 = vmatprep.subr.bf16.mxu0 0
    %882 = vmatpush2.bf16.xpose.msra.mxu0 0
    %883 = vmatprep.mubr.bf16.mxu0 0
    %884 = vmatmul.mubr.bf16.gmra.mxu0 %v846
    %v885 = vpop.f32.mrf.mxu0
    %v886 = vadd.f32 %v193, %v885
    %v887 = vpop.f32.mrf.mxu0
    %v888 = vpop.f32.mrf.mxu0
    %v889 = vadd.f32 %v194, %v888
    %v890 = vpop.f32.mrf.mxu0
    %891 = vdwg.mxu0
    %v893 = vsel %vm797, %v752, 0
    %v896 = vsel %vm797, %v766, 0
    %898 = vmatprep.subr.bf16.mxu0 0
    %899 = vmatpush1.bf16.xpose.msra.mxu0 0
    %900 = vmatprep.subr.bf16.mxu0 0
    %901 = vmatpush1.bf16.xpose.msra.mxu0 0
    %902 = vmatprep.subr.bf16.mxu0 0
    %903 = vmatpush1.bf16.xpose.msra.mxu0 0
    %904 = vmatprep.subr.bf16.mxu0 0
    %905 = vmatpush1.bf16.xpose.msra.mxu0 0
    %906 = vmatprep.subr.bf16.mxu0 0
    %907 = vmatpush1.bf16.xpose.msra.mxu0 0
    %908 = vmatprep.subr.bf16.mxu0 0
    %909 = vmatpush1.bf16.xpose.msra.mxu0 0
    %910 = vmatprep.subr.bf16.mxu0 0
    %911 = vmatpush1.bf16.xpose.msra.mxu0 0
    %912 = vmatprep.subr.bf16.mxu0 0
    %913 = vmatpush1.bf16.xpose.msra.mxu0 %v896
    %914 = vmatprep.subr.bf16.mxu0 0
    %915 = vmatpush2.bf16.xpose.msra.mxu0 0
    %916 = vmatprep.subr.bf16.mxu0 0
    %917 = vmatpush2.bf16.xpose.msra.mxu0 0
    %918 = vmatprep.subr.bf16.mxu0 0
    %919 = vmatpush2.bf16.xpose.msra.mxu0 0
    %920 = vmatprep.subr.bf16.mxu0 0
    %921 = vmatpush2.bf16.xpose.msra.mxu0 0
    %922 = vmatprep.subr.bf16.mxu0 0
    %923 = vmatpush2.bf16.xpose.msra.mxu0 0
    %924 = vmatprep.subr.bf16.mxu0 0
    %925 = vmatpush2.bf16.xpose.msra.mxu0 0
    %926 = vmatprep.subr.bf16.mxu0 0
    %927 = vmatpush2.bf16.xpose.msra.mxu0 0
    %928 = vmatprep.subr.bf16.mxu0 0
    %929 = vmatpush2.bf16.xpose.msra.mxu0 0
    %930 = vmatprep.mubr.bf16.mxu0 0
    %931 = vmatmul.mubr.bf16.gmra.mxu0 %v893
    %v932 = vpop.f32.mrf.mxu0
    %v933 = vadd.f32 %v195, %v932
    %v934 = vpop.f32.mrf.mxu0
    %v935 = vpop.f32.mrf.mxu0
    %v936 = vadd.f32 %v196, %v935
    %v937 = vpop.f32.mrf.mxu0
    %938 = vdwg.mxu0
    %v940 = vsel %vm797, %v754, 0
    %v943 = vsel %vm797, %v768, 0
    %945 = vmatprep.subr.bf16.mxu0 0
    %946 = vmatpush1.bf16.xpose.msra.mxu0 0
    %947 = vmatprep.subr.bf16.mxu0 0
    %948 = vmatpush1.bf16.xpose.msra.mxu0 0
    %949 = vmatprep.subr.bf16.mxu0 0
    %950 = vmatpush1.bf16.xpose.msra.mxu0 0
    %951 = vmatprep.subr.bf16.mxu0 0
    %952 = vmatpush1.bf16.xpose.msra.mxu0 0
    %953 = vmatprep.subr.bf16.mxu0 0
    %954 = vmatpush1.bf16.xpose.msra.mxu0 0
    %955 = vmatprep.subr.bf16.mxu0 0
    %956 = vmatpush1.bf16.xpose.msra.mxu0 0
    %957 = vmatprep.subr.bf16.mxu0 0
    %958 = vmatpush1.bf16.xpose.msra.mxu0 0
    %959 = vmatprep.subr.bf16.mxu0 0
    %960 = vmatpush1.bf16.xpose.msra.mxu0 %v943
    %961 = vmatprep.subr.bf16.mxu0 0
    %962 = vmatpush2.bf16.xpose.msra.mxu0 0
    %963 = vmatprep.subr.bf16.mxu0 0
    %964 = vmatpush2.bf16.xpose.msra.mxu0 0
    %965 = vmatprep.subr.bf16.mxu0 0
    %966 = vmatpush2.bf16.xpose.msra.mxu0 0
    %967 = vmatprep.subr.bf16.mxu0 0
    %968 = vmatpush2.bf16.xpose.msra.mxu0 0
    %969 = vmatprep.subr.bf16.mxu0 0
    %970 = vmatpush2.bf16.xpose.msra.mxu0 0
    %971 = vmatprep.subr.bf16.mxu0 0
    %972 = vmatpush2.bf16.xpose.msra.mxu0 0
    %973 = vmatprep.subr.bf16.mxu0 0
    %974 = vmatpush2.bf16.xpose.msra.mxu0 0
    %975 = vmatprep.subr.bf16.mxu0 0
    %976 = vmatpush2.bf16.xpose.msra.mxu0 0
    %977 = vmatprep.mubr.bf16.mxu0 0
    %978 = vmatmul.mubr.bf16.gmra.mxu0 %v940
    %v979 = vpop.f32.mrf.mxu0
    %v980 = vadd.f32 %v197, %v979
    %v981 = vpop.f32.mrf.mxu0
    %v982 = vpop.f32.mrf.mxu0
    %v983 = vadd.f32 %v198, %v982
    %v984 = vpop.f32.mrf.mxu0
    %985 = vdwg.mxu0
    %v987 = vsel %vm797, %v756, 0
    %v990 = vsel %vm797, %v770, 0
    %992 = vmatprep.subr.bf16.mxu0 0
    %993 = vmatpush1.bf16.xpose.msra.mxu0 0
    %994 = vmatprep.subr.bf16.mxu0 0
    %995 = vmatpush1.bf16.xpose.msra.mxu0 0
    %996 = vmatprep.subr.bf16.mxu0 0
    %997 = vmatpush1.bf16.xpose.msra.mxu0 0
    %998 = vmatprep.subr.bf16.mxu0 0
    %999 = vmatpush1.bf16.xpose.msra.mxu0 0
    %1000 = vmatprep.subr.bf16.mxu0 0
    %1001 = vmatpush1.bf16.xpose.msra.mxu0 0
    %1002 = vmatprep.subr.bf16.mxu0 0
    %1003 = vmatpush1.bf16.xpose.msra.mxu0 0
    %1004 = vmatprep.subr.bf16.mxu0 0
    %1005 = vmatpush1.bf16.xpose.msra.mxu0 0
    %1006 = vmatprep.subr.bf16.mxu0 0
    %1007 = vmatpush1.bf16.xpose.msra.mxu0 %v990
    %1008 = vmatprep.subr.bf16.mxu0 0
    %1009 = vmatpush2.bf16.xpose.msra.mxu0 0
    %1010 = vmatprep.subr.bf16.mxu0 0
    %1011 = vmatpush2.bf16.xpose.msra.mxu0 0
    %1012 = vmatprep.subr.bf16.mxu0 0
    %1013 = vmatpush2.bf16.xpose.msra.mxu0 0
    %1014 = vmatprep.subr.bf16.mxu0 0
    %1015 = vmatpush2.bf16.xpose.msra.mxu0 0
    %1016 = vmatprep.subr.bf16.mxu0 0
    %1017 = vmatpush2.bf16.xpose.msra.mxu0 0
    %1018 = vmatprep.subr.bf16.mxu0 0
    %1019 = vmatpush2.bf16.xpose.msra.mxu0 0
    %1020 = vmatprep.subr.bf16.mxu0 0
    %1021 = vmatpush2.bf16.xpose.msra.mxu0 0
    %1022 = vmatprep.subr.bf16.mxu0 0
    %1023 = vmatpush2.bf16.xpose.msra.mxu0 0
    %1024 = vmatprep.mubr.bf16.mxu0 0
    %1025 = vmatmul.mubr.bf16.gmra.mxu0 %v987
    %v1026 = vpop.f32.mrf.mxu0
    %v1027 = vadd.f32 %v199, %v1026
    %v1028 = vpop.f32.mrf.mxu0
    %v1029 = vpop.f32.mrf.mxu0
    %v1030 = vadd.f32 %v200, %v1029
    %v1031 = vpop.f32.mrf.mxu0
    %1032 = vdwg.mxu0
    %v1034 = vsel %vm797, %v758, 0
    %v1037 = vsel %vm797, %v772, 0
    %1039 = vmatprep.subr.bf16.mxu0 0
    %1040 = vmatpush1.bf16.xpose.msra.mxu0 0
    %1041 = vmatprep.subr.bf16.mxu0 0
    %1042 = vmatpush1.bf16.xpose.msra.mxu0 0
    %1043 = vmatprep.subr.bf16.mxu0 0
    %1044 = vmatpush1.bf16.xpose.msra.mxu0 0
    %1045 = vmatprep.subr.bf16.mxu0 0
    %1046 = vmatpush1.bf16.xpose.msra.mxu0 0
    %1047 = vmatprep.subr.bf16.mxu0 0
    %1048 = vmatpush1.bf16.xpose.msra.mxu0 0
    %1049 = vmatprep.subr.bf16.mxu0 0
    %1050 = vmatpush1.bf16.xpose.msra.mxu0 0
    %1051 = vmatprep.subr.bf16.mxu0 0
    %1052 = vmatpush1.bf16.xpose.msra.mxu0 0
    %1053 = vmatprep.subr.bf16.mxu0 0
    %1054 = vmatpush1.bf16.xpose.msra.mxu0 %v1037
    %1055 = vmatprep.subr.bf16.mxu0 0
    %1056 = vmatpush2.bf16.xpose.msra.mxu0 0
    %1057 = vmatprep.subr.bf16.mxu0 0
    %1058 = vmatpush2.bf16.xpose.msra.mxu0 0
    %1059 = vmatprep.subr.bf16.mxu0 0
    %1060 = vmatpush2.bf16.xpose.msra.mxu0 0
    %1061 = vmatprep.subr.bf16.mxu0 0
    %1062 = vmatpush2.bf16.xpose.msra.mxu0 0
    %1063 = vmatprep.subr.bf16.mxu0 0
    %1064 = vmatpush2.bf16.xpose.msra.mxu0 0
    %1065 = vmatprep.subr.bf16.mxu0 0
    %1066 = vmatpush2.bf16.xpose.msra.mxu0 0
    %1067 = vmatprep.subr.bf16.mxu0 0
    %1068 = vmatpush2.bf16.xpose.msra.mxu0 0
    %1069 = vmatprep.subr.bf16.mxu0 0
    %1070 = vmatpush2.bf16.xpose.msra.mxu0 0
    %1071 = vmatprep.mubr.bf16.mxu0 0
    %1072 = vmatmul.mubr.bf16.gmra.mxu0 %v1034
    %v1073 = vpop.f32.mrf.mxu0
    %v1074 = vadd.f32 %v201, %v1073
    %v1075 = vpop.f32.mrf.mxu0
    %v1076 = vpop.f32.mrf.mxu0
    %v1077 = vadd.f32 %v202, %v1076
    %v1078 = vpop.f32.mrf.mxu0
    %1079 = vdwg.mxu0
    %v1081 = vsel %vm797, %v760, 0
    %v1084 = vsel %vm797, %v774, 0
    %1086 = vmatprep.subr.bf16.mxu0 0
    %1087 = vmatpush1.bf16.xpose.msra.mxu0 0
    %1088 = vmatprep.subr.bf16.mxu0 0
    %1089 = vmatpush1.bf16.xpose.msra.mxu0 0
    %1090 = vmatprep.subr.bf16.mxu0 0
    %1091 = vmatpush1.bf16.xpose.msra.mxu0 0
    %1092 = vmatprep.subr.bf16.mxu0 0
    %1093 = vmatpush1.bf16.xpose.msra.mxu0 0
    %1094 = vmatprep.subr.bf16.mxu0 0
    %1095 = vmatpush1.bf16.xpose.msra.mxu0 0
    %1096 = vmatprep.subr.bf16.mxu0 0
    %1097 = vmatpush1.bf16.xpose.msra.mxu0 0
    %1098 = vmatprep.subr.bf16.mxu0 0
    %1099 = vmatpush1.bf16.xpose.msra.mxu0 0
    %1100 = vmatprep.subr.bf16.mxu0 0
    %1101 = vmatpush1.bf16.xpose.msra.mxu0 %v1084
    %1102 = vmatprep.subr.bf16.mxu0 0
    %1103 = vmatpush2.bf16.xpose.msra.mxu0 0
    %1104 = vmatprep.subr.bf16.mxu0 0
    %1105 = vmatpush2.bf16.xpose.msra.mxu0 0
    %1106 = vmatprep.subr.bf16.mxu0 0
    %1107 = vmatpush2.bf16.xpose.msra.mxu0 0
    %1108 = vmatprep.subr.bf16.mxu0 0
    %1109 = vmatpush2.bf16.xpose.msra.mxu0 0
    %1110 = vmatprep.subr.bf16.mxu0 0
    %1111 = vmatpush2.bf16.xpose.msra.mxu0 0
    %1112 = vmatprep.subr.bf16.mxu0 0
    %1113 = vmatpush2.bf16.xpose.msra.mxu0 0
    %1114 = vmatprep.subr.bf16.mxu0 0
    %1115 = vmatpush2.bf16.xpose.msra.mxu0 0
    %1116 = vmatprep.subr.bf16.mxu0 0
    %1117 = vmatpush2.bf16.xpose.msra.mxu0 0
    %1118 = vmatprep.mubr.bf16.mxu0 0
    %1119 = vmatmul.mubr.bf16.gmra.mxu0 %v1081
    %v1120 = vpop.f32.mrf.mxu0
    %v1121 = vadd.f32 %v203, %v1120
    %v1122 = vpop.f32.mrf.mxu0
    %v1123 = vpop.f32.mrf.mxu0
    %v1124 = vadd.f32 %v204, %v1123
    %v1125 = vpop.f32.mrf.mxu0
    %1126 = vdwg.mxu0
    %v1128 = vsel %vm797, %v762, 0
    %v1131 = vsel %vm797, %v776, 0
    %1133 = vmatprep.subr.bf16.mxu0 0
    %1134 = vmatpush1.bf16.xpose.msra.mxu0 0
    %1135 = vmatprep.subr.bf16.mxu0 0
    %1136 = vmatpush1.bf16.xpose.msra.mxu0 0
    %1137 = vmatprep.subr.bf16.mxu0 0
    %1138 = vmatpush1.bf16.xpose.msra.mxu0 0
    %1139 = vmatprep.subr.bf16.mxu0 0
    %1140 = vmatpush1.bf16.xpose.msra.mxu0 0
    %1141 = vmatprep.subr.bf16.mxu0 0
    %1142 = vmatpush1.bf16.xpose.msra.mxu0 0
    %1143 = vmatprep.subr.bf16.mxu0 0
    %1144 = vmatpush1.bf16.xpose.msra.mxu0 0
    %1145 = vmatprep.subr.bf16.mxu0 0
    %1146 = vmatpush1.bf16.xpose.msra.mxu0 0
    %1147 = vmatprep.subr.bf16.mxu0 0
    %1148 = vmatpush1.bf16.xpose.msra.mxu0 %v1131
    %1149 = vmatprep.subr.bf16.mxu0 0
    %1150 = vmatpush2.bf16.xpose.msra.mxu0 0
    %1151 = vmatprep.subr.bf16.mxu0 0
    %1152 = vmatpush2.bf16.xpose.msra.mxu0 0
    %1153 = vmatprep.subr.bf16.mxu0 0
    %1154 = vmatpush2.bf16.xpose.msra.mxu0 0
    %1155 = vmatprep.subr.bf16.mxu0 0
    %1156 = vmatpush2.bf16.xpose.msra.mxu0 0
    %1157 = vmatprep.subr.bf16.mxu0 0
    %1158 = vmatpush2.bf16.xpose.msra.mxu0 0
    %1159 = vmatprep.subr.bf16.mxu0 0
    %1160 = vmatpush2.bf16.xpose.msra.mxu0 0
    %1161 = vmatprep.subr.bf16.mxu0 0
    %1162 = vmatpush2.bf16.xpose.msra.mxu0 0
    %1163 = vmatprep.subr.bf16.mxu0 0
    %1164 = vmatpush2.bf16.xpose.msra.mxu0 0
    %1165 = vmatprep.mubr.bf16.mxu0 0
    %1166 = vmatmul.mubr.bf16.gmra.mxu0 %v1128
    %v1167 = vpop.f32.mrf.mxu0
    %v1168 = vadd.f32 %v205, %v1167
    %v1169 = vpop.f32.mrf.mxu0
    %v1170 = vpop.f32.mrf.mxu0
    %v1171 = vadd.f32 %v206, %v1170
    %v1172 = vpop.f32.mrf.mxu0
    %1173 = vdwg.mxu0
    %vm1174 = vcmask 130048
    %v1175 = vsel %vm1174, %v839, -inf
    %1176 = vmax.xlane.f32.xlu0 %v1175
    %v1177 = vpop.xlane.xlu0 %1176
    %v1178 = vsel %vm1174, %v842, -inf
    %1179 = vmax.xlane.f32.xlu0 %v1178
    %v1180 = vpop.xlane.xlu0 %1179
    %v1181 = vsel %vm1174, %v886, -inf
    %1182 = vmax.xlane.f32.xlu0 %v1181
    %v1183 = vpop.xlane.xlu0 %1182
    %v1184 = vsel %vm1174, %v889, -inf
    %1185 = vmax.xlane.f32.xlu0 %v1184
    %v1186 = vpop.xlane.xlu0 %1185
    %v1187 = vsel %vm1174, %v933, -inf
    %1188 = vmax.xlane.f32.xlu0 %v1187
    %v1189 = vpop.xlane.xlu0 %1188
    %v1190 = vsel %vm1174, %v936, -inf
    %1191 = vmax.xlane.f32.xlu0 %v1190
    %v1192 = vpop.xlane.xlu0 %1191
    %v1193 = vsel %vm1174, %v980, -inf
    %1194 = vmax.xlane.f32.xlu0 %v1193
    %v1195 = vpop.xlane.xlu0 %1194
    %v1196 = vsel %vm1174, %v983, -inf
    %1197 = vmax.xlane.f32.xlu0 %v1196
    %v1198 = vpop.xlane.xlu0 %1197
    %v1199 = vsel %vm1174, %v1027, -inf
    %1200 = vmax.xlane.f32.xlu0 %v1199
    %v1201 = vpop.xlane.xlu0 %1200
    %v1202 = vsel %vm1174, %v1030, -inf
    %1203 = vmax.xlane.f32.xlu0 %v1202
    %v1204 = vpop.xlane.xlu0 %1203
    %v1205 = vsel %vm1174, %v1074, -inf
    %1206 = vmax.xlane.f32.xlu0 %v1205
    %v1207 = vpop.xlane.xlu0 %1206
    %v1208 = vsel %vm1174, %v1077, -inf
    %1209 = vmax.xlane.f32.xlu0 %v1208
    %v1210 = vpop.xlane.xlu0 %1209
    %v1211 = vsel %vm1174, %v1121, -inf
    %1212 = vmax.xlane.f32.xlu0 %v1211
    %v1213 = vpop.xlane.xlu0 %1212
    %v1214 = vsel %vm1174, %v1124, -inf
    %1215 = vmax.xlane.f32.xlu0 %v1214
    %v1216 = vpop.xlane.xlu0 %1215
    %v1217 = vsel %vm1174, %v1168, -inf
    %1218 = vmax.xlane.f32.xlu0 %v1217
    %v1219 = vpop.xlane.xlu0 %1218
    %v1220 = vsel %vm1174, %v1171, -inf
    %1221 = vmax.xlane.f32.xlu0 %v1220
    %v1222 = vpop.xlane.xlu0 %1221
    %v1223 = vsub.f32 %v839, %v1177
    %v1224 = vsub.f32 %v842, %v1180
    %v1225 = vsub.f32 %v886, %v1183
    %v1226 = vsub.f32 %v889, %v1186
    %v1227 = vsub.f32 %v933, %v1189
    %v1228 = vsub.f32 %v936, %v1192
    %v1229 = vsub.f32 %v980, %v1195
    %v1230 = vsub.f32 %v983, %v1198
    %v1231 = vsub.f32 %v1027, %v1201
    %v1232 = vsub.f32 %v1030, %v1204
    %v1233 = vsub.f32 %v1074, %v1207
    %v1234 = vsub.f32 %v1077, %v1210
    %v1235 = vsub.f32 %v1121, %v1213
    %v1236 = vsub.f32 %v1124, %v1216
    %v1237 = vsub.f32 %v1168, %v1219
    %v1238 = vsub.f32 %v1171, %v1222
    %v1239 = vmul.f32 %v1223, 1.442695
    %v1240 = vpow.pop %v1239
    %v1241 = vmul.f32 %v1224, 1.442695
    %v1242 = vpow.pop %v1241
    %v1243 = vmul.f32 %v1225, 1.442695
    %v1244 = vpow.pop %v1243
    %v1245 = vmul.f32 %v1226, 1.442695
    %v1246 = vpow.pop %v1245
    %v1247 = vmul.f32 %v1227, 1.442695
    %v1248 = vpow.pop %v1247
    %v1249 = vmul.f32 %v1228, 1.442695
    %v1250 = vpow.pop %v1249
    %v1251 = vmul.f32 %v1229, 1.442695
    %v1252 = vpow.pop %v1251
    %v1253 = vmul.f32 %v1230, 1.442695
    %v1254 = vpow.pop %v1253
    %v1255 = vmul.f32 %v1231, 1.442695
    %v1256 = vpow.pop %v1255
    %v1257 = vmul.f32 %v1232, 1.442695
    %v1258 = vpow.pop %v1257
    %v1259 = vmul.f32 %v1233, 1.442695
    %v1260 = vpow.pop %v1259
    %v1261 = vmul.f32 %v1234, 1.442695
    %v1262 = vpow.pop %v1261
    %v1263 = vmul.f32 %v1235, 1.442695
    %v1264 = vpow.pop %v1263
    %v1265 = vmul.f32 %v1236, 1.442695
    %v1266 = vpow.pop %v1265
    %v1267 = vmul.f32 %v1237, 1.442695
    %v1268 = vpow.pop %v1267
    %v1269 = vmul.f32 %v1238, 1.442695
    %v1270 = vpow.pop %v1269
    %v1271 = vsel %vm1174, %v1240, 0.0
    %1272 = vadd.xlane.f32.xlu0 %v1271
    %v1273 = vpop.xlane.xlu0 %1272
    %v1274 = vsel %vm1174, %v1242, 0.0
    %1275 = vadd.xlane.f32.xlu0 %v1274
    %v1276 = vpop.xlane.xlu0 %1275
    %v1277 = vsel %vm1174, %v1244, 0.0
    %1278 = vadd.xlane.f32.xlu0 %v1277
    %v1279 = vpop.xlane.xlu0 %1278
    %v1280 = vsel %vm1174, %v1246, 0.0
    %1281 = vadd.xlane.f32.xlu0 %v1280
    %v1282 = vpop.xlane.xlu0 %1281
    %v1283 = vsel %vm1174, %v1248, 0.0
    %1284 = vadd.xlane.f32.xlu0 %v1283
    %v1285 = vpop.xlane.xlu0 %1284
    %v1286 = vsel %vm1174, %v1250, 0.0
    %1287 = vadd.xlane.f32.xlu0 %v1286
    %v1288 = vpop.xlane.xlu0 %1287
    %v1289 = vsel %vm1174, %v1252, 0.0
    %1290 = vadd.xlane.f32.xlu0 %v1289
    %v1291 = vpop.xlane.xlu0 %1290
    %v1292 = vsel %vm1174, %v1254, 0.0
    %1293 = vadd.xlane.f32.xlu0 %v1292
    %v1294 = vpop.xlane.xlu0 %1293
    %v1295 = vsel %vm1174, %v1256, 0.0
    %1296 = vadd.xlane.f32.xlu0 %v1295
    %v1297 = vpop.xlane.xlu0 %1296
    %v1298 = vsel %vm1174, %v1258, 0.0
    %1299 = vadd.xlane.f32.xlu0 %v1298
    %v1300 = vpop.xlane.xlu0 %1299
    %v1301 = vsel %vm1174, %v1260, 0.0
    %1302 = vadd.xlane.f32.xlu0 %v1301
    %v1303 = vpop.xlane.xlu0 %1302
    %v1304 = vsel %vm1174, %v1262, 0.0
    %1305 = vadd.xlane.f32.xlu0 %v1304
    %v1306 = vpop.xlane.xlu0 %1305
    %v1307 = vsel %vm1174, %v1264, 0.0
    %1308 = vadd.xlane.f32.xlu0 %v1307
    %v1309 = vpop.xlane.xlu0 %1308
    %v1310 = vsel %vm1174, %v1266, 0.0
    %1311 = vadd.xlane.f32.xlu0 %v1310
    %v1312 = vpop.xlane.xlu0 %1311
    %v1313 = vsel %vm1174, %v1268, 0.0
    %1314 = vadd.xlane.f32.xlu0 %v1313
    %v1315 = vpop.xlane.xlu0 %1314
    %v1316 = vsel %vm1174, %v1270, 0.0
    %1317 = vadd.xlane.f32.xlu0 %v1316
    %v1318 = vpop.xlane.xlu0 %1317
    %v1319 = vrcp.pop %v1273
    %v1320 = vrcp.pop %v1276
    %v1321 = vrcp.pop %v1279
    %v1322 = vrcp.pop %v1282
    %v1323 = vrcp.pop %v1285
    %v1324 = vrcp.pop %v1288
    %v1325 = vrcp.pop %v1291
    %v1326 = vrcp.pop %v1294
    %v1327 = vrcp.pop %v1297
    %v1328 = vrcp.pop %v1300
    %v1329 = vrcp.pop %v1303
    %v1330 = vrcp.pop %v1306
    %v1331 = vrcp.pop %v1309
    %v1332 = vrcp.pop %v1312
    %v1333 = vrcp.pop %v1315
    %v1334 = vrcp.pop %v1318
    %v1335 = vmul.f32 %v1240, %v1319
    %v1336 = vmul.f32 %v1242, %v1320
    %v1337 = vmul.f32 %v1244, %v1321
    %v1338 = vmul.f32 %v1246, %v1322
    %v1339 = vmul.f32 %v1248, %v1323
    %v1340 = vmul.f32 %v1250, %v1324
    %v1341 = vmul.f32 %v1252, %v1325
    %v1342 = vmul.f32 %v1254, %v1326
    %v1343 = vmul.f32 %v1256, %v1327
    %v1344 = vmul.f32 %v1258, %v1328
    %v1345 = vmul.f32 %v1260, %v1329
    %v1346 = vmul.f32 %v1262, %v1330
    %v1347 = vmul.f32 %v1264, %v1331
    %v1348 = vmul.f32 %v1266, %v1332
    %v1349 = vmul.f32 %v1268, %v1333
    %v1350 = vmul.f32 %v1270, %v1334
    %v1351 = vpack.c.bf16 %v1336, %v1335
    %v1352 = vpack.c.bf16 %v1338, %v1337
    %v1353 = vpack.c.bf16 %v1340, %v1339
    %v1354 = vpack.c.bf16 %v1342, %v1341
    %v1355 = vpack.c.bf16 %v1344, %v1343
    %v1356 = vpack.c.bf16 %v1346, %v1345
    %v1357 = vpack.c.bf16 %v1348, %v1347
    %v1358 = vpack.c.bf16 %v1350, %v1349
    %v1360 = vsel %vm1174, %v1351, 0
    %1362 = vmatprep.subr.bf16.mxu0 0
    %1363 = vmatpush1.bf16.msra.mxu0 0
    %1364 = vmatprep.subr.bf16.mxu0 0
    %1365 = vmatpush1.bf16.msra.mxu0 0
    %1366 = vmatprep.subr.bf16.mxu0 0
    %1367 = vmatpush1.bf16.msra.mxu0 0
    %1368 = vmatprep.subr.bf16.mxu0 0
    %1369 = vmatpush1.bf16.msra.mxu0 0
    %1370 = vmatprep.subr.bf16.mxu0 0
    %1371 = vmatpush1.bf16.msra.mxu0 0
    %1372 = vmatprep.subr.bf16.mxu0 0
    %1373 = vmatpush1.bf16.msra.mxu0 0
    %1374 = vmatprep.subr.bf16.mxu0 0
    %1375 = vmatpush1.bf16.msra.mxu0 0
    %1376 = vmatprep.subr.bf16.mxu0 0
    %1377 = vmatpush1.bf16.msra.mxu0 %v745
    %1378 = vmatprep.subr.bf16.mxu0 0
    %1379 = vmatpush2.bf16.msra.mxu0 0
    %1380 = vmatprep.subr.bf16.mxu0 0
    %1381 = vmatpush2.bf16.msra.mxu0 0
    %1382 = vmatprep.subr.bf16.mxu0 0
    %1383 = vmatpush2.bf16.msra.mxu0 0
    %1384 = vmatprep.subr.bf16.mxu0 0
    %1385 = vmatpush2.bf16.msra.mxu0 0
    %1386 = vmatprep.subr.bf16.mxu0 0
    %1387 = vmatpush2.bf16.msra.mxu0 0
    %1388 = vmatprep.subr.bf16.mxu0 0
    %1389 = vmatpush2.bf16.msra.mxu0 0
    %1390 = vmatprep.subr.bf16.mxu0 0
    %1391 = vmatpush2.bf16.msra.mxu0 0
    %1392 = vmatprep.subr.bf16.mxu0 0
    %1393 = vmatpush2.bf16.msra.mxu0 0
    %1394 = vmatprep.mubr.bf16.mxu0 0
    %1395 = vmatmul.mubr.bf16.gmra.mxu0 %v1360
    %v1396 = vpop.f32.mrf.mxu0
    %v1397 = vadd.f32 0.0, %v1396
    %v1398 = vpop.f32.mrf.mxu0
    %v1399 = vpop.f32.mrf.mxu0
    %v1400 = vadd.f32 0.0, %v1399
    %v1401 = vpop.f32.mrf.mxu0
    %1402 = vdwg.mxu0
    %v1404 = vsel %vm1174, %v1352, 0
    %1406 = vmatprep.subr.bf16.mxu0 0
    %1407 = vmatpush1.bf16.msra.mxu0 0
    %1408 = vmatprep.subr.bf16.mxu0 0
    %1409 = vmatpush1.bf16.msra.mxu0 0
    %1410 = vmatprep.subr.bf16.mxu0 0
    %1411 = vmatpush1.bf16.msra.mxu0 0
    %1412 = vmatprep.subr.bf16.mxu0 0
    %1413 = vmatpush1.bf16.msra.mxu0 0
    %1414 = vmatprep.subr.bf16.mxu0 0
    %1415 = vmatpush1.bf16.msra.mxu0 0
    %1416 = vmatprep.subr.bf16.mxu0 0
    %1417 = vmatpush1.bf16.msra.mxu0 0
    %1418 = vmatprep.subr.bf16.mxu0 0
    %1419 = vmatpush1.bf16.msra.mxu0 0
    %1420 = vmatprep.subr.bf16.mxu0 0
    %1421 = vmatpush1.bf16.msra.mxu0 %v748
    %1422 = vmatprep.subr.bf16.mxu0 0
    %1423 = vmatpush2.bf16.msra.mxu0 0
    %1424 = vmatprep.subr.bf16.mxu0 0
    %1425 = vmatpush2.bf16.msra.mxu0 0
    %1426 = vmatprep.subr.bf16.mxu0 0
    %1427 = vmatpush2.bf16.msra.mxu0 0
    %1428 = vmatprep.subr.bf16.mxu0 0
    %1429 = vmatpush2.bf16.msra.mxu0 0
    %1430 = vmatprep.subr.bf16.mxu0 0
    %1431 = vmatpush2.bf16.msra.mxu0 0
    %1432 = vmatprep.subr.bf16.mxu0 0
    %1433 = vmatpush2.bf16.msra.mxu0 0
    %1434 = vmatprep.subr.bf16.mxu0 0
    %1435 = vmatpush2.bf16.msra.mxu0 0
    %1436 = vmatprep.subr.bf16.mxu0 0
    %1437 = vmatpush2.bf16.msra.mxu0 0
    %1438 = vmatprep.mubr.bf16.mxu0 0
    %1439 = vmatmul.mubr.bf16.gmra.mxu0 %v1404
    %v1440 = vpop.f32.mrf.mxu0
    %v1441 = vadd.f32 0.0, %v1440
    %v1442 = vpop.f32.mrf.mxu0
    %v1443 = vpop.f32.mrf.mxu0
    %v1444 = vadd.f32 0.0, %v1443
    %v1445 = vpop.f32.mrf.mxu0
    %1446 = vdwg.mxu0
    %v1448 = vsel %vm1174, %v1353, 0
    %1450 = vmatprep.subr.bf16.mxu0 0
    %1451 = vmatpush1.bf16.msra.mxu0 0
    %1452 = vmatprep.subr.bf16.mxu0 0
    %1453 = vmatpush1.bf16.msra.mxu0 0
    %1454 = vmatprep.subr.bf16.mxu0 0
    %1455 = vmatpush1.bf16.msra.mxu0 0
    %1456 = vmatprep.subr.bf16.mxu0 0
    %1457 = vmatpush1.bf16.msra.mxu0 0
    %1458 = vmatprep.subr.bf16.mxu0 0
    %1459 = vmatpush1.bf16.msra.mxu0 0
    %1460 = vmatprep.subr.bf16.mxu0 0
    %1461 = vmatpush1.bf16.msra.mxu0 0
    %1462 = vmatprep.subr.bf16.mxu0 0
    %1463 = vmatpush1.bf16.msra.mxu0 0
    %1464 = vmatprep.subr.bf16.mxu0 0
    %1465 = vmatpush1.bf16.msra.mxu0 %v780
    %1466 = vmatprep.subr.bf16.mxu0 0
    %1467 = vmatpush2.bf16.msra.mxu0 0
    %1468 = vmatprep.subr.bf16.mxu0 0
    %1469 = vmatpush2.bf16.msra.mxu0 0
    %1470 = vmatprep.subr.bf16.mxu0 0
    %1471 = vmatpush2.bf16.msra.mxu0 0
    %1472 = vmatprep.subr.bf16.mxu0 0
    %1473 = vmatpush2.bf16.msra.mxu0 0
    %1474 = vmatprep.subr.bf16.mxu0 0
    %1475 = vmatpush2.bf16.msra.mxu0 0
    %1476 = vmatprep.subr.bf16.mxu0 0
    %1477 = vmatpush2.bf16.msra.mxu0 0
    %1478 = vmatprep.subr.bf16.mxu0 0
    %1479 = vmatpush2.bf16.msra.mxu0 0
    %1480 = vmatprep.subr.bf16.mxu0 0
    %1481 = vmatpush2.bf16.msra.mxu0 0
    %1482 = vmatprep.mubr.bf16.mxu0 0
    %1483 = vmatmul.mubr.bf16.gmra.mxu0 %v1448
    %v1484 = vpop.f32.mrf.mxu0
    %v1485 = vadd.f32 0.0, %v1484
    %v1486 = vpop.f32.mrf.mxu0
    %v1487 = vpop.f32.mrf.mxu0
    %v1488 = vadd.f32 0.0, %v1487
    %v1489 = vpop.f32.mrf.mxu0
    %1490 = vdwg.mxu0
    %v1492 = vsel %vm1174, %v1354, 0
    %1494 = vmatprep.subr.bf16.mxu0 0
    %1495 = vmatpush1.bf16.msra.mxu0 0
    %1496 = vmatprep.subr.bf16.mxu0 0
    %1497 = vmatpush1.bf16.msra.mxu0 0
    %1498 = vmatprep.subr.bf16.mxu0 0
    %1499 = vmatpush1.bf16.msra.mxu0 0
    %1500 = vmatprep.subr.bf16.mxu0 0
    %1501 = vmatpush1.bf16.msra.mxu0 0
    %1502 = vmatprep.subr.bf16.mxu0 0
    %1503 = vmatpush1.bf16.msra.mxu0 0
    %1504 = vmatprep.subr.bf16.mxu0 0
    %1505 = vmatpush1.bf16.msra.mxu0 0
    %1506 = vmatprep.subr.bf16.mxu0 0
    %1507 = vmatpush1.bf16.msra.mxu0 0
    %1508 = vmatprep.subr.bf16.mxu0 0
    %1509 = vmatpush1.bf16.msra.mxu0 %v782
    %1510 = vmatprep.subr.bf16.mxu0 0
    %1511 = vmatpush2.bf16.msra.mxu0 0
    %1512 = vmatprep.subr.bf16.mxu0 0
    %1513 = vmatpush2.bf16.msra.mxu0 0
    %1514 = vmatprep.subr.bf16.mxu0 0
    %1515 = vmatpush2.bf16.msra.mxu0 0
    %1516 = vmatprep.subr.bf16.mxu0 0
    %1517 = vmatpush2.bf16.msra.mxu0 0
    %1518 = vmatprep.subr.bf16.mxu0 0
    %1519 = vmatpush2.bf16.msra.mxu0 0
    %1520 = vmatprep.subr.bf16.mxu0 0
    %1521 = vmatpush2.bf16.msra.mxu0 0
    %1522 = vmatprep.subr.bf16.mxu0 0
    %1523 = vmatpush2.bf16.msra.mxu0 0
    %1524 = vmatprep.subr.bf16.mxu0 0
    %1525 = vmatpush2.bf16.msra.mxu0 0
    %1526 = vmatprep.mubr.bf16.mxu0 0
    %1527 = vmatmul.mubr.bf16.gmra.mxu0 %v1492
    %v1528 = vpop.f32.mrf.mxu0
    %v1529 = vadd.f32 0.0, %v1528
    %v1530 = vpop.f32.mrf.mxu0
    %v1531 = vpop.f32.mrf.mxu0
    %v1532 = vadd.f32 0.0, %v1531
    %v1533 = vpop.f32.mrf.mxu0
    %1534 = vdwg.mxu0
    %v1536 = vsel %vm1174, %v1355, 0
    %1538 = vmatprep.subr.bf16.mxu0 0
    %1539 = vmatpush1.bf16.msra.mxu0 0
    %1540 = vmatprep.subr.bf16.mxu0 0
    %1541 = vmatpush1.bf16.msra.mxu0 0
    %1542 = vmatprep.subr.bf16.mxu0 0
    %1543 = vmatpush1.bf16.msra.mxu0 0
    %1544 = vmatprep.subr.bf16.mxu0 0
    %1545 = vmatpush1.bf16.msra.mxu0 0
    %1546 = vmatprep.subr.bf16.mxu0 0
    %1547 = vmatpush1.bf16.msra.mxu0 0
    %1548 = vmatprep.subr.bf16.mxu0 0
    %1549 = vmatpush1.bf16.msra.mxu0 0
    %1550 = vmatprep.subr.bf16.mxu0 0
    %1551 = vmatpush1.bf16.msra.mxu0 0
    %1552 = vmatprep.subr.bf16.mxu0 0
    %1553 = vmatpush1.bf16.msra.mxu0 %v786
    %1554 = vmatprep.subr.bf16.mxu0 0
    %1555 = vmatpush2.bf16.msra.mxu0 0
    %1556 = vmatprep.subr.bf16.mxu0 0
    %1557 = vmatpush2.bf16.msra.mxu0 0
    %1558 = vmatprep.subr.bf16.mxu0 0
    %1559 = vmatpush2.bf16.msra.mxu0 0
    %1560 = vmatprep.subr.bf16.mxu0 0
    %1561 = vmatpush2.bf16.msra.mxu0 0
    %1562 = vmatprep.subr.bf16.mxu0 0
    %1563 = vmatpush2.bf16.msra.mxu0 0
    %1564 = vmatprep.subr.bf16.mxu0 0
    %1565 = vmatpush2.bf16.msra.mxu0 0
    %1566 = vmatprep.subr.bf16.mxu0 0
    %1567 = vmatpush2.bf16.msra.mxu0 0
    %1568 = vmatprep.subr.bf16.mxu0 0
    %1569 = vmatpush2.bf16.msra.mxu0 0
    %1570 = vmatprep.mubr.bf16.mxu0 0
    %1571 = vmatmul.mubr.bf16.gmra.mxu0 %v1536
    %v1572 = vpop.f32.mrf.mxu0
    %v1573 = vadd.f32 0.0, %v1572
    %v1574 = vpop.f32.mrf.mxu0
    %v1575 = vpop.f32.mrf.mxu0
    %v1576 = vadd.f32 0.0, %v1575
    %v1577 = vpop.f32.mrf.mxu0
    %1578 = vdwg.mxu0
    %v1580 = vsel %vm1174, %v1356, 0
    %1582 = vmatprep.subr.bf16.mxu0 0
    %1583 = vmatpush1.bf16.msra.mxu0 0
    %1584 = vmatprep.subr.bf16.mxu0 0
    %1585 = vmatpush1.bf16.msra.mxu0 0
    %1586 = vmatprep.subr.bf16.mxu0 0
    %1587 = vmatpush1.bf16.msra.mxu0 0
    %1588 = vmatprep.subr.bf16.mxu0 0
    %1589 = vmatpush1.bf16.msra.mxu0 0
    %1590 = vmatprep.subr.bf16.mxu0 0
    %1591 = vmatpush1.bf16.msra.mxu0 0
    %1592 = vmatprep.subr.bf16.mxu0 0
    %1593 = vmatpush1.bf16.msra.mxu0 0
    %1594 = vmatprep.subr.bf16.mxu0 0
    %1595 = vmatpush1.bf16.msra.mxu0 0
    %1596 = vmatprep.subr.bf16.mxu0 0
    %1597 = vmatpush1.bf16.msra.mxu0 %v788
    %1598 = vmatprep.subr.bf16.mxu0 0
    %1599 = vmatpush2.bf16.msra.mxu0 0
    %1600 = vmatprep.subr.bf16.mxu0 0
    %1601 = vmatpush2.bf16.msra.mxu0 0
    %1602 = vmatprep.subr.bf16.mxu0 0
    %1603 = vmatpush2.bf16.msra.mxu0 0
    %1604 = vmatprep.subr.bf16.mxu0 0
    %1605 = vmatpush2.bf16.msra.mxu0 0
    %1606 = vmatprep.subr.bf16.mxu0 0
    %1607 = vmatpush2.bf16.msra.mxu0 0
    %1608 = vmatprep.subr.bf16.mxu0 0
    %1609 = vmatpush2.bf16.msra.mxu0 0
    %1610 = vmatprep.subr.bf16.mxu0 0
    %1611 = vmatpush2.bf16.msra.mxu0 0
    %1612 = vmatprep.subr.bf16.mxu0 0
    %1613 = vmatpush2.bf16.msra.mxu0 0
    %1614 = vmatprep.mubr.bf16.mxu0 0
    %1615 = vmatmul.mubr.bf16.gmra.mxu0 %v1580
    %v1616 = vpop.f32.mrf.mxu0
    %v1617 = vadd.f32 0.0, %v1616
    %v1618 = vpop.f32.mrf.mxu0
    %v1619 = vpop.f32.mrf.mxu0
    %v1620 = vadd.f32 0.0, %v1619
    %v1621 = vpop.f32.mrf.mxu0
    %1622 = vdwg.mxu0
    %v1624 = vsel %vm1174, %v1357, 0
    %1626 = vmatprep.subr.bf16.mxu0 0
    %1627 = vmatpush1.bf16.msra.mxu0 0
    %1628 = vmatprep.subr.bf16.mxu0 0
    %1629 = vmatpush1.bf16.msra.mxu0 0
    %1630 = vmatprep.subr.bf16.mxu0 0
    %1631 = vmatpush1.bf16.msra.mxu0 0
    %1632 = vmatprep.subr.bf16.mxu0 0
    %1633 = vmatpush1.bf16.msra.mxu0 0
    %1634 = vmatprep.subr.bf16.mxu0 0
    %1635 = vmatpush1.bf16.msra.mxu0 0
    %1636 = vmatprep.subr.bf16.mxu0 0
    %1637 = vmatpush1.bf16.msra.mxu0 0
    %1638 = vmatprep.subr.bf16.mxu0 0
    %1639 = vmatpush1.bf16.msra.mxu0 0
    %1640 = vmatprep.subr.bf16.mxu0 0
    %1641 = vmatpush1.bf16.msra.mxu0 %v792
    %1642 = vmatprep.subr.bf16.mxu0 0
    %1643 = vmatpush2.bf16.msra.mxu0 0
    %1644 = vmatprep.subr.bf16.mxu0 0
    %1645 = vmatpush2.bf16.msra.mxu0 0
    %1646 = vmatprep.subr.bf16.mxu0 0
    %1647 = vmatpush2.bf16.msra.mxu0 0
    %1648 = vmatprep.subr.bf16.mxu0 0
    %1649 = vmatpush2.bf16.msra.mxu0 0
    %1650 = vmatprep.subr.bf16.mxu0 0
    %1651 = vmatpush2.bf16.msra.mxu0 0
    %1652 = vmatprep.subr.bf16.mxu0 0
    %1653 = vmatpush2.bf16.msra.mxu0 0
    %1654 = vmatprep.subr.bf16.mxu0 0
    %1655 = vmatpush2.bf16.msra.mxu0 0
    %1656 = vmatprep.subr.bf16.mxu0 0
    %1657 = vmatpush2.bf16.msra.mxu0 0
    %1658 = vmatprep.mubr.bf16.mxu0 0
    %1659 = vmatmul.mubr.bf16.gmra.mxu0 %v1624
    %v1660 = vpop.f32.mrf.mxu0
    %v1661 = vadd.f32 0.0, %v1660
    %v1662 = vpop.f32.mrf.mxu0
    %v1663 = vpop.f32.mrf.mxu0
    %v1664 = vadd.f32 0.0, %v1663
    %v1665 = vpop.f32.mrf.mxu0
    %1666 = vdwg.mxu0
    %v1668 = vsel %vm1174, %v1358, 0
    %1670 = vmatprep.subr.bf16.mxu0 0
    %1671 = vmatpush1.bf16.msra.mxu0 0
    %1672 = vmatprep.subr.bf16.mxu0 0
    %1673 = vmatpush1.bf16.msra.mxu0 0
    %1674 = vmatprep.subr.bf16.mxu0 0
    %1675 = vmatpush1.bf16.msra.mxu0 0
    %1676 = vmatprep.subr.bf16.mxu0 0
    %1677 = vmatpush1.bf16.msra.mxu0 0
    %1678 = vmatprep.subr.bf16.mxu0 0
    %1679 = vmatpush1.bf16.msra.mxu0 0
    %1680 = vmatprep.subr.bf16.mxu0 0
    %1681 = vmatpush1.bf16.msra.mxu0 0
    %1682 = vmatprep.subr.bf16.mxu0 0
    %1683 = vmatpush1.bf16.msra.mxu0 0
    %1684 = vmatprep.subr.bf16.mxu0 0
    %1685 = vmatpush1.bf16.msra.mxu0 %v794
    %1686 = vmatprep.subr.bf16.mxu0 0
    %1687 = vmatpush2.bf16.msra.mxu0 0
    %1688 = vmatprep.subr.bf16.mxu0 0
    %1689 = vmatpush2.bf16.msra.mxu0 0
    %1690 = vmatprep.subr.bf16.mxu0 0
    %1691 = vmatpush2.bf16.msra.mxu0 0
    %1692 = vmatprep.subr.bf16.mxu0 0
    %1693 = vmatpush2.bf16.msra.mxu0 0
    %1694 = vmatprep.subr.bf16.mxu0 0
    %1695 = vmatpush2.bf16.msra.mxu0 0
    %1696 = vmatprep.subr.bf16.mxu0 0
    %1697 = vmatpush2.bf16.msra.mxu0 0
    %1698 = vmatprep.subr.bf16.mxu0 0
    %1699 = vmatpush2.bf16.msra.mxu0 0
    %1700 = vmatprep.subr.bf16.mxu0 0
    %1701 = vmatpush2.bf16.msra.mxu0 0
    %1702 = vmatprep.mubr.bf16.mxu0 0
    %1703 = vmatmul.mubr.bf16.gmra.mxu0 %v1668
    %v1704 = vpop.f32.mrf.mxu0
    %v1705 = vadd.f32 0.0, %v1704
    %v1706 = vpop.f32.mrf.mxu0
    %v1707 = vpop.f32.mrf.mxu0
    %v1708 = vadd.f32 0.0, %v1707
    %v1709 = vpop.f32.mrf.mxu0
    %1710 = vdwg.mxu0
    %v1711 = vpack.c.bf16 %v1400, %v1397
    %v1712 = vpack.c.bf16 %v1444, %v1441
    %v1713 = vpack.c.bf16 %v1488, %v1485
    %v1714 = vpack.c.bf16 %v1532, %v1529
    %v1715 = vpack.c.bf16 %v1576, %v1573
    %v1716 = vpack.c.bf16 %v1620, %v1617
    %v1717 = vpack.c.bf16 %v1664, %v1661
    %v1718 = vpack.c.bf16 %v1708, %v1705
    %v1719 = vld [vmem:[#allocation10] sm:$0xf]
    %v1720 = vld [vmem:[#allocation10 + $0x4] sm:$0xf]
    %v1721 = vld [vmem:[#allocation10 + $0x8] sm:$0xf]
    %v1722 = vld [vmem:[#allocation10 + $0xc] sm:$0xf]
    %v1723 = vld [vmem:[#allocation10 + $0x10] sm:$0xf]
    %v1724 = vld [vmem:[#allocation10 + $0x14] sm:$0xf]
    %v1725 = vld [vmem:[#allocation10 + $0x18] sm:$0xf]
    %v1726 = vld [vmem:[#allocation10 + $0x1c] sm:$0xf]
    %v1727 = vld [vmem:[#allocation10 + $0x20] sm:$0xf]
    %v1728 = vld [vmem:[#allocation10 + $0x24] sm:$0xf]
    %v1729 = vld [vmem:[#allocation10 + $0x28] sm:$0xf]
    %v1730 = vld [vmem:[#allocation10 + $0x2c] sm:$0xf]
    %v1731 = vld [vmem:[#allocation10 + $0x30] sm:$0xf]
    %v1732 = vld [vmem:[#allocation10 + $0x34] sm:$0xf]
    %v1733 = vld [vmem:[#allocation10 + $0x38] sm:$0xf]
    %v1734 = vld [vmem:[#allocation10 + $0x3c] sm:$0xf]
    %v1739 = vunpack.c.l.b16 %v1719
    %v1740 = vunpack.c.l.b16 %v1720
    %v1741 = vunpack.c.l.b16 %v1721
    %v1742 = vunpack.c.l.b16 %v1722
    %v1743 = vpack.c.b16 %v1740, %v1739
    %v1744 = vpack.c.b16 %v1742, %v1741
    %v1748 = vsel %vm797, %v1711, 0
    %v1751 = vsel %vm797, %v1712, 0
    %1753 = vmatprep.subr.bf16.mxu0 0
    %1754 = vmatpush1.bf16.msra.mxu0 0
    %1755 = vmatprep.subr.bf16.mxu0 0
    %1756 = vmatpush1.bf16.msra.mxu0 0
    %1757 = vmatprep.subr.bf16.mxu0 0
    %1758 = vmatpush1.bf16.msra.mxu0 0
    %1759 = vmatprep.subr.bf16.mxu0 0
    %1760 = vmatpush1.bf16.msra.mxu0 0
    %1761 = vmatprep.subr.bf16.mxu0 0
    %1762 = vmatpush1.bf16.msra.mxu0 0
    %1763 = vmatprep.subr.bf16.mxu0 0
    %1764 = vmatpush1.bf16.msra.mxu0 0
    %1765 = vmatprep.subr.bf16.mxu0 0
    %1766 = vmatpush1.bf16.msra.mxu0 %v1744
    %1767 = vmatprep.subr.bf16.mxu0 0
    %1768 = vmatpush1.bf16.msra.mxu0 %v1743
    %1769 = vmatprep.subr.bf16.mxu0 0
    %1770 = vmatpush2.bf16.msra.mxu0 0
    %1771 = vmatprep.subr.bf16.mxu0 0
    %1772 = vmatpush2.bf16.msra.mxu0 0
    %1773 = vmatprep.subr.bf16.mxu0 0
    %1774 = vmatpush2.bf16.msra.mxu0 0
    %1775 = vmatprep.subr.bf16.mxu0 0
    %1776 = vmatpush2.bf16.msra.mxu0 0
    %1777 = vmatprep.subr.bf16.mxu0 0
    %1778 = vmatpush2.bf16.msra.mxu0 0
    %1779 = vmatprep.subr.bf16.mxu0 0
    %1780 = vmatpush2.bf16.msra.mxu0 0
    %1781 = vmatprep.subr.bf16.mxu0 0
    %1782 = vmatpush2.bf16.msra.mxu0 0
    %1783 = vmatprep.subr.bf16.mxu0 0
    %1784 = vmatpush2.bf16.msra.mxu0 0
    %1785 = vmatprep.mubr.bf16.mxu0 0
    %1786 = vmatmul.mubr.bf16.gmra.mxu0 %v1748
    %v1787 = vpop.f32.mrf.mxu0
    %v1788 = vadd.f32 0.0, %v1787
    %v1789 = vpop.f32.mrf.mxu0
    %v1790 = vpop.f32.mrf.mxu0
    %v1791 = vadd.f32 0.0, %v1790
    %v1792 = vpop.f32.mrf.mxu0
    %1793 = vmatprep.mubr.bf16.mxu0 0
    %1794 = vmatmul.mubr.bf16.gmra.mxu0 %v1751
    %v1795 = vpop.f32.mrf.mxu0
    %v1796 = vadd.f32 0.0, %v1795
    %v1797 = vpop.f32.mrf.mxu0
    %v1798 = vpop.f32.mrf.mxu0
    %v1799 = vadd.f32 0.0, %v1798
    %v1800 = vpop.f32.mrf.mxu0
    %1801 = vdwg.mxu0
    %v1806 = vunpack.c.l.b16 %v1723
    %v1807 = vunpack.c.l.b16 %v1724
    %v1808 = vunpack.c.l.b16 %v1725
    %v1809 = vunpack.c.l.b16 %v1726
    %v1810 = vpack.c.b16 %v1807, %v1806
    %v1811 = vpack.c.b16 %v1809, %v1808
    %v1815 = vsel %vm797, %v1713, 0
    %v1818 = vsel %vm797, %v1714, 0
    %1820 = vmatprep.subr.bf16.mxu0 0
    %1821 = vmatpush1.bf16.msra.mxu0 0
    %1822 = vmatprep.subr.bf16.mxu0 0
    %1823 = vmatpush1.bf16.msra.mxu0 0
    %1824 = vmatprep.subr.bf16.mxu0 0
    %1825 = vmatpush1.bf16.msra.mxu0 0
    %1826 = vmatprep.subr.bf16.mxu0 0
    %1827 = vmatpush1.bf16.msra.mxu0 0
    %1828 = vmatprep.subr.bf16.mxu0 0
    %1829 = vmatpush1.bf16.msra.mxu0 0
    %1830 = vmatprep.subr.bf16.mxu0 0
    %1831 = vmatpush1.bf16.msra.mxu0 0
    %1832 = vmatprep.subr.bf16.mxu0 0
    %1833 = vmatpush1.bf16.msra.mxu0 %v1811
    %1834 = vmatprep.subr.bf16.mxu0 0
    %1835 = vmatpush1.bf16.msra.mxu0 %v1810
    %1836 = vmatprep.subr.bf16.mxu0 0
    %1837 = vmatpush2.bf16.msra.mxu0 0
    %1838 = vmatprep.subr.bf16.mxu0 0
    %1839 = vmatpush2.bf16.msra.mxu0 0
    %1840 = vmatprep.subr.bf16.mxu0 0
    %1841 = vmatpush2.bf16.msra.mxu0 0
    %1842 = vmatprep.subr.bf16.mxu0 0
    %1843 = vmatpush2.bf16.msra.mxu0 0
    %1844 = vmatprep.subr.bf16.mxu0 0
    %1845 = vmatpush2.bf16.msra.mxu0 0
    %1846 = vmatprep.subr.bf16.mxu0 0
    %1847 = vmatpush2.bf16.msra.mxu0 0
    %1848 = vmatprep.subr.bf16.mxu0 0
    %1849 = vmatpush2.bf16.msra.mxu0 0
    %1850 = vmatprep.subr.bf16.mxu0 0
    %1851 = vmatpush2.bf16.msra.mxu0 0
    %1852 = vmatprep.mubr.bf16.mxu0 0
    %1853 = vmatmul.mubr.bf16.gmra.mxu0 %v1815
    %v1854 = vpop.f32.mrf.mxu0
    %v1855 = vadd.f32 0.0, %v1854
    %v1856 = vpop.f32.mrf.mxu0
    %v1857 = vpop.f32.mrf.mxu0
    %v1858 = vadd.f32 0.0, %v1857
    %v1859 = vpop.f32.mrf.mxu0
    %1860 = vmatprep.mubr.bf16.mxu0 0
    %1861 = vmatmul.mubr.bf16.gmra.mxu0 %v1818
    %v1862 = vpop.f32.mrf.mxu0
    %v1863 = vadd.f32 0.0, %v1862
    %v1864 = vpop.f32.mrf.mxu0
    %v1865 = vpop.f32.mrf.mxu0
    %v1866 = vadd.f32 0.0, %v1865
    %v1867 = vpop.f32.mrf.mxu0
    %1868 = vdwg.mxu0
    %v1873 = vunpack.c.l.b16 %v1727
    %v1874 = vunpack.c.l.b16 %v1728
    %v1875 = vunpack.c.l.b16 %v1729
    %v1876 = vunpack.c.l.b16 %v1730
    %v1877 = vpack.c.b16 %v1874, %v1873
    %v1878 = vpack.c.b16 %v1876, %v1875
    %v1882 = vsel %vm797, %v1715, 0
    %v1885 = vsel %vm797, %v1716, 0
    %1887 = vmatprep.subr.bf16.mxu0 0
    %1888 = vmatpush1.bf16.msra.mxu0 0
    %1889 = vmatprep.subr.bf16.mxu0 0
    %1890 = vmatpush1.bf16.msra.mxu0 0
    %1891 = vmatprep.subr.bf16.mxu0 0
    %1892 = vmatpush1.bf16.msra.mxu0 0
    %1893 = vmatprep.subr.bf16.mxu0 0
    %1894 = vmatpush1.bf16.msra.mxu0 0
    %1895 = vmatprep.subr.bf16.mxu0 0
    %1896 = vmatpush1.bf16.msra.mxu0 0
    %1897 = vmatprep.subr.bf16.mxu0 0
    %1898 = vmatpush1.bf16.msra.mxu0 0
    %1899 = vmatprep.subr.bf16.mxu0 0
    %1900 = vmatpush1.bf16.msra.mxu0 %v1878
    %1901 = vmatprep.subr.bf16.mxu0 0
    %1902 = vmatpush1.bf16.msra.mxu0 %v1877
    %1903 = vmatprep.subr.bf16.mxu0 0
    %1904 = vmatpush2.bf16.msra.mxu0 0
    %1905 = vmatprep.subr.bf16.mxu0 0
    %1906 = vmatpush2.bf16.msra.mxu0 0
    %1907 = vmatprep.subr.bf16.mxu0 0
    %1908 = vmatpush2.bf16.msra.mxu0 0
    %1909 = vmatprep.subr.bf16.mxu0 0
    %1910 = vmatpush2.bf16.msra.mxu0 0
    %1911 = vmatprep.subr.bf16.mxu0 0
    %1912 = vmatpush2.bf16.msra.mxu0 0
    %1913 = vmatprep.subr.bf16.mxu0 0
    %1914 = vmatpush2.bf16.msra.mxu0 0
    %1915 = vmatprep.subr.bf16.mxu0 0
    %1916 = vmatpush2.bf16.msra.mxu0 0
    %1917 = vmatprep.subr.bf16.mxu0 0
    %1918 = vmatpush2.bf16.msra.mxu0 0
    %1919 = vmatprep.mubr.bf16.mxu0 0
    %1920 = vmatmul.mubr.bf16.gmra.mxu0 %v1882
    %v1921 = vpop.f32.mrf.mxu0
    %v1922 = vadd.f32 0.0, %v1921
    %v1923 = vpop.f32.mrf.mxu0
    %v1924 = vpop.f32.mrf.mxu0
    %v1925 = vadd.f32 0.0, %v1924
    %v1926 = vpop.f32.mrf.mxu0
    %1927 = vmatprep.mubr.bf16.mxu0 0
    %1928 = vmatmul.mubr.bf16.gmra.mxu0 %v1885
    %v1929 = vpop.f32.mrf.mxu0
    %v1930 = vadd.f32 0.0, %v1929
    %v1931 = vpop.f32.mrf.mxu0
    %v1932 = vpop.f32.mrf.mxu0
    %v1933 = vadd.f32 0.0, %v1932
    %v1934 = vpop.f32.mrf.mxu0
    %1935 = vdwg.mxu0
    %v1940 = vunpack.c.l.b16 %v1731
    %v1941 = vunpack.c.l.b16 %v1732
    %v1942 = vunpack.c.l.b16 %v1733
    %v1943 = vunpack.c.l.b16 %v1734
    %v1944 = vpack.c.b16 %v1941, %v1940
    %v1945 = vpack.c.b16 %v1943, %v1942
    %v1949 = vsel %vm797, %v1717, 0
    %v1952 = vsel %vm797, %v1718, 0
    %1954 = vmatprep.subr.bf16.mxu0 0
    %1955 = vmatpush1.bf16.msra.mxu0 0
    %1956 = vmatprep.subr.bf16.mxu0 0
    %1957 = vmatpush1.bf16.msra.mxu0 0
    %1958 = vmatprep.subr.bf16.mxu0 0
    %1959 = vmatpush1.bf16.msra.mxu0 0
    %1960 = vmatprep.subr.bf16.mxu0 0
    %1961 = vmatpush1.bf16.msra.mxu0 0
    %1962 = vmatprep.subr.bf16.mxu0 0
    %1963 = vmatpush1.bf16.msra.mxu0 0
    %1964 = vmatprep.subr.bf16.mxu0 0
    %1965 = vmatpush1.bf16.msra.mxu0 0
    %1966 = vmatprep.subr.bf16.mxu0 0
    %1967 = vmatpush1.bf16.msra.mxu0 %v1945
    %1968 = vmatprep.subr.bf16.mxu0 0
    %1969 = vmatpush1.bf16.msra.mxu0 %v1944
    %1970 = vmatprep.subr.bf16.mxu0 0
    %1971 = vmatpush2.bf16.msra.mxu0 0
    %1972 = vmatprep.subr.bf16.mxu0 0
    %1973 = vmatpush2.bf16.msra.mxu0 0
    %1974 = vmatprep.subr.bf16.mxu0 0
    %1975 = vmatpush2.bf16.msra.mxu0 0
    %1976 = vmatprep.subr.bf16.mxu0 0
    %1977 = vmatpush2.bf16.msra.mxu0 0
    %1978 = vmatprep.subr.bf16.mxu0 0
    %1979 = vmatpush2.bf16.msra.mxu0 0
    %1980 = vmatprep.subr.bf16.mxu0 0
    %1981 = vmatpush2.bf16.msra.mxu0 0
    %1982 = vmatprep.subr.bf16.mxu0 0
    %1983 = vmatpush2.bf16.msra.mxu0 0
    %1984 = vmatprep.subr.bf16.mxu0 0
    %1985 = vmatpush2.bf16.msra.mxu0 0
    %1986 = vmatprep.mubr.bf16.mxu0 0
    %1987 = vmatmul.mubr.bf16.gmra.mxu0 %v1949
    %v1988 = vpop.f32.mrf.mxu0
    %v1989 = vadd.f32 0.0, %v1988
    %v1990 = vpop.f32.mrf.mxu0
    %v1991 = vpop.f32.mrf.mxu0
    %v1992 = vadd.f32 0.0, %v1991
    %v1993 = vpop.f32.mrf.mxu0
    %1994 = vmatprep.mubr.bf16.mxu0 0
    %1995 = vmatmul.mubr.bf16.gmra.mxu0 %v1952
    %v1996 = vpop.f32.mrf.mxu0
    %v1997 = vadd.f32 0.0, %v1996
    %v1998 = vpop.f32.mrf.mxu0
    %v1999 = vpop.f32.mrf.mxu0
    %v2000 = vadd.f32 0.0, %v1999
    %v2001 = vpop.f32.mrf.mxu0
    %2002 = vdwg.mxu0
    %v2003 = vadd.f32 %v1788, %v1855
    %v2004 = vadd.f32 %v2003, %v1922
    %v2005 = vadd.f32 %v2004, %v1989
    %v2006 = vadd.f32 %v1791, %v1858
    %v2007 = vadd.f32 %v2006, %v1925
    %v2008 = vadd.f32 %v2007, %v1992
    %v2009 = vadd.f32 %v1796, %v1863
    %v2010 = vadd.f32 %v2009, %v1930
    %v2011 = vadd.f32 %v2010, %v1997
    %v2012 = vadd.f32 %v1799, %v1866
    %v2013 = vadd.f32 %v2012, %v1933
    %v2014 = vadd.f32 %v2013, %v2000
    %v2015 = vadd.f32 %v381, %v2005
    %v2016 = vadd.f32 %v384, %v2008
    %v2017 = vadd.f32 %v389, %v2011
    %v2018 = vadd.f32 %v392, %v2014
    %v2019 = vld [vmem:[%s10] sm:$0x1]
    %v2021 = vlaneseq
    %v2022 = vshrl.u32 %v2021, 7
    %v2023 = vsub.s32 0, %v2022
    %v2024 = vrot.slane %v2019, %v2023
    %v2026 = vadd.f32 %v2015, %v2024
    %v2027 = vadd.f32 %v2016, %v2024
    %v2028 = vadd.f32 %v2017, %v2024
    %v2029 = vadd.f32 %v2018, %v2024
    %v2030 = vld [vmem:[%s11] sm:$0x1]
    %v2031 = vld [vmem:[%s12] sm:$0x1]
    %2032 = vadd.xlane.f32.xlu0 %v2026
    %v2033 = vpop.xlane.xlu0 %2032
    %2034 = vadd.xlane.f32.xlu0 %v2027
    %v2035 = vpop.xlane.xlu0 %2034
    %2036 = vadd.xlane.f32.xlu0 %v2028
    %v2037 = vpop.xlane.xlu0 %2036
    %2038 = vadd.xlane.f32.xlu0 %v2029
    %v2039 = vpop.xlane.xlu0 %2038
    %v2040 = vmul.f32 %v2033, %v405
    %v2041 = vmul.f32 %v2035, %v405
    %v2042 = vmul.f32 %v2037, %v405
    %v2043 = vmul.f32 %v2039, %v405
    %v2044 = vsub.f32 %v2026, %v2040
    %v2045 = vsub.f32 %v2027, %v2041
    %v2046 = vsub.f32 %v2028, %v2042
    %v2047 = vsub.f32 %v2029, %v2043
    %v2048 = vmul.f32 %v2044, %v2044
    %v2049 = vmul.f32 %v2045, %v2045
    %v2050 = vmul.f32 %v2046, %v2046
    %v2051 = vmul.f32 %v2047, %v2047
    %2052 = vadd.xlane.f32.xlu0 %v2048
    %v2053 = vpop.xlane.xlu0 %2052
    %2054 = vadd.xlane.f32.xlu0 %v2049
    %v2055 = vpop.xlane.xlu0 %2054
    %2056 = vadd.xlane.f32.xlu0 %v2050
    %v2057 = vpop.xlane.xlu0 %2056
    %2058 = vadd.xlane.f32.xlu0 %v2051
    %v2059 = vpop.xlane.xlu0 %2058
    %v2060 = vmul.f32 %v2053, %v405
    %v2061 = vmul.f32 %v2055, %v405
    %v2062 = vmul.f32 %v2057, %v405
    %v2063 = vmul.f32 %v2059, %v405
    %v2064 = vadd.f32 %v2060, 1e-05
    %v2065 = vadd.f32 %v2061, 1e-05
    %v2066 = vadd.f32 %v2062, 1e-05
    %v2067 = vadd.f32 %v2063, 1e-05
    %v2068 = vrsqrt.pop %v2064
    %v2069 = vrsqrt.pop %v2065
    %v2070 = vrsqrt.pop %v2066
    %v2071 = vrsqrt.pop %v2067
    %v2072 = vmul.f32 %v2044, %v2068
    %v2073 = vmul.f32 %v2045, %v2069
    %v2074 = vmul.f32 %v2046, %v2070
    %v2075 = vmul.f32 %v2047, %v2071
    %v2077 = vlaneseq
    %v2078 = vshrl.u32 %v2077, 7
    %v2079 = vsub.s32 0, %v2078
    %v2080 = vrot.slane %v2030, %v2079
    %v2082 = vmul.f32 %v2072, %v2080
    %v2083 = vmul.f32 %v2073, %v2080
    %v2084 = vmul.f32 %v2074, %v2080
    %v2085 = vmul.f32 %v2075, %v2080
    %v2087 = vlaneseq
    %v2088 = vshrl.u32 %v2087, 7
    %v2089 = vsub.s32 0, %v2088
    %v2090 = vrot.slane %v2031, %v2089
    %v2092 = vadd.f32 %v2082, %v2090
    %v2093 = vadd.f32 %v2083, %v2090
    %v2094 = vadd.f32 %v2084, %v2090
    %v2095 = vadd.f32 %v2085, %v2090
    %v2096 = vpack.c.bf16 %v2093, %v2092
    %v2097 = vpack.c.bf16 %v2095, %v2094
    %v2098 = vld [vmem:[#allocation11] sm:$0xff]
    %v2099 = vld [vmem:[#allocation11 + $0x8] sm:$0xff]
    %v2100 = vld [vmem:[#allocation11 + $0x10] sm:$0xff]
    %v2101 = vld [vmem:[#allocation11 + $0x18] sm:$0xff]
    %v2102 = vld [vmem:[#allocation11 + $0x20] sm:$0xff]
    %v2103 = vld [vmem:[#allocation11 + $0x28] sm:$0xff]
    %v2104 = vld [vmem:[#allocation11 + $0x30] sm:$0xff]
    %v2105 = vld [vmem:[#allocation11 + $0x38] sm:$0xff]
    %v2106 = vld [vmem:[#allocation11 + $0x40] sm:$0xff]
    %v2107 = vld [vmem:[#allocation11 + $0x48] sm:$0xff]
    %v2108 = vld [vmem:[#allocation11 + $0x50] sm:$0xff]
    %v2109 = vld [vmem:[#allocation11 + $0x58] sm:$0xff]
    %v2110 = vld [vmem:[#allocation11 + $0x60] sm:$0xff]
    %v2111 = vld [vmem:[#allocation11 + $0x68] sm:$0xff]
    %v2112 = vld [vmem:[#allocation11 + $0x70] sm:$0xff]
    %v2113 = vld [vmem:[#allocation11 + $0x78] sm:$0xff]
    %v2114 = vld [vmem:[#allocation11 + $0x80] sm:$0xff]
    %v2115 = vld [vmem:[#allocation11 + $0x88] sm:$0xff]
    %v2116 = vld [vmem:[#allocation11 + $0x90] sm:$0xff]
    %v2117 = vld [vmem:[#allocation11 + $0x98] sm:$0xff]
    %v2118 = vld [vmem:[#allocation11 + $0xa0] sm:$0xff]
    %v2119 = vld [vmem:[#allocation11 + $0xa8] sm:$0xff]
    %v2120 = vld [vmem:[#allocation11 + $0xb0] sm:$0xff]
    %v2121 = vld [vmem:[#allocation11 + $0xb8] sm:$0xff]
    %v2122 = vld [vmem:[#allocation11 + $0xc0] sm:$0xff]
    %v2123 = vld [vmem:[#allocation11 + $0xc8] sm:$0xff]
    %v2124 = vld [vmem:[#allocation11 + $0xd0] sm:$0xff]
    %v2125 = vld [vmem:[#allocation11 + $0xd8] sm:$0xff]
    %v2126 = vld [vmem:[#allocation11 + $0xe0] sm:$0xff]
    %v2127 = vld [vmem:[#allocation11 + $0xe8] sm:$0xff]
    %v2128 = vld [vmem:[#allocation11 + $0xf0] sm:$0xff]
    %v2129 = vld [vmem:[#allocation11 + $0xf8] sm:$0xff]
    %v2130 = vld [vmem:[%s14] sm:$0xf]
    %v2132 = vlaneseq
    %v2133 = vshrl.u32 %v2132, 7
    %v2134 = vsub.s32 0, %v2133
    %v2135 = vrot.slane %v2130, %v2134
    %v2136 = vlaneseq
    %v2137 = vshrl.u32 %v2136, 7
    %v2138 = vsub.s32 1, %v2137
    %v2139 = vrot.slane %v2130, %v2138
    %v2140 = vlaneseq
    %v2141 = vshrl.u32 %v2140, 7
    %v2142 = vsub.s32 2, %v2141
    %v2143 = vrot.slane %v2130, %v2142
    %v2144 = vlaneseq
    %v2145 = vshrl.u32 %v2144, 7
    %v2146 = vsub.s32 3, %v2145
    %v2147 = vrot.slane %v2130, %v2146
    %v2184 = vunpack.c.l.b16 %v2098
    %v2185 = vunpack.c.h.b16 %v2098
    %v2186 = vunpack.c.l.b16 %v2099
    %v2187 = vunpack.c.h.b16 %v2099
    %v2188 = vunpack.c.l.b16 %v2100
    %v2189 = vunpack.c.h.b16 %v2100
    %v2190 = vunpack.c.l.b16 %v2101
    %v2191 = vunpack.c.h.b16 %v2101
    %v2192 = vunpack.c.l.b16 %v2102
    %v2193 = vunpack.c.h.b16 %v2102
    %v2194 = vunpack.c.l.b16 %v2103
    %v2195 = vunpack.c.h.b16 %v2103
    %v2196 = vunpack.c.l.b16 %v2104
    %v2197 = vunpack.c.h.b16 %v2104
    %v2198 = vunpack.c.l.b16 %v2105
    %v2199 = vunpack.c.h.b16 %v2105
    %v2200 = vunpack.c.l.b16 %v2106
    %v2201 = vunpack.c.h.b16 %v2106
    %v2202 = vunpack.c.l.b16 %v2107
    %v2203 = vunpack.c.h.b16 %v2107
    %v2204 = vunpack.c.l.b16 %v2108
    %v2205 = vunpack.c.h.b16 %v2108
    %v2206 = vunpack.c.l.b16 %v2109
    %v2207 = vunpack.c.h.b16 %v2109
    %v2208 = vunpack.c.l.b16 %v2110
    %v2209 = vunpack.c.h.b16 %v2110
    %v2210 = vunpack.c.l.b16 %v2111
    %v2211 = vunpack.c.h.b16 %v2111
    %v2212 = vunpack.c.l.b16 %v2112
    %v2213 = vunpack.c.h.b16 %v2112
    %v2214 = vunpack.c.l.b16 %v2113
    %v2215 = vunpack.c.h.b16 %v2113
    %v2216 = vunpack.c.l.b16 %v2114
    %v2217 = vunpack.c.h.b16 %v2114
    %v2218 = vunpack.c.l.b16 %v2115
    %v2219 = vunpack.c.h.b16 %v2115
    %v2220 = vunpack.c.l.b16 %v2116
    %v2221 = vunpack.c.h.b16 %v2116
    %v2222 = vunpack.c.l.b16 %v2117
    %v2223 = vunpack.c.h.b16 %v2117
    %v2224 = vunpack.c.l.b16 %v2118
    %v2225 = vunpack.c.h.b16 %v2118
    %v2226 = vunpack.c.l.b16 %v2119
    %v2227 = vunpack.c.h.b16 %v2119
    %v2228 = vunpack.c.l.b16 %v2120
    %v2229 = vunpack.c.h.b16 %v2120
    %v2230 = vunpack.c.l.b16 %v2121
    %v2231 = vunpack.c.h.b16 %v2121
    %v2232 = vunpack.c.l.b16 %v2122
    %v2233 = vunpack.c.h.b16 %v2122
    %v2234 = vunpack.c.l.b16 %v2123
    %v2235 = vunpack.c.h.b16 %v2123
    %v2236 = vunpack.c.l.b16 %v2124
    %v2237 = vunpack.c.h.b16 %v2124
    %v2238 = vunpack.c.l.b16 %v2125
    %v2239 = vunpack.c.h.b16 %v2125
    %v2240 = vunpack.c.l.b16 %v2126
    %v2241 = vunpack.c.h.b16 %v2126
    %v2242 = vunpack.c.l.b16 %v2127
    %v2243 = vunpack.c.h.b16 %v2127
    %v2244 = vunpack.c.l.b16 %v2128
    %v2245 = vunpack.c.h.b16 %v2128
    %v2246 = vunpack.c.l.b16 %v2129
    %v2247 = vunpack.c.h.b16 %v2129
    %v2248 = vpack.c.b16 %v2188, %v2184
    %v2249 = vpack.c.b16 %v2189, %v2185
    %v2250 = vpack.c.b16 %v2190, %v2186
    %v2251 = vpack.c.b16 %v2191, %v2187
    %v2252 = vpack.c.b16 %v2196, %v2192
    %v2253 = vpack.c.b16 %v2197, %v2193
    %v2254 = vpack.c.b16 %v2198, %v2194
    %v2255 = vpack.c.b16 %v2199, %v2195
    %v2256 = vpack.c.b16 %v2204, %v2200
    %v2257 = vpack.c.b16 %v2205, %v2201
    %v2258 = vpack.c.b16 %v2206, %v2202
    %v2259 = vpack.c.b16 %v2207, %v2203
    %v2260 = vpack.c.b16 %v2212, %v2208
    %v2261 = vpack.c.b16 %v2213, %v2209
    %v2262 = vpack.c.b16 %v2214, %v2210
    %v2263 = vpack.c.b16 %v2215, %v2211
    %v2264 = vpack.c.b16 %v2220, %v2216
    %v2265 = vpack.c.b16 %v2221, %v2217
    %v2266 = vpack.c.b16 %v2222, %v2218
    %v2267 = vpack.c.b16 %v2223, %v2219
    %v2268 = vpack.c.b16 %v2228, %v2224
    %v2269 = vpack.c.b16 %v2229, %v2225
    %v2270 = vpack.c.b16 %v2230, %v2226
    %v2271 = vpack.c.b16 %v2231, %v2227
    %v2272 = vpack.c.b16 %v2236, %v2232
    %v2273 = vpack.c.b16 %v2237, %v2233
    %v2274 = vpack.c.b16 %v2238, %v2234
    %v2275 = vpack.c.b16 %v2239, %v2235
    %v2276 = vpack.c.b16 %v2244, %v2240
    %v2277 = vpack.c.b16 %v2245, %v2241
    %v2278 = vpack.c.b16 %v2246, %v2242
    %v2279 = vpack.c.b16 %v2247, %v2243
    %2312 = vmatprep.subr.bf16.mxu0 %v2277
    %2313 = vmatpush1.bf16.msra.mxu0 %v2276
    %2314 = vmatprep.subr.bf16.mxu0 %v2273
    %2315 = vmatpush1.bf16.msra.mxu0 %v2272
    %2316 = vmatprep.subr.bf16.mxu0 %v2269
    %2317 = vmatpush1.bf16.msra.mxu0 %v2268
    %2318 = vmatprep.subr.bf16.mxu0 %v2265
    %2319 = vmatpush1.bf16.msra.mxu0 %v2264
    %2320 = vmatprep.subr.bf16.mxu0 %v2261
    %2321 = vmatpush1.bf16.msra.mxu0 %v2260
    %2322 = vmatprep.subr.bf16.mxu0 %v2257
    %2323 = vmatpush1.bf16.msra.mxu0 %v2256
    %2324 = vmatprep.subr.bf16.mxu0 %v2253
    %2325 = vmatpush1.bf16.msra.mxu0 %v2252
    %2326 = vmatprep.subr.bf16.mxu0 %v2249
    %2327 = vmatpush1.bf16.msra.mxu0 %v2248
    %2328 = vmatprep.subr.bf16.mxu0 0
    %2329 = vmatpush2.bf16.msra.mxu0 0
    %2330 = vmatprep.subr.bf16.mxu0 0
    %2331 = vmatpush2.bf16.msra.mxu0 0
    %2332 = vmatprep.subr.bf16.mxu0 0
    %2333 = vmatpush2.bf16.msra.mxu0 0
    %2334 = vmatprep.subr.bf16.mxu0 0
    %2335 = vmatpush2.bf16.msra.mxu0 0
    %2336 = vmatprep.subr.bf16.mxu0 0
    %2337 = vmatpush2.bf16.msra.mxu0 0
    %2338 = vmatprep.subr.bf16.mxu0 0
    %2339 = vmatpush2.bf16.msra.mxu0 0
    %2340 = vmatprep.subr.bf16.mxu0 0
    %2341 = vmatpush2.bf16.msra.mxu0 0
    %2342 = vmatprep.subr.bf16.mxu0 0
    %2343 = vmatpush2.bf16.msra.mxu0 0
    %2344 = vmatprep.mubr.bf16.mxu0 0
    %2345 = vmatmul.mubr.bf16.gmra.mxu0 %v2096
    %v2346 = vpop.f32.mrf.mxu0
    %v2347 = vadd.f32 %v2135, %v2346
    %v2348 = vpop.f32.mrf.mxu0
    %v2349 = vadd.f32 %v2139, %v2348
    %v2350 = vpop.f32.mrf.mxu0
    %v2351 = vadd.f32 %v2135, %v2350
    %v2352 = vpop.f32.mrf.mxu0
    %v2353 = vadd.f32 %v2139, %v2352
    %2354 = vmatprep.mubr.bf16.mxu0 0
    %2355 = vmatmul.mubr.bf16.gmra.mxu0 %v2097
    %v2356 = vpop.f32.mrf.mxu0
    %v2357 = vadd.f32 %v2135, %v2356
    %v2358 = vpop.f32.mrf.mxu0
    %v2359 = vadd.f32 %v2139, %v2358
    %v2360 = vpop.f32.mrf.mxu0
    %v2361 = vadd.f32 %v2135, %v2360
    %v2362 = vpop.f32.mrf.mxu0
    %v2363 = vadd.f32 %v2139, %v2362
    %2364 = vdwg.mxu0
    %2365 = vmatprep.subr.bf16.mxu0 %v2279
    %2366 = vmatpush1.bf16.msra.mxu0 %v2278
    %2367 = vmatprep.subr.bf16.mxu0 %v2275
    %2368 = vmatpush1.bf16.msra.mxu0 %v2274
    %2369 = vmatprep.subr.bf16.mxu0 %v2271
    %2370 = vmatpush1.bf16.msra.mxu0 %v2270
    %2371 = vmatprep.subr.bf16.mxu0 %v2267
    %2372 = vmatpush1.bf16.msra.mxu0 %v2266
    %2373 = vmatprep.subr.bf16.mxu0 %v2263
    %2374 = vmatpush1.bf16.msra.mxu0 %v2262
    %2375 = vmatprep.subr.bf16.mxu0 %v2259
    %2376 = vmatpush1.bf16.msra.mxu0 %v2258
    %2377 = vmatprep.subr.bf16.mxu0 %v2255
    %2378 = vmatpush1.bf16.msra.mxu0 %v2254
    %2379 = vmatprep.subr.bf16.mxu0 %v2251
    %2380 = vmatpush1.bf16.msra.mxu0 %v2250
    %2381 = vmatprep.subr.bf16.mxu0 0
    %2382 = vmatpush2.bf16.msra.mxu0 0
    %2383 = vmatprep.subr.bf16.mxu0 0
    %2384 = vmatpush2.bf16.msra.mxu0 0
    %2385 = vmatprep.subr.bf16.mxu0 0
    %2386 = vmatpush2.bf16.msra.mxu0 0
    %2387 = vmatprep.subr.bf16.mxu0 0
    %2388 = vmatpush2.bf16.msra.mxu0 0
    %2389 = vmatprep.subr.bf16.mxu0 0
    %2390 = vmatpush2.bf16.msra.mxu0 0
    %2391 = vmatprep.subr.bf16.mxu0 0
    %2392 = vmatpush2.bf16.msra.mxu0 0
    %2393 = vmatprep.subr.bf16.mxu0 0
    %2394 = vmatpush2.bf16.msra.mxu0 0
    %2395 = vmatprep.subr.bf16.mxu0 0
    %2396 = vmatpush2.bf16.msra.mxu0 0
    %2397 = vmatprep.mubr.bf16.mxu0 0
    %2398 = vmatmul.mubr.bf16.gmra.mxu0 %v2096
    %v2399 = vpop.f32.mrf.mxu0
    %v2400 = vadd.f32 %v2143, %v2399
    %v2401 = vpop.f32.mrf.mxu0
    %v2402 = vadd.f32 %v2147, %v2401
    %v2403 = vpop.f32.mrf.mxu0
    %v2404 = vadd.f32 %v2143, %v2403
    %v2405 = vpop.f32.mrf.mxu0
    %v2406 = vadd.f32 %v2147, %v2405
    %2407 = vmatprep.mubr.bf16.mxu0 0
    %2408 = vmatmul.mubr.bf16.gmra.mxu0 %v2097
    %v2409 = vpop.f32.mrf.mxu0
    %v2410 = vadd.f32 %v2143, %v2409
    %v2411 = vpop.f32.mrf.mxu0
    %v2412 = vadd.f32 %v2147, %v2411
    %v2413 = vpop.f32.mrf.mxu0
    %v2414 = vadd.f32 %v2143, %v2413
    %v2415 = vpop.f32.mrf.mxu0
    %v2416 = vadd.f32 %v2147, %v2415
    %2417 = vdwg.mxu0
    %v2418 = vmul.f32 %v2347, %v2347
    %v2419 = vmul.f32 %v2349, %v2349
    %v2420 = vmul.f32 %v2400, %v2400
    %v2421 = vmul.f32 %v2402, %v2402
    %v2422 = vmul.f32 %v2351, %v2351
    %v2423 = vmul.f32 %v2353, %v2353
    %v2424 = vmul.f32 %v2404, %v2404
    %v2425 = vmul.f32 %v2406, %v2406
    %v2426 = vmul.f32 %v2357, %v2357
    %v2427 = vmul.f32 %v2359, %v2359
    %v2428 = vmul.f32 %v2410, %v2410
    %v2429 = vmul.f32 %v2412, %v2412
    %v2430 = vmul.f32 %v2361, %v2361
    %v2431 = vmul.f32 %v2363, %v2363
    %v2432 = vmul.f32 %v2414, %v2414
    %v2433 = vmul.f32 %v2416, %v2416
    %v2434 = vmul.f32 %v2347, %v2418
    %v2435 = vmul.f32 %v2349, %v2419
    %v2436 = vmul.f32 %v2400, %v2420
    %v2437 = vmul.f32 %v2402, %v2421
    %v2438 = vmul.f32 %v2351, %v2422
    %v2439 = vmul.f32 %v2353, %v2423
    %v2440 = vmul.f32 %v2404, %v2424
    %v2441 = vmul.f32 %v2406, %v2425
    %v2442 = vmul.f32 %v2357, %v2426
    %v2443 = vmul.f32 %v2359, %v2427
    %v2444 = vmul.f32 %v2410, %v2428
    %v2445 = vmul.f32 %v2412, %v2429
    %v2446 = vmul.f32 %v2361, %v2430
    %v2447 = vmul.f32 %v2363, %v2431
    %v2448 = vmul.f32 %v2414, %v2432
    %v2449 = vmul.f32 %v2416, %v2433
    %v2450 = vmul.f32 %v2434, 0.044715
    %v2451 = vmul.f32 %v2435, 0.044715
    %v2452 = vmul.f32 %v2436, 0.044715
    %v2453 = vmul.f32 %v2437, 0.044715
    %v2454 = vmul.f32 %v2438, 0.044715
    %v2455 = vmul.f32 %v2439, 0.044715
    %v2456 = vmul.f32 %v2440, 0.044715
    %v2457 = vmul.f32 %v2441, 0.044715
    %v2458 = vmul.f32 %v2442, 0.044715
    %v2459 = vmul.f32 %v2443, 0.044715
    %v2460 = vmul.f32 %v2444, 0.044715
    %v2461 = vmul.f32 %v2445, 0.044715
    %v2462 = vmul.f32 %v2446, 0.044715
    %v2463 = vmul.f32 %v2447, 0.044715
    %v2464 = vmul.f32 %v2448, 0.044715
    %v2465 = vmul.f32 %v2449, 0.044715
    %v2466 = vadd.f32 %v2347, %v2450
    %v2467 = vadd.f32 %v2349, %v2451
    %v2468 = vadd.f32 %v2400, %v2452
    %v2469 = vadd.f32 %v2402, %v2453
    %v2470 = vadd.f32 %v2351, %v2454
    %v2471 = vadd.f32 %v2353, %v2455
    %v2472 = vadd.f32 %v2404, %v2456
    %v2473 = vadd.f32 %v2406, %v2457
    %v2474 = vadd.f32 %v2357, %v2458
    %v2475 = vadd.f32 %v2359, %v2459
    %v2476 = vadd.f32 %v2410, %v2460
    %v2477 = vadd.f32 %v2412, %v2461
    %v2478 = vadd.f32 %v2361, %v2462
    %v2479 = vadd.f32 %v2363, %v2463
    %v2480 = vadd.f32 %v2414, %v2464
    %v2481 = vadd.f32 %v2416, %v2465
    %v2482 = vmul.f32 %v2466, 0.7978846
    %v2483 = vmul.f32 %v2467, 0.7978846
    %v2484 = vmul.f32 %v2468, 0.7978846
    %v2485 = vmul.f32 %v2469, 0.7978846
    %v2486 = vmul.f32 %v2470, 0.7978846
    %v2487 = vmul.f32 %v2471, 0.7978846
    %v2488 = vmul.f32 %v2472, 0.7978846
    %v2489 = vmul.f32 %v2473, 0.7978846
    %v2490 = vmul.f32 %v2474, 0.7978846
    %v2491 = vmul.f32 %v2475, 0.7978846
    %v2492 = vmul.f32 %v2476, 0.7978846
    %v2493 = vmul.f32 %v2477, 0.7978846
    %v2494 = vmul.f32 %v2478, 0.7978846
    %v2495 = vmul.f32 %v2479, 0.7978846
    %v2496 = vmul.f32 %v2480, 0.7978846
    %v2497 = vmul.f32 %v2481, 0.7978846
    %v2498 = vtanh.pop %v2482
    %v2499 = vtanh.pop %v2483
    %v2500 = vtanh.pop %v2484
    %v2501 = vtanh.pop %v2485
    %v2502 = vtanh.pop %v2486
    %v2503 = vtanh.pop %v2487
    %v2504 = vtanh.pop %v2488
    %v2505 = vtanh.pop %v2489
    %v2506 = vtanh.pop %v2490
    %v2507 = vtanh.pop %v2491
    %v2508 = vtanh.pop %v2492
    %v2509 = vtanh.pop %v2493
    %v2510 = vtanh.pop %v2494
    %v2511 = vtanh.pop %v2495
    %v2512 = vtanh.pop %v2496
    %v2513 = vtanh.pop %v2497
    %v2514 = vadd.f32 %v2498, 1.0
    %v2515 = vadd.f32 %v2499, 1.0
    %v2516 = vadd.f32 %v2500, 1.0
    %v2517 = vadd.f32 %v2501, 1.0
    %v2518 = vadd.f32 %v2502, 1.0
    %v2519 = vadd.f32 %v2503, 1.0
    %v2520 = vadd.f32 %v2504, 1.0
    %v2521 = vadd.f32 %v2505, 1.0
    %v2522 = vadd.f32 %v2506, 1.0
    %v2523 = vadd.f32 %v2507, 1.0
    %v2524 = vadd.f32 %v2508, 1.0
    %v2525 = vadd.f32 %v2509, 1.0
    %v2526 = vadd.f32 %v2510, 1.0
    %v2527 = vadd.f32 %v2511, 1.0
    %v2528 = vadd.f32 %v2512, 1.0
    %v2529 = vadd.f32 %v2513, 1.0
    %v2530 = vmul.f32 %v2514, 0.5
    %v2531 = vmul.f32 %v2515, 0.5
    %v2532 = vmul.f32 %v2516, 0.5
    %v2533 = vmul.f32 %v2517, 0.5
    %v2534 = vmul.f32 %v2518, 0.5
    %v2535 = vmul.f32 %v2519, 0.5
    %v2536 = vmul.f32 %v2520, 0.5
    %v2537 = vmul.f32 %v2521, 0.5
    %v2538 = vmul.f32 %v2522, 0.5
    %v2539 = vmul.f32 %v2523, 0.5
    %v2540 = vmul.f32 %v2524, 0.5
    %v2541 = vmul.f32 %v2525, 0.5
    %v2542 = vmul.f32 %v2526, 0.5
    %v2543 = vmul.f32 %v2527, 0.5
    %v2544 = vmul.f32 %v2528, 0.5
    %v2545 = vmul.f32 %v2529, 0.5
    %v2546 = vmul.f32 %v2347, %v2530
    %v2547 = vmul.f32 %v2349, %v2531
    %v2548 = vmul.f32 %v2400, %v2532
    %v2549 = vmul.f32 %v2402, %v2533
    %v2550 = vmul.f32 %v2351, %v2534
    %v2551 = vmul.f32 %v2353, %v2535
    %v2552 = vmul.f32 %v2404, %v2536
    %v2553 = vmul.f32 %v2406, %v2537
    %v2554 = vmul.f32 %v2357, %v2538
    %v2555 = vmul.f32 %v2359, %v2539
    %v2556 = vmul.f32 %v2410, %v2540
    %v2557 = vmul.f32 %v2412, %v2541
    %v2558 = vmul.f32 %v2361, %v2542
    %v2559 = vmul.f32 %v2363, %v2543
    %v2560 = vmul.f32 %v2414, %v2544
    %v2561 = vmul.f32 %v2416, %v2545
    %v2562 = vpack.c.bf16 %v2550, %v2546
    %v2563 = vpack.c.bf16 %v2551, %v2547
    %v2564 = vpack.c.bf16 %v2552, %v2548
    %v2565 = vpack.c.bf16 %v2553, %v2549
    %v2566 = vpack.c.bf16 %v2558, %v2554
    %v2567 = vpack.c.bf16 %v2559, %v2555
    %v2568 = vpack.c.bf16 %v2560, %v2556
    %v2569 = vpack.c.bf16 %v2561, %v2557
    %v2570 = vld [vmem:[#allocation13] sm:$0xf]
    %v2571 = vld [vmem:[#allocation13 + $0x4] sm:$0xf]
    %v2572 = vld [vmem:[#allocation13 + $0x8] sm:$0xf]
    %v2573 = vld [vmem:[#allocation13 + $0xc] sm:$0xf]
    %v2574 = vld [vmem:[#allocation13 + $0x10] sm:$0xf]
    %v2575 = vld [vmem:[#allocation13 + $0x14] sm:$0xf]
    %v2576 = vld [vmem:[#allocation13 + $0x18] sm:$0xf]
    %v2577 = vld [vmem:[#allocation13 + $0x1c] sm:$0xf]
    %v2578 = vld [vmem:[#allocation13 + $0x20] sm:$0xf]
    %v2579 = vld [vmem:[#allocation13 + $0x24] sm:$0xf]
    %v2580 = vld [vmem:[#allocation13 + $0x28] sm:$0xf]
    %v2581 = vld [vmem:[#allocation13 + $0x2c] sm:$0xf]
    %v2582 = vld [vmem:[#allocation13 + $0x30] sm:$0xf]
    %v2583 = vld [vmem:[#allocation13 + $0x34] sm:$0xf]
    %v2584 = vld [vmem:[#allocation13 + $0x38] sm:$0xf]
    %v2585 = vld [vmem:[#allocation13 + $0x3c] sm:$0xf]
    %v2586 = vld [vmem:[#allocation13 + $0x40] sm:$0xf]
    %v2587 = vld [vmem:[#allocation13 + $0x44] sm:$0xf]
    %v2588 = vld [vmem:[#allocation13 + $0x48] sm:$0xf]
    %v2589 = vld [vmem:[#allocation13 + $0x4c] sm:$0xf]
    %v2590 = vld [vmem:[#allocation13 + $0x50] sm:$0xf]
    %v2591 = vld [vmem:[#allocation13 + $0x54] sm:$0xf]
    %v2592 = vld [vmem:[#allocation13 + $0x58] sm:$0xf]
    %v2593 = vld [vmem:[#allocation13 + $0x5c] sm:$0xf]
    %v2594 = vld [vmem:[#allocation13 + $0x60] sm:$0xf]
    %v2595 = vld [vmem:[#allocation13 + $0x64] sm:$0xf]
    %v2596 = vld [vmem:[#allocation13 + $0x68] sm:$0xf]
    %v2597 = vld [vmem:[#allocation13 + $0x6c] sm:$0xf]
    %v2598 = vld [vmem:[#allocation13 + $0x70] sm:$0xf]
    %v2599 = vld [vmem:[#allocation13 + $0x74] sm:$0xf]
    %v2600 = vld [vmem:[#allocation13 + $0x78] sm:$0xf]
    %v2601 = vld [vmem:[#allocation13 + $0x7c] sm:$0xf]
    %v2602 = vld [vmem:[#allocation13 + $0x80] sm:$0xf]
    %v2603 = vld [vmem:[#allocation13 + $0x84] sm:$0xf]
    %v2604 = vld [vmem:[#allocation13 + $0x88] sm:$0xf]
    %v2605 = vld [vmem:[#allocation13 + $0x8c] sm:$0xf]
    %v2606 = vld [vmem:[#allocation13 + $0x90] sm:$0xf]
    %v2607 = vld [vmem:[#allocation13 + $0x94] sm:$0xf]
    %v2608 = vld [vmem:[#allocation13 + $0x98] sm:$0xf]
    %v2609 = vld [vmem:[#allocation13 + $0x9c] sm:$0xf]
    %v2610 = vld [vmem:[#allocation13 + $0xa0] sm:$0xf]
    %v2611 = vld [vmem:[#allocation13 + $0xa4] sm:$0xf]
    %v2612 = vld [vmem:[#allocation13 + $0xa8] sm:$0xf]
    %v2613 = vld [vmem:[#allocation13 + $0xac] sm:$0xf]
    %v2614 = vld [vmem:[#allocation13 + $0xb0] sm:$0xf]
    %v2615 = vld [vmem:[#allocation13 + $0xb4] sm:$0xf]
    %v2616 = vld [vmem:[#allocation13 + $0xb8] sm:$0xf]
    %v2617 = vld [vmem:[#allocation13 + $0xbc] sm:$0xf]
    %v2618 = vld [vmem:[#allocation13 + $0xc0] sm:$0xf]
    %v2619 = vld [vmem:[#allocation13 + $0xc4] sm:$0xf]
    %v2620 = vld [vmem:[#allocation13 + $0xc8] sm:$0xf]
    %v2621 = vld [vmem:[#allocation13 + $0xcc] sm:$0xf]
    %v2622 = vld [vmem:[#allocation13 + $0xd0] sm:$0xf]
    %v2623 = vld [vmem:[#allocation13 + $0xd4] sm:$0xf]
    %v2624 = vld [vmem:[#allocation13 + $0xd8] sm:$0xf]
    %v2625 = vld [vmem:[#allocation13 + $0xdc] sm:$0xf]
    %v2626 = vld [vmem:[#allocation13 + $0xe0] sm:$0xf]
    %v2627 = vld [vmem:[#allocation13 + $0xe4] sm:$0xf]
    %v2628 = vld [vmem:[#allocation13 + $0xe8] sm:$0xf]
    %v2629 = vld [vmem:[#allocation13 + $0xec] sm:$0xf]
    %v2630 = vld [vmem:[#allocation13 + $0xf0] sm:$0xf]
    %v2631 = vld [vmem:[#allocation13 + $0xf4] sm:$0xf]
    %v2632 = vld [vmem:[#allocation13 + $0xf8] sm:$0xf]
    %v2633 = vld [vmem:[#allocation13 + $0xfc] sm:$0xf]
    %v2698 = vunpack.c.l.b16 %v2570
    %v2699 = vunpack.c.l.b16 %v2571
    %v2700 = vunpack.c.l.b16 %v2572
    %v2701 = vunpack.c.l.b16 %v2573
    %v2702 = vunpack.c.l.b16 %v2574
    %v2703 = vunpack.c.l.b16 %v2575
    %v2704 = vunpack.c.l.b16 %v2576
    %v2705 = vunpack.c.l.b16 %v2577
    %v2706 = vunpack.c.l.b16 %v2578
    %v2707 = vunpack.c.l.b16 %v2579
    %v2708 = vunpack.c.l.b16 %v2580
    %v2709 = vunpack.c.l.b16 %v2581
    %v2710 = vunpack.c.l.b16 %v2582
    %v2711 = vunpack.c.l.b16 %v2583
    %v2712 = vunpack.c.l.b16 %v2584
    %v2713 = vunpack.c.l.b16 %v2585
    %v2714 = vunpack.c.l.b16 %v2586
    %v2715 = vunpack.c.l.b16 %v2587
    %v2716 = vunpack.c.l.b16 %v2588
    %v2717 = vunpack.c.l.b16 %v2589
    %v2718 = vunpack.c.l.b16 %v2590
    %v2719 = vunpack.c.l.b16 %v2591
    %v2720 = vunpack.c.l.b16 %v2592
    %v2721 = vunpack.c.l.b16 %v2593
    %v2722 = vunpack.c.l.b16 %v2594
    %v2723 = vunpack.c.l.b16 %v2595
    %v2724 = vunpack.c.l.b16 %v2596
    %v2725 = vunpack.c.l.b16 %v2597
    %v2726 = vunpack.c.l.b16 %v2598
    %v2727 = vunpack.c.l.b16 %v2599
    %v2728 = vunpack.c.l.b16 %v2600
    %v2729 = vunpack.c.l.b16 %v2601
    %v2730 = vunpack.c.l.b16 %v2602
    %v2731 = vunpack.c.l.b16 %v2603
    %v2732 = vunpack.c.l.b16 %v2604
    %v2733 = vunpack.c.l.b16 %v2605
    %v2734 = vunpack.c.l.b16 %v2606
    %v2735 = vunpack.c.l.b16 %v2607
    %v2736 = vunpack.c.l.b16 %v2608
    %v2737 = vunpack.c.l.b16 %v2609
    %v2738 = vunpack.c.l.b16 %v2610
    %v2739 = vunpack.c.l.b16 %v2611
    %v2740 = vunpack.c.l.b16 %v2612
    %v2741 = vunpack.c.l.b16 %v2613
    %v2742 = vunpack.c.l.b16 %v2614
    %v2743 = vunpack.c.l.b16 %v2615
    %v2744 = vunpack.c.l.b16 %v2616
    %v2745 = vunpack.c.l.b16 %v2617
    %v2746 = vunpack.c.l.b16 %v2618
    %v2747 = vunpack.c.l.b16 %v2619
    %v2748 = vunpack.c.l.b16 %v2620
    %v2749 = vunpack.c.l.b16 %v2621
    %v2750 = vunpack.c.l.b16 %v2622
    %v2751 = vunpack.c.l.b16 %v2623
    %v2752 = vunpack.c.l.b16 %v2624
    %v2753 = vunpack.c.l.b16 %v2625
    %v2754 = vunpack.c.l.b16 %v2626
    %v2755 = vunpack.c.l.b16 %v2627
    %v2756 = vunpack.c.l.b16 %v2628
    %v2757 = vunpack.c.l.b16 %v2629
    %v2758 = vunpack.c.l.b16 %v2630
    %v2759 = vunpack.c.l.b16 %v2631
    %v2760 = vunpack.c.l.b16 %v2632
    %v2761 = vunpack.c.l.b16 %v2633
    %v2762 = vpack.c.b16 %v2699, %v2698
    %v2763 = vpack.c.b16 %v2701, %v2700
    %v2764 = vpack.c.b16 %v2703, %v2702
    %v2765 = vpack.c.b16 %v2705, %v2704
    %v2766 = vpack.c.b16 %v2707, %v2706
    %v2767 = vpack.c.b16 %v2709, %v2708
    %v2768 = vpack.c.b16 %v2711, %v2710
    %v2769 = vpack.c.b16 %v2713, %v2712
    %v2770 = vpack.c.b16 %v2715, %v2714
    %v2771 = vpack.c.b16 %v2717, %v2716
    %v2772 = vpack.c.b16 %v2719, %v2718
    %v2773 = vpack.c.b16 %v2721, %v2720
    %v2774 = vpack.c.b16 %v2723, %v2722
    %v2775 = vpack.c.b16 %v2725, %v2724
    %v2776 = vpack.c.b16 %v2727, %v2726
    %v2777 = vpack.c.b16 %v2729, %v2728
    %v2778 = vpack.c.b16 %v2731, %v2730
    %v2779 = vpack.c.b16 %v2733, %v2732
    %v2780 = vpack.c.b16 %v2735, %v2734
    %v2781 = vpack.c.b16 %v2737, %v2736
    %v2782 = vpack.c.b16 %v2739, %v2738
    %v2783 = vpack.c.b16 %v2741, %v2740
    %v2784 = vpack.c.b16 %v2743, %v2742
    %v2785 = vpack.c.b16 %v2745, %v2744
    %v2786 = vpack.c.b16 %v2747, %v2746
    %v2787 = vpack.c.b16 %v2749, %v2748
    %v2788 = vpack.c.b16 %v2751, %v2750
    %v2789 = vpack.c.b16 %v2753, %v2752
    %v2790 = vpack.c.b16 %v2755, %v2754
    %v2791 = vpack.c.b16 %v2757, %v2756
    %v2792 = vpack.c.b16 %v2759, %v2758
    %v2793 = vpack.c.b16 %v2761, %v2760
    %2826 = vmatprep.subr.bf16.mxu0 0
    %2827 = vmatpush1.bf16.msra.mxu0 %v2769
    %2828 = vmatprep.subr.bf16.mxu0 0
    %2829 = vmatpush1.bf16.msra.mxu0 %v2768
    %2830 = vmatprep.subr.bf16.mxu0 0
    %2831 = vmatpush1.bf16.msra.mxu0 %v2767
    %2832 = vmatprep.subr.bf16.mxu0 0
    %2833 = vmatpush1.bf16.msra.mxu0 %v2766
    %2834 = vmatprep.subr.bf16.mxu0 0
    %2835 = vmatpush1.bf16.msra.mxu0 %v2765
    %2836 = vmatprep.subr.bf16.mxu0 0
    %2837 = vmatpush1.bf16.msra.mxu0 %v2764
    %2838 = vmatprep.subr.bf16.mxu0 0
    %2839 = vmatpush1.bf16.msra.mxu0 %v2763
    %2840 = vmatprep.subr.bf16.mxu0 0
    %2841 = vmatpush1.bf16.msra.mxu0 %v2762
    %2842 = vmatprep.subr.bf16.mxu0 0
    %2843 = vmatpush2.bf16.msra.mxu0 %v2777
    %2844 = vmatprep.subr.bf16.mxu0 0
    %2845 = vmatpush2.bf16.msra.mxu0 %v2776
    %2846 = vmatprep.subr.bf16.mxu0 0
    %2847 = vmatpush2.bf16.msra.mxu0 %v2775
    %2848 = vmatprep.subr.bf16.mxu0 0
    %2849 = vmatpush2.bf16.msra.mxu0 %v2774
    %2850 = vmatprep.subr.bf16.mxu0 0
    %2851 = vmatpush2.bf16.msra.mxu0 %v2773
    %2852 = vmatprep.subr.bf16.mxu0 0
    %2853 = vmatpush2.bf16.msra.mxu0 %v2772
    %2854 = vmatprep.subr.bf16.mxu0 0
    %2855 = vmatpush2.bf16.msra.mxu0 %v2771
    %2856 = vmatprep.subr.bf16.mxu0 0
    %2857 = vmatpush2.bf16.msra.mxu0 %v2770
    %2858 = vmatprep.mubr.bf16.mxu0 %v2563
    %2859 = vmatmul.mubr.bf16.gmra.mxu0 %v2562
    %v2860 = vpop.f32.mrf.mxu0
    %v2861 = vadd.f32 0.0, %v2860
    %v2862 = vpop.f32.mrf.mxu0
    %v2863 = vpop.f32.mrf.mxu0
    %v2864 = vadd.f32 0.0, %v2863
    %v2865 = vpop.f32.mrf.mxu0
    %2866 = vmatprep.mubr.bf16.mxu0 %v2567
    %2867 = vmatmul.mubr.bf16.gmra.mxu0 %v2566
    %v2868 = vpop.f32.mrf.mxu0
    %v2869 = vadd.f32 0.0, %v2868
    %v2870 = vpop.f32.mrf.mxu0
    %v2871 = vpop.f32.mrf.mxu0
    %v2872 = vadd.f32 0.0, %v2871
    %v2873 = vpop.f32.mrf.mxu0
    %2874 = vdwg.mxu0
    %2875 = vmatprep.subr.bf16.mxu0 0
    %2876 = vmatpush1.bf16.msra.mxu0 %v2785
    %2877 = vmatprep.subr.bf16.mxu0 0
    %2878 = vmatpush1.bf16.msra.mxu0 %v2784
    %2879 = vmatprep.subr.bf16.mxu0 0
    %2880 = vmatpush1.bf16.msra.mxu0 %v2783
    %2881 = vmatprep.subr.bf16.mxu0 0
    %2882 = vmatpush1.bf16.msra.mxu0 %v2782
    %2883 = vmatprep.subr.bf16.mxu0 0
    %2884 = vmatpush1.bf16.msra.mxu0 %v2781
    %2885 = vmatprep.subr.bf16.mxu0 0
    %2886 = vmatpush1.bf16.msra.mxu0 %v2780
    %2887 = vmatprep.subr.bf16.mxu0 0
    %2888 = vmatpush1.bf16.msra.mxu0 %v2779
    %2889 = vmatprep.subr.bf16.mxu0 0
    %2890 = vmatpush1.bf16.msra.mxu0 %v2778
    %2891 = vmatprep.subr.bf16.mxu0 0
    %2892 = vmatpush2.bf16.msra.mxu0 %v2793
    %2893 = vmatprep.subr.bf16.mxu0 0
    %2894 = vmatpush2.bf16.msra.mxu0 %v2792
    %2895 = vmatprep.subr.bf16.mxu0 0
    %2896 = vmatpush2.bf16.msra.mxu0 %v2791
    %2897 = vmatprep.subr.bf16.mxu0 0
    %2898 = vmatpush2.bf16.msra.mxu0 %v2790
    %2899 = vmatprep.subr.bf16.mxu0 0
    %2900 = vmatpush2.bf16.msra.mxu0 %v2789
    %2901 = vmatprep.subr.bf16.mxu0 0
    %2902 = vmatpush2.bf16.msra.mxu0 %v2788
    %2903 = vmatprep.subr.bf16.mxu0 0
    %2904 = vmatpush2.bf16.msra.mxu0 %v2787
    %2905 = vmatprep.subr.bf16.mxu0 0
    %2906 = vmatpush2.bf16.msra.mxu0 %v2786
    %2907 = vmatprep.mubr.bf16.mxu0 %v2565
    %2908 = vmatmul.mubr.bf16.gmra.mxu0 %v2564
    %v2909 = vpop.f32.mrf.mxu0
    %v2910 = vadd.f32 %v2861, %v2909
    %v2911 = vpop.f32.mrf.mxu0
    %v2912 = vpop.f32.mrf.mxu0
    %v2913 = vadd.f32 %v2864, %v2912
    %v2914 = vpop.f32.mrf.mxu0
    %2915 = vmatprep.mubr.bf16.mxu0 %v2569
    %2916 = vmatmul.mubr.bf16.gmra.mxu0 %v2568
    %v2917 = vpop.f32.mrf.mxu0
    %v2918 = vadd.f32 %v2869, %v2917
    %v2919 = vpop.f32.mrf.mxu0
    %v2920 = vpop.f32.mrf.mxu0
    %v2921 = vadd.f32 %v2872, %v2920
    %v2922 = vpop.f32.mrf.mxu0
    %2923 = vdwg.mxu0
    %v2924 = vadd.f32 %v2026, %v2910
    %v2925 = vadd.f32 %v2027, %v2913
    %v2926 = vadd.f32 %v2028, %v2918
    %v2927 = vadd.f32 %v2029, %v2921
    %v2928 = vld [vmem:[%s16] sm:$0x1]
    %v2930 = vlaneseq
    %v2931 = vshrl.u32 %v2930, 7
    %v2932 = vsub.s32 0, %v2931
    %v2933 = vrot.slane %v2928, %v2932
    %v2935 = vadd.f32 %v2924, %v2933
    %v2936 = vadd.f32 %v2925, %v2933
    %v2937 = vadd.f32 %v2926, %v2933
    %v2938 = vadd.f32 %v2927, %v2933
    %s2939 = scalar_lea.vmem %s5, 1
    %v2940 = vld [vmem:[%s2939] sm:$0x1]
    %s2941 = scalar_lea.vmem %s6, 1
    %v2942 = vld [vmem:[%s2941] sm:$0x1]
    %2943 = vadd.xlane.f32.xlu0 %v2935
    %v2944 = vpop.xlane.xlu0 %2943
    %2945 = vadd.xlane.f32.xlu0 %v2936
    %v2946 = vpop.xlane.xlu0 %2945
    %2947 = vadd.xlane.f32.xlu0 %v2937
    %v2948 = vpop.xlane.xlu0 %2947
    %2949 = vadd.xlane.f32.xlu0 %v2938
    %v2950 = vpop.xlane.xlu0 %2949
    %v2951 = vmul.f32 %v2944, %v405
    %v2952 = vmul.f32 %v2946, %v405
    %v2953 = vmul.f32 %v2948, %v405
    %v2954 = vmul.f32 %v2950, %v405
    %v2955 = vsub.f32 %v2935, %v2951
    %v2956 = vsub.f32 %v2936, %v2952
    %v2957 = vsub.f32 %v2937, %v2953
    %v2958 = vsub.f32 %v2938, %v2954
    %v2959 = vmul.f32 %v2955, %v2955
    %v2960 = vmul.f32 %v2956, %v2956
    %v2961 = vmul.f32 %v2957, %v2957
    %v2962 = vmul.f32 %v2958, %v2958
    %2963 = vadd.xlane.f32.xlu0 %v2959
    %v2964 = vpop.xlane.xlu0 %2963
    %2965 = vadd.xlane.f32.xlu0 %v2960
    %v2966 = vpop.xlane.xlu0 %2965
    %2967 = vadd.xlane.f32.xlu0 %v2961
    %v2968 = vpop.xlane.xlu0 %2967
    %2969 = vadd.xlane.f32.xlu0 %v2962
    %v2970 = vpop.xlane.xlu0 %2969
    %v2971 = vmul.f32 %v2964, %v405
    %v2972 = vmul.f32 %v2966, %v405
    %v2973 = vmul.f32 %v2968, %v405
    %v2974 = vmul.f32 %v2970, %v405
    %v2975 = vadd.f32 %v2971, 1e-05
    %v2976 = vadd.f32 %v2972, 1e-05
    %v2977 = vadd.f32 %v2973, 1e-05
    %v2978 = vadd.f32 %v2974, 1e-05
    %v2979 = vrsqrt.pop %v2975
    %v2980 = vrsqrt.pop %v2976
    %v2981 = vrsqrt.pop %v2977
    %v2982 = vrsqrt.pop %v2978
    %v2983 = vmul.f32 %v2955, %v2979
    %v2984 = vmul.f32 %v2956, %v2980
    %v2985 = vmul.f32 %v2957, %v2981
    %v2986 = vmul.f32 %v2958, %v2982
    %v2988 = vlaneseq
    %v2989 = vshrl.u32 %v2988, 7
    %v2990 = vsub.s32 0, %v2989
    %v2991 = vrot.slane %v2940, %v2990
    %v2993 = vmul.f32 %v2983, %v2991
    %v2994 = vmul.f32 %v2984, %v2991
    %v2995 = vmul.f32 %v2985, %v2991
    %v2996 = vmul.f32 %v2986, %v2991
    %v2998 = vlaneseq
    %v2999 = vshrl.u32 %v2998, 7
    %v3000 = vsub.s32 0, %v2999
    %v3001 = vrot.slane %v2942, %v3000
    %v3003 = vadd.f32 %v2993, %v3001
    %v3004 = vadd.f32 %v2994, %v3001
    %v3005 = vadd.f32 %v2995, %v3001
    %v3006 = vadd.f32 %v2996, %v3001
    %v3007 = vpack.c.bf16 %v3004, %v3003
    %v3008 = vpack.c.bf16 %v3006, %v3005
    %s3009 = scalar_lea.vmem [#allocation8], 192
    %v3010 = vld [vmem:[%s3009] sm:$0xff]
    %v3011 = vld [vmem:[%s3009 + $0x8] sm:$0xf]
    %v3012 = vld [vmem:[%s3009 + $0xc] sm:$0xff]
    %v3013 = vld [vmem:[%s3009 + $0x14] sm:$0xf]
    %v3014 = vld [vmem:[%s3009 + $0x18] sm:$0xff]
    %v3015 = vld [vmem:[%s3009 + $0x20] sm:$0xf]
    %v3016 = vld [vmem:[%s3009 + $0x24] sm:$0xff]
    %v3017 = vld [vmem:[%s3009 + $0x2c] sm:$0xf]
    %v3018 = vld [vmem:[%s3009 + $0x30] sm:$0xff]
    %v3019 = vld [vmem:[%s3009 + $0x38] sm:$0xf]
    %v3020 = vld [vmem:[%s3009 + $0x3c] sm:$0xff]
    %v3021 = vld [vmem:[%s3009 + $0x44] sm:$0xf]
    %v3022 = vld [vmem:[%s3009 + $0x48] sm:$0xff]
    %v3023 = vld [vmem:[%s3009 + $0x50] sm:$0xf]
    %v3024 = vld [vmem:[%s3009 + $0x54] sm:$0xff]
    %v3025 = vld [vmem:[%s3009 + $0x5c] sm:$0xf]
    %v3026 = vld [vmem:[%s3009 + $0x60] sm:$0xff]
    %v3027 = vld [vmem:[%s3009 + $0x68] sm:$0xf]
    %v3028 = vld [vmem:[%s3009 + $0x6c] sm:$0xff]
    %v3029 = vld [vmem:[%s3009 + $0x74] sm:$0xf]
    %v3030 = vld [vmem:[%s3009 + $0x78] sm:$0xff]
    %v3031 = vld [vmem:[%s3009 + $0x80] sm:$0xf]
    %v3032 = vld [vmem:[%s3009 + $0x84] sm:$0xff]
    %v3033 = vld [vmem:[%s3009 + $0x8c] sm:$0xf]
    %v3034 = vld [vmem:[%s3009 + $0x90] sm:$0xff]
    %v3035 = vld [vmem:[%s3009 + $0x98] sm:$0xf]
    %v3036 = vld [vmem:[%s3009 + $0x9c] sm:$0xff]
    %v3037 = vld [vmem:[%s3009 + $0xa4] sm:$0xf]
    %v3038 = vld [vmem:[%s3009 + $0xa8] sm:$0xff]
    %v3039 = vld [vmem:[%s3009 + $0xb0] sm:$0xf]
    %v3040 = vld [vmem:[%s3009 + $0xb4] sm:$0xff]
    %v3041 = vld [vmem:[%s3009 + $0xbc] sm:$0xf]
    %s3042 = scalar_lea.vmem %s8, 3
    %v3043 = vld [vmem:[%s3042] sm:$0x7]
    %v3045 = vlaneseq
    %v3046 = vshrl.u32 %v3045, 7
    %v3047 = vsub.s32 0, %v3046
    %v3048 = vrot.slane %v3043, %v3047
    %v3049 = vlaneseq
    %v3050 = vshrl.u32 %v3049, 7
    %v3051 = vsub.s32 1, %v3050
    %v3052 = vrot.slane %v3043, %v3051
    %v3053 = vlaneseq
    %v3054 = vshrl.u32 %v3053, 7
    %v3055 = vsub.s32 2, %v3054
    %v3056 = vrot.slane %v3043, %v3055
    %v3092 = vunpack.c.l.b16 %v3010
    %v3093 = vunpack.c.h.b16 %v3010
    %v3094 = vunpack.c.l.b16 %v3011
    %v3095 = vunpack.c.l.b16 %v3012
    %v3096 = vunpack.c.h.b16 %v3012
    %v3097 = vunpack.c.l.b16 %v3013
    %v3098 = vunpack.c.l.b16 %v3014
    %v3099 = vunpack.c.h.b16 %v3014
    %v3100 = vunpack.c.l.b16 %v3015
    %v3101 = vunpack.c.l.b16 %v3016
    %v3102 = vunpack.c.h.b16 %v3016
    %v3103 = vunpack.c.l.b16 %v3017
    %v3104 = vunpack.c.l.b16 %v3018
    %v3105 = vunpack.c.h.b16 %v3018
    %v3106 = vunpack.c.l.b16 %v3019
    %v3107 = vunpack.c.l.b16 %v3020
    %v3108 = vunpack.c.h.b16 %v3020
    %v3109 = vunpack.c.l.b16 %v3021
    %v3110 = vunpack.c.l.b16 %v3022
    %v3111 = vunpack.c.h.b16 %v3022
    %v3112 = vunpack.c.l.b16 %v3023
    %v3113 = vunpack.c.l.b16 %v3024
    %v3114 = vunpack.c.h.b16 %v3024
    %v3115 = vunpack.c.l.b16 %v3025
    %v3116 = vunpack.c.l.b16 %v3026
    %v3117 = vunpack.c.h.b16 %v3026
    %v3118 = vunpack.c.l.b16 %v3027
    %v3119 = vunpack.c.l.b16 %v3028
    %v3120 = vunpack.c.h.b16 %v3028
    %v3121 = vunpack.c.l.b16 %v3029
    %v3122 = vunpack.c.l.b16 %v3030
    %v3123 = vunpack.c.h.b16 %v3030
    %v3124 = vunpack.c.l.b16 %v3031
    %v3125 = vunpack.c.l.b16 %v3032
    %v3126 = vunpack.c.h.b16 %v3032
    %v3127 = vunpack.c.l.b16 %v3033
    %v3128 = vunpack.c.l.b16 %v3034
    %v3129 = vunpack.c.h.b16 %v3034
    %v3130 = vunpack.c.l.b16 %v3035
    %v3131 = vunpack.c.l.b16 %v3036
    %v3132 = vunpack.c.h.b16 %v3036
    %v3133 = vunpack.c.l.b16 %v3037
    %v3134 = vunpack.c.l.b16 %v3038
    %v3135 = vunpack.c.h.b16 %v3038
    %v3136 = vunpack.c.l.b16 %v3039
    %v3137 = vunpack.c.l.b16 %v3040
    %v3138 = vunpack.c.h.b16 %v3040
    %v3139 = vunpack.c.l.b16 %v3041
    %v3140 = vpack.c.b16 %v3095, %v3092
    %v3141 = vpack.c.b16 %v3096, %v3093
    %v3142 = vpack.c.b16 %v3097, %v3094
    %v3143 = vpack.c.b16 %v3101, %v3098
    %v3144 = vpack.c.b16 %v3102, %v3099
    %v3145 = vpack.c.b16 %v3103, %v3100
    %v3146 = vpack.c.b16 %v3107, %v3104
    %v3147 = vpack.c.b16 %v3108, %v3105
    %v3148 = vpack.c.b16 %v3109, %v3106
    %v3149 = vpack.c.b16 %v3113, %v3110
    %v3150 = vpack.c.b16 %v3114, %v3111
    %v3151 = vpack.c.b16 %v3115, %v3112
    %v3152 = vpack.c.b16 %v3119, %v3116
    %v3153 = vpack.c.b16 %v3120, %v3117
    %v3154 = vpack.c.b16 %v3121, %v3118
    %v3155 = vpack.c.b16 %v3125, %v3122
    %v3156 = vpack.c.b16 %v3126, %v3123
    %v3157 = vpack.c.b16 %v3127, %v3124
    %v3158 = vpack.c.b16 %v3131, %v3128
    %v3159 = vpack.c.b16 %v3132, %v3129
    %v3160 = vpack.c.b16 %v3133, %v3130
    %v3161 = vpack.c.b16 %v3137, %v3134
    %v3162 = vpack.c.b16 %v3138, %v3135
    %v3163 = vpack.c.b16 %v3139, %v3136
    %3188 = vmatprep.subr.bf16.mxu0 %v3162
    %3189 = vmatpush1.bf16.msra.mxu0 %v3161
    %3190 = vmatprep.subr.bf16.mxu0 %v3159
    %3191 = vmatpush1.bf16.msra.mxu0 %v3158
    %3192 = vmatprep.subr.bf16.mxu0 %v3156
    %3193 = vmatpush1.bf16.msra.mxu0 %v3155
    %3194 = vmatprep.subr.bf16.mxu0 %v3153
    %3195 = vmatpush1.bf16.msra.mxu0 %v3152
    %3196 = vmatprep.subr.bf16.mxu0 %v3150
    %3197 = vmatpush1.bf16.msra.mxu0 %v3149
    %3198 = vmatprep.subr.bf16.mxu0 %v3147
    %3199 = vmatpush1.bf16.msra.mxu0 %v3146
    %3200 = vmatprep.subr.bf16.mxu0 %v3144
    %3201 = vmatpush1.bf16.msra.mxu0 %v3143
    %3202 = vmatprep.subr.bf16.mxu0 %v3141
    %3203 = vmatpush1.bf16.msra.mxu0 %v3140
    %3204 = vmatprep.subr.bf16.mxu0 0
    %3205 = vmatpush2.bf16.msra.mxu0 0
    %3206 = vmatprep.subr.bf16.mxu0 0
    %3207 = vmatpush2.bf16.msra.mxu0 0
    %3208 = vmatprep.subr.bf16.mxu0 0
    %3209 = vmatpush2.bf16.msra.mxu0 0
    %3210 = vmatprep.subr.bf16.mxu0 0
    %3211 = vmatpush2.bf16.msra.mxu0 0
    %3212 = vmatprep.subr.bf16.mxu0 0
    %3213 = vmatpush2.bf16.msra.mxu0 0
    %3214 = vmatprep.subr.bf16.mxu0 0
    %3215 = vmatpush2.bf16.msra.mxu0 0
    %3216 = vmatprep.subr.bf16.mxu0 0
    %3217 = vmatpush2.bf16.msra.mxu0 0
    %3218 = vmatprep.subr.bf16.mxu0 0
    %3219 = vmatpush2.bf16.msra.mxu0 0
    %3220 = vmatprep.mubr.bf16.mxu0 0
    %3221 = vmatmul.mubr.bf16.gmra.mxu0 %v3007
    %v3222 = vpop.f32.mrf.mxu0
    %v3223 = vadd.f32 %v3048, %v3222
    %v3224 = vpop.f32.mrf.mxu0
    %v3225 = vadd.f32 %v3052, %v3224
    %v3226 = vpop.f32.mrf.mxu0
    %v3227 = vadd.f32 %v3048, %v3226
    %v3228 = vpop.f32.mrf.mxu0
    %v3229 = vadd.f32 %v3052, %v3228
    %3230 = vmatprep.mubr.bf16.mxu0 0
    %3231 = vmatmul.mubr.bf16.gmra.mxu0 %v3008
    %v3232 = vpop.f32.mrf.mxu0
    %v3233 = vadd.f32 %v3048, %v3232
    %v3234 = vpop.f32.mrf.mxu0
    %v3235 = vadd.f32 %v3052, %v3234
    %v3236 = vpop.f32.mrf.mxu0
    %v3237 = vadd.f32 %v3048, %v3236
    %v3238 = vpop.f32.mrf.mxu0
    %v3239 = vadd.f32 %v3052, %v3238
    %3240 = vdwg.mxu0
    %3241 = vmatprep.subr.bf16.mxu0 0
    %3242 = vmatpush1.bf16.msra.mxu0 %v3163
    %3243 = vmatprep.subr.bf16.mxu0 0
    %3244 = vmatpush1.bf16.msra.mxu0 %v3160
    %3245 = vmatprep.subr.bf16.mxu0 0
    %3246 = vmatpush1.bf16.msra.mxu0 %v3157
    %3247 = vmatprep.subr.bf16.mxu0 0
    %3248 = vmatpush1.bf16.msra.mxu0 %v3154
    %3249 = vmatprep.subr.bf16.mxu0 0
    %3250 = vmatpush1.bf16.msra.mxu0 %v3151
    %3251 = vmatprep.subr.bf16.mxu0 0
    %3252 = vmatpush1.bf16.msra.mxu0 %v3148
    %3253 = vmatprep.subr.bf16.mxu0 0
    %3254 = vmatpush1.bf16.msra.mxu0 %v3145
    %3255 = vmatprep.subr.bf16.mxu0 0
    %3256 = vmatpush1.bf16.msra.mxu0 %v3142
    %3257 = vmatprep.subr.bf16.mxu0 0
    %3258 = vmatpush2.bf16.msra.mxu0 0
    %3259 = vmatprep.subr.bf16.mxu0 0
    %3260 = vmatpush2.bf16.msra.mxu0 0
    %3261 = vmatprep.subr.bf16.mxu0 0
    %3262 = vmatpush2.bf16.msra.mxu0 0
    %3263 = vmatprep.subr.bf16.mxu0 0
    %3264 = vmatpush2.bf16.msra.mxu0 0
    %3265 = vmatprep.subr.bf16.mxu0 0
    %3266 = vmatpush2.bf16.msra.mxu0 0
    %3267 = vmatprep.subr.bf16.mxu0 0
    %3268 = vmatpush2.bf16.msra.mxu0 0
    %3269 = vmatprep.subr.bf16.mxu0 0
    %3270 = vmatpush2.bf16.msra.mxu0 0
    %3271 = vmatprep.subr.bf16.mxu0 0
    %3272 = vmatpush2.bf16.msra.mxu0 0
    %3273 = vmatprep.mubr.bf16.mxu0 0
    %3274 = vmatmul.mubr.bf16.gmra.mxu0 %v3007
    %v3275 = vpop.f32.mrf.mxu0
    %v3276 = vadd.f32 %v3056, %v3275
    %v3277 = vpop.f32.mrf.mxu0
    %v3278 = vpop.f32.mrf.mxu0
    %v3279 = vadd.f32 %v3056, %v3278
    %v3280 = vpop.f32.mrf.mxu0
    %3281 = vmatprep.mubr.bf16.mxu0 0
    %3282 = vmatmul.mubr.bf16.gmra.mxu0 %v3008
    %v3283 = vpop.f32.mrf.mxu0
    %v3284 = vadd.f32 %v3056, %v3283
    %v3285 = vpop.f32.mrf.mxu0
    %v3286 = vpop.f32.mrf.mxu0
    %v3287 = vadd.f32 %v3056, %v3286
    %v3288 = vpop.f32.mrf.mxu0
    %3289 = vdwg.mxu0
    %v3290 = vpack.c.bf16 %v3227, %v3223
    %v3291 = vpack.c.bf16 %v3229, %v3225
    %v3292 = vpack.c.bf16 %v3279, %v3276
    %v3293 = vpack.c.bf16 %v3237, %v3233
    %v3294 = vpack.c.bf16 %v3239, %v3235
    %v3295 = vpack.c.bf16 %v3287, %v3284
    %3298 = vrot.lane.b32.xlu0 %v3290, 96
    %v3299 = vpop.permute.xlu0 %3298
    %3300 = vrot.lane.b32.xlu0 %v3293, 96
    %v3301 = vpop.permute.xlu0 %3300
    %3302 = vrot.lane.b32.xlu0 %v3290, 64
    %v3303 = vpop.permute.xlu0 %3302
    %3304 = vrot.lane.b32.xlu0 %v3293, 64
    %v3305 = vpop.permute.xlu0 %3304
    %3306 = vrot.lane.b32.xlu0 %v3290, 32
    %v3307 = vpop.permute.xlu0 %3306
    %3308 = vrot.lane.b32.xlu0 %v3293, 32
    %v3309 = vpop.permute.xlu0 %3308
    %3312 = vrot.lane.b32.xlu0 %v3291, 96
    %v3313 = vpop.permute.xlu0 %3312
    %3314 = vrot.lane.b32.xlu0 %v3294, 96
    %v3315 = vpop.permute.xlu0 %3314
    %3316 = vrot.lane.b32.xlu0 %v3291, 64
    %v3317 = vpop.permute.xlu0 %3316
    %3318 = vrot.lane.b32.xlu0 %v3294, 64
    %v3319 = vpop.permute.xlu0 %3318
    %3320 = vrot.lane.b32.xlu0 %v3291, 32
    %v3321 = vpop.permute.xlu0 %3320
    %3322 = vrot.lane.b32.xlu0 %v3294, 32
    %v3323 = vpop.permute.xlu0 %3322
    %3326 = vrot.lane.b32.xlu0 %v3292, 96
    %v3327 = vpop.permute.xlu0 %3326
    %3328 = vrot.lane.b32.xlu0 %v3295, 96
    %v3329 = vpop.permute.xlu0 %3328
    %3332 = vrot.lane.b32.xlu0 %v3292, 64
    %v3333 = vpop.permute.xlu0 %3332
    %3334 = vrot.lane.b32.xlu0 %v3295, 64
    %v3335 = vpop.permute.xlu0 %3334
    %3338 = vrot.lane.b32.xlu0 %v3292, 32
    %v3339 = vpop.permute.xlu0 %3338
    %3340 = vrot.lane.b32.xlu0 %v3295, 32
    %v3341 = vpop.permute.xlu0 %3340
    %v3345 = vsel %vm797, %v3290, 0
    %v3348 = vsel %vm797, %v3291, 0
    %3350 = vmatprep.subr.bf16.mxu0 0
    %3351 = vmatpush1.bf16.xpose.msra.mxu0 0
    %3352 = vmatprep.subr.bf16.mxu0 0
    %3353 = vmatpush1.bf16.xpose.msra.mxu0 0
    %3354 = vmatprep.subr.bf16.mxu0 0
    %3355 = vmatpush1.bf16.xpose.msra.mxu0 0
    %3356 = vmatprep.subr.bf16.mxu0 0
    %3357 = vmatpush1.bf16.xpose.msra.mxu0 0
    %3358 = vmatprep.subr.bf16.mxu0 0
    %3359 = vmatpush1.bf16.xpose.msra.mxu0 0
    %3360 = vmatprep.subr.bf16.mxu0 0
    %3361 = vmatpush1.bf16.xpose.msra.mxu0 0
    %3362 = vmatprep.subr.bf16.mxu0 0
    %3363 = vmatpush1.bf16.xpose.msra.mxu0 0
    %3364 = vmatprep.subr.bf16.mxu0 0
    %3365 = vmatpush1.bf16.xpose.msra.mxu0 %v3348
    %3366 = vmatprep.subr.bf16.mxu0 0
    %3367 = vmatpush2.bf16.xpose.msra.mxu0 0
    %3368 = vmatprep.subr.bf16.mxu0 0
    %3369 = vmatpush2.bf16.xpose.msra.mxu0 0
    %3370 = vmatprep.subr.bf16.mxu0 0
    %3371 = vmatpush2.bf16.xpose.msra.mxu0 0
    %3372 = vmatprep.subr.bf16.mxu0 0
    %3373 = vmatpush2.bf16.xpose.msra.mxu0 0
    %3374 = vmatprep.subr.bf16.mxu0 0
    %3375 = vmatpush2.bf16.xpose.msra.mxu0 0
    %3376 = vmatprep.subr.bf16.mxu0 0
    %3377 = vmatpush2.bf16.xpose.msra.mxu0 0
    %3378 = vmatprep.subr.bf16.mxu0 0
    %3379 = vmatpush2.bf16.xpose.msra.mxu0 0
    %3380 = vmatprep.subr.bf16.mxu0 0
    %3381 = vmatpush2.bf16.xpose.msra.mxu0 0
    %3382 = vmatprep.mubr.bf16.mxu0 0
    %3383 = vmatmul.mubr.bf16.gmra.mxu0 %v3345
    %v3384 = vpop.f32.mrf.mxu0
    %v3385 = vadd.f32 %v191, %v3384
    %v3386 = vpop.f32.mrf.mxu0
    %v3387 = vpop.f32.mrf.mxu0
    %v3388 = vadd.f32 %v192, %v3387
    %v3389 = vpop.f32.mrf.mxu0
    %3390 = vdwg.mxu0
    %v3392 = vsel %vm797, %v3293, 0
    %v3395 = vsel %vm797, %v3294, 0
    %3397 = vmatprep.subr.bf16.mxu0 0
    %3398 = vmatpush1.bf16.xpose.msra.mxu0 0
    %3399 = vmatprep.subr.bf16.mxu0 0
    %3400 = vmatpush1.bf16.xpose.msra.mxu0 0
    %3401 = vmatprep.subr.bf16.mxu0 0
    %3402 = vmatpush1.bf16.xpose.msra.mxu0 0
    %3403 = vmatprep.subr.bf16.mxu0 0
    %3404 = vmatpush1.bf16.xpose.msra.mxu0 0
    %3405 = vmatprep.subr.bf16.mxu0 0
    %3406 = vmatpush1.bf16.xpose.msra.mxu0 0
    %3407 = vmatprep.subr.bf16.mxu0 0
    %3408 = vmatpush1.bf16.xpose.msra.mxu0 0
    %3409 = vmatprep.subr.bf16.mxu0 0
    %3410 = vmatpush1.bf16.xpose.msra.mxu0 0
    %3411 = vmatprep.subr.bf16.mxu0 0
    %3412 = vmatpush1.bf16.xpose.msra.mxu0 %v3395
    %3413 = vmatprep.subr.bf16.mxu0 0
    %3414 = vmatpush2.bf16.xpose.msra.mxu0 0
    %3415 = vmatprep.subr.bf16.mxu0 0
    %3416 = vmatpush2.bf16.xpose.msra.mxu0 0
    %3417 = vmatprep.subr.bf16.mxu0 0
    %3418 = vmatpush2.bf16.xpose.msra.mxu0 0
    %3419 = vmatprep.subr.bf16.mxu0 0
    %3420 = vmatpush2.bf16.xpose.msra.mxu0 0
    %3421 = vmatprep.subr.bf16.mxu0 0
    %3422 = vmatpush2.bf16.xpose.msra.mxu0 0
    %3423 = vmatprep.subr.bf16.mxu0 0
    %3424 = vmatpush2.bf16.xpose.msra.mxu0 0
    %3425 = vmatprep.subr.bf16.mxu0 0
    %3426 = vmatpush2.bf16.xpose.msra.mxu0 0
    %3427 = vmatprep.subr.bf16.mxu0 0
    %3428 = vmatpush2.bf16.xpose.msra.mxu0 0
    %3429 = vmatprep.mubr.bf16.mxu0 0
    %3430 = vmatmul.mubr.bf16.gmra.mxu0 %v3392
    %v3431 = vpop.f32.mrf.mxu0
    %v3432 = vadd.f32 %v193, %v3431
    %v3433 = vpop.f32.mrf.mxu0
    %v3434 = vpop.f32.mrf.mxu0
    %v3435 = vadd.f32 %v194, %v3434
    %v3436 = vpop.f32.mrf.mxu0
    %3437 = vdwg.mxu0
    %v3439 = vsel %vm797, %v3299, 0
    %v3442 = vsel %vm797, %v3313, 0
    %3444 = vmatprep.subr.bf16.mxu0 0
    %3445 = vmatpush1.bf16.xpose.msra.mxu0 0
    %3446 = vmatprep.subr.bf16.mxu0 0
    %3447 = vmatpush1.bf16.xpose.msra.mxu0 0
    %3448 = vmatprep.subr.bf16.mxu0 0
    %3449 = vmatpush1.bf16.xpose.msra.mxu0 0
    %3450 = vmatprep.subr.bf16.mxu0 0
    %3451 = vmatpush1.bf16.xpose.msra.mxu0 0
    %3452 = vmatprep.subr.bf16.mxu0 0
    %3453 = vmatpush1.bf16.xpose.msra.mxu0 0
    %3454 = vmatprep.subr.bf16.mxu0 0
    %3455 = vmatpush1.bf16.xpose.msra.mxu0 0
    %3456 = vmatprep.subr.bf16.mxu0 0
    %3457 = vmatpush1.bf16.xpose.msra.mxu0 0
    %3458 = vmatprep.subr.bf16.mxu0 0
    %3459 = vmatpush1.bf16.xpose.msra.mxu0 %v3442
    %3460 = vmatprep.subr.bf16.mxu0 0
    %3461 = vmatpush2.bf16.xpose.msra.mxu0 0
    %3462 = vmatprep.subr.bf16.mxu0 0
    %3463 = vmatpush2.bf16.xpose.msra.mxu0 0
    %3464 = vmatprep.subr.bf16.mxu0 0
    %3465 = vmatpush2.bf16.xpose.msra.mxu0 0
    %3466 = vmatprep.subr.bf16.mxu0 0
    %3467 = vmatpush2.bf16.xpose.msra.mxu0 0
    %3468 = vmatprep.subr.bf16.mxu0 0
    %3469 = vmatpush2.bf16.xpose.msra.mxu0 0
    %3470 = vmatprep.subr.bf16.mxu0 0
    %3471 = vmatpush2.bf16.xpose.msra.mxu0 0
    %3472 = vmatprep.subr.bf16.mxu0 0
    %3473 = vmatpush2.bf16.xpose.msra.mxu0 0
    %3474 = vmatprep.subr.bf16.mxu0 0
    %3475 = vmatpush2.bf16.xpose.msra.mxu0 0
    %3476 = vmatprep.mubr.bf16.mxu0 0
    %3477 = vmatmul.mubr.bf16.gmra.mxu0 %v3439
    %v3478 = vpop.f32.mrf.mxu0
    %v3479 = vadd.f32 %v195, %v3478
    %v3480 = vpop.f32.mrf.mxu0
    %v3481 = vpop.f32.mrf.mxu0
    %v3482 = vadd.f32 %v196, %v3481
    %v3483 = vpop.f32.mrf.mxu0
    %3484 = vdwg.mxu0
    %v3486 = vsel %vm797, %v3301, 0
    %v3489 = vsel %vm797, %v3315, 0
    %3491 = vmatprep.subr.bf16.mxu0 0
    %3492 = vmatpush1.bf16.xpose.msra.mxu0 0
    %3493 = vmatprep.subr.bf16.mxu0 0
    %3494 = vmatpush1.bf16.xpose.msra.mxu0 0
    %3495 = vmatprep.subr.bf16.mxu0 0
    %3496 = vmatpush1.bf16.xpose.msra.mxu0 0
    %3497 = vmatprep.subr.bf16.mxu0 0
    %3498 = vmatpush1.bf16.xpose.msra.mxu0 0
    %3499 = vmatprep.subr.bf16.mxu0 0
    %3500 = vmatpush1.bf16.xpose.msra.mxu0 0
    %3501 = vmatprep.subr.bf16.mxu0 0
    %3502 = vmatpush1.bf16.xpose.msra.mxu0 0
    %3503 = vmatprep.subr.bf16.mxu0 0
    %3504 = vmatpush1.bf16.xpose.msra.mxu0 0
    %3505 = vmatprep.subr.bf16.mxu0 0
    %3506 = vmatpush1.bf16.xpose.msra.mxu0 %v3489
    %3507 = vmatprep.subr.bf16.mxu0 0
    %3508 = vmatpush2.bf16.xpose.msra.mxu0 0
    %3509 = vmatprep.subr.bf16.mxu0 0
    %3510 = vmatpush2.bf16.xpose.msra.mxu0 0
    %3511 = vmatprep.subr.bf16.mxu0 0
    %3512 = vmatpush2.bf16.xpose.msra.mxu0 0
    %3513 = vmatprep.subr.bf16.mxu0 0
    %3514 = vmatpush2.bf16.xpose.msra.mxu0 0
    %3515 = vmatprep.subr.bf16.mxu0 0
    %3516 = vmatpush2.bf16.xpose.msra.mxu0 0
    %3517 = vmatprep.subr.bf16.mxu0 0
    %3518 = vmatpush2.bf16.xpose.msra.mxu0 0
    %3519 = vmatprep.subr.bf16.mxu0 0
    %3520 = vmatpush2.bf16.xpose.msra.mxu0 0
    %3521 = vmatprep.subr.bf16.mxu0 0
    %3522 = vmatpush2.bf16.xpose.msra.mxu0 0
    %3523 = vmatprep.mubr.bf16.mxu0 0
    %3524 = vmatmul.mubr.bf16.gmra.mxu0 %v3486
    %v3525 = vpop.f32.mrf.mxu0
    %v3526 = vadd.f32 %v197, %v3525
    %v3527 = vpop.f32.mrf.mxu0
    %v3528 = vpop.f32.mrf.mxu0
    %v3529 = vadd.f32 %v198, %v3528
    %v3530 = vpop.f32.mrf.mxu0
    %3531 = vdwg.mxu0
    %v3533 = vsel %vm797, %v3303, 0
    %v3536 = vsel %vm797, %v3317, 0
    %3538 = vmatprep.subr.bf16.mxu0 0
    %3539 = vmatpush1.bf16.xpose.msra.mxu0 0
    %3540 = vmatprep.subr.bf16.mxu0 0
    %3541 = vmatpush1.bf16.xpose.msra.mxu0 0
    %3542 = vmatprep.subr.bf16.mxu0 0
    %3543 = vmatpush1.bf16.xpose.msra.mxu0 0
    %3544 = vmatprep.subr.bf16.mxu0 0
    %3545 = vmatpush1.bf16.xpose.msra.mxu0 0
    %3546 = vmatprep.subr.bf16.mxu0 0
    %3547 = vmatpush1.bf16.xpose.msra.mxu0 0
    %3548 = vmatprep.subr.bf16.mxu0 0
    %3549 = vmatpush1.bf16.xpose.msra.mxu0 0
    %3550 = vmatprep.subr.bf16.mxu0 0
    %3551 = vmatpush1.bf16.xpose.msra.mxu0 0
    %3552 = vmatprep.subr.bf16.mxu0 0
    %3553 = vmatpush1.bf16.xpose.msra.mxu0 %v3536
    %3554 = vmatprep.subr.bf16.mxu0 0
    %3555 = vmatpush2.bf16.xpose.msra.mxu0 0
    %3556 = vmatprep.subr.bf16.mxu0 0
    %3557 = vmatpush2.bf16.xpose.msra.mxu0 0
    %3558 = vmatprep.subr.bf16.mxu0 0
    %3559 = vmatpush2.bf16.xpose.msra.mxu0 0
    %3560 = vmatprep.subr.bf16.mxu0 0
    %3561 = vmatpush2.bf16.xpose.msra.mxu0 0
    %3562 = vmatprep.subr.bf16.mxu0 0
    %3563 = vmatpush2.bf16.xpose.msra.mxu0 0
    %3564 = vmatprep.subr.bf16.mxu0 0
    %3565 = vmatpush2.bf16.xpose.msra.mxu0 0
    %3566 = vmatprep.subr.bf16.mxu0 0
    %3567 = vmatpush2.bf16.xpose.msra.mxu0 0
    %3568 = vmatprep.subr.bf16.mxu0 0
    %3569 = vmatpush2.bf16.xpose.msra.mxu0 0
    %3570 = vmatprep.mubr.bf16.mxu0 0
    %3571 = vmatmul.mubr.bf16.gmra.mxu0 %v3533
    %v3572 = vpop.f32.mrf.mxu0
    %v3573 = vadd.f32 %v199, %v3572
    %v3574 = vpop.f32.mrf.mxu0
    %v3575 = vpop.f32.mrf.mxu0
    %v3576 = vadd.f32 %v200, %v3575
    %v3577 = vpop.f32.mrf.mxu0
    %3578 = vdwg.mxu0
    %v3580 = vsel %vm797, %v3305, 0
    %v3583 = vsel %vm797, %v3319, 0
    %3585 = vmatprep.subr.bf16.mxu0 0
    %3586 = vmatpush1.bf16.xpose.msra.mxu0 0
    %3587 = vmatprep.subr.bf16.mxu0 0
    %3588 = vmatpush1.bf16.xpose.msra.mxu0 0
    %3589 = vmatprep.subr.bf16.mxu0 0
    %3590 = vmatpush1.bf16.xpose.msra.mxu0 0
    %3591 = vmatprep.subr.bf16.mxu0 0
    %3592 = vmatpush1.bf16.xpose.msra.mxu0 0
    %3593 = vmatprep.subr.bf16.mxu0 0
    %3594 = vmatpush1.bf16.xpose.msra.mxu0 0
    %3595 = vmatprep.subr.bf16.mxu0 0
    %3596 = vmatpush1.bf16.xpose.msra.mxu0 0
    %3597 = vmatprep.subr.bf16.mxu0 0
    %3598 = vmatpush1.bf16.xpose.msra.mxu0 0
    %3599 = vmatprep.subr.bf16.mxu0 0
    %3600 = vmatpush1.bf16.xpose.msra.mxu0 %v3583
    %3601 = vmatprep.subr.bf16.mxu0 0
    %3602 = vmatpush2.bf16.xpose.msra.mxu0 0
    %3603 = vmatprep.subr.bf16.mxu0 0
    %3604 = vmatpush2.bf16.xpose.msra.mxu0 0
    %3605 = vmatprep.subr.bf16.mxu0 0
    %3606 = vmatpush2.bf16.xpose.msra.mxu0 0
    %3607 = vmatprep.subr.bf16.mxu0 0
    %3608 = vmatpush2.bf16.xpose.msra.mxu0 0
    %3609 = vmatprep.subr.bf16.mxu0 0
    %3610 = vmatpush2.bf16.xpose.msra.mxu0 0
    %3611 = vmatprep.subr.bf16.mxu0 0
    %3612 = vmatpush2.bf16.xpose.msra.mxu0 0
    %3613 = vmatprep.subr.bf16.mxu0 0
    %3614 = vmatpush2.bf16.xpose.msra.mxu0 0
    %3615 = vmatprep.subr.bf16.mxu0 0
    %3616 = vmatpush2.bf16.xpose.msra.mxu0 0
    %3617 = vmatprep.mubr.bf16.mxu0 0
    %3618 = vmatmul.mubr.bf16.gmra.mxu0 %v3580
    %v3619 = vpop.f32.mrf.mxu0
    %v3620 = vadd.f32 %v201, %v3619
    %v3621 = vpop.f32.mrf.mxu0
    %v3622 = vpop.f32.mrf.mxu0
    %v3623 = vadd.f32 %v202, %v3622
    %v3624 = vpop.f32.mrf.mxu0
    %3625 = vdwg.mxu0
    %v3627 = vsel %vm797, %v3307, 0
    %v3630 = vsel %vm797, %v3321, 0
    %3632 = vmatprep.subr.bf16.mxu0 0
    %3633 = vmatpush1.bf16.xpose.msra.mxu0 0
    %3634 = vmatprep.subr.bf16.mxu0 0
    %3635 = vmatpush1.bf16.xpose.msra.mxu0 0
    %3636 = vmatprep.subr.bf16.mxu0 0
    %3637 = vmatpush1.bf16.xpose.msra.mxu0 0
    %3638 = vmatprep.subr.bf16.mxu0 0
    %3639 = vmatpush1.bf16.xpose.msra.mxu0 0
    %3640 = vmatprep.subr.bf16.mxu0 0
    %3641 = vmatpush1.bf16.xpose.msra.mxu0 0
    %3642 = vmatprep.subr.bf16.mxu0 0
    %3643 = vmatpush1.bf16.xpose.msra.mxu0 0
    %3644 = vmatprep.subr.bf16.mxu0 0
    %3645 = vmatpush1.bf16.xpose.msra.mxu0 0
    %3646 = vmatprep.subr.bf16.mxu0 0
    %3647 = vmatpush1.bf16.xpose.msra.mxu0 %v3630
    %3648 = vmatprep.subr.bf16.mxu0 0
    %3649 = vmatpush2.bf16.xpose.msra.mxu0 0
    %3650 = vmatprep.subr.bf16.mxu0 0
    %3651 = vmatpush2.bf16.xpose.msra.mxu0 0
    %3652 = vmatprep.subr.bf16.mxu0 0
    %3653 = vmatpush2.bf16.xpose.msra.mxu0 0
    %3654 = vmatprep.subr.bf16.mxu0 0
    %3655 = vmatpush2.bf16.xpose.msra.mxu0 0
    %3656 = vmatprep.subr.bf16.mxu0 0
    %3657 = vmatpush2.bf16.xpose.msra.mxu0 0
    %3658 = vmatprep.subr.bf16.mxu0 0
    %3659 = vmatpush2.bf16.xpose.msra.mxu0 0
    %3660 = vmatprep.subr.bf16.mxu0 0
    %3661 = vmatpush2.bf16.xpose.msra.mxu0 0
    %3662 = vmatprep.subr.bf16.mxu0 0
    %3663 = vmatpush2.bf16.xpose.msra.mxu0 0
    %3664 = vmatprep.mubr.bf16.mxu0 0
    %3665 = vmatmul.mubr.bf16.gmra.mxu0 %v3627
    %v3666 = vpop.f32.mrf.mxu0
    %v3667 = vadd.f32 %v203, %v3666
    %v3668 = vpop.f32.mrf.mxu0
    %v3669 = vpop.f32.mrf.mxu0
    %v3670 = vadd.f32 %v204, %v3669
    %v3671 = vpop.f32.mrf.mxu0
    %3672 = vdwg.mxu0
    %v3674 = vsel %vm797, %v3309, 0
    %v3677 = vsel %vm797, %v3323, 0
    %3679 = vmatprep.subr.bf16.mxu0 0
    %3680 = vmatpush1.bf16.xpose.msra.mxu0 0
    %3681 = vmatprep.subr.bf16.mxu0 0
    %3682 = vmatpush1.bf16.xpose.msra.mxu0 0
    %3683 = vmatprep.subr.bf16.mxu0 0
    %3684 = vmatpush1.bf16.xpose.msra.mxu0 0
    %3685 = vmatprep.subr.bf16.mxu0 0
    %3686 = vmatpush1.bf16.xpose.msra.mxu0 0
    %3687 = vmatprep.subr.bf16.mxu0 0
    %3688 = vmatpush1.bf16.xpose.msra.mxu0 0
    %3689 = vmatprep.subr.bf16.mxu0 0
    %3690 = vmatpush1.bf16.xpose.msra.mxu0 0
    %3691 = vmatprep.subr.bf16.mxu0 0
    %3692 = vmatpush1.bf16.xpose.msra.mxu0 0
    %3693 = vmatprep.subr.bf16.mxu0 0
    %3694 = vmatpush1.bf16.xpose.msra.mxu0 %v3677
    %3695 = vmatprep.subr.bf16.mxu0 0
    %3696 = vmatpush2.bf16.xpose.msra.mxu0 0
    %3697 = vmatprep.subr.bf16.mxu0 0
    %3698 = vmatpush2.bf16.xpose.msra.mxu0 0
    %3699 = vmatprep.subr.bf16.mxu0 0
    %3700 = vmatpush2.bf16.xpose.msra.mxu0 0
    %3701 = vmatprep.subr.bf16.mxu0 0
    %3702 = vmatpush2.bf16.xpose.msra.mxu0 0
    %3703 = vmatprep.subr.bf16.mxu0 0
    %3704 = vmatpush2.bf16.xpose.msra.mxu0 0
    %3705 = vmatprep.subr.bf16.mxu0 0
    %3706 = vmatpush2.bf16.xpose.msra.mxu0 0
    %3707 = vmatprep.subr.bf16.mxu0 0
    %3708 = vmatpush2.bf16.xpose.msra.mxu0 0
    %3709 = vmatprep.subr.bf16.mxu0 0
    %3710 = vmatpush2.bf16.xpose.msra.mxu0 0
    %3711 = vmatprep.mubr.bf16.mxu0 0
    %3712 = vmatmul.mubr.bf16.gmra.mxu0 %v3674
    %v3713 = vpop.f32.mrf.mxu0
    %v3714 = vadd.f32 %v205, %v3713
    %v3715 = vpop.f32.mrf.mxu0
    %v3716 = vpop.f32.mrf.mxu0
    %v3717 = vadd.f32 %v206, %v3716
    %v3718 = vpop.f32.mrf.mxu0
    %3719 = vdwg.mxu0
    %v3720 = vsel %vm1174, %v3385, -inf
    %3721 = vmax.xlane.f32.xlu0 %v3720
    %v3722 = vpop.xlane.xlu0 %3721
    %v3723 = vsel %vm1174, %v3388, -inf
    %3724 = vmax.xlane.f32.xlu0 %v3723
    %v3725 = vpop.xlane.xlu0 %3724
    %v3726 = vsel %vm1174, %v3432, -inf
    %3727 = vmax.xlane.f32.xlu0 %v3726
    %v3728 = vpop.xlane.xlu0 %3727
    %v3729 = vsel %vm1174, %v3435, -inf
    %3730 = vmax.xlane.f32.xlu0 %v3729
    %v3731 = vpop.xlane.xlu0 %3730
    %v3732 = vsel %vm1174, %v3479, -inf
    %3733 = vmax.xlane.f32.xlu0 %v3732
    %v3734 = vpop.xlane.xlu0 %3733
    %v3735 = vsel %vm1174, %v3482, -inf
    %3736 = vmax.xlane.f32.xlu0 %v3735
    %v3737 = vpop.xlane.xlu0 %3736
    %v3738 = vsel %vm1174, %v3526, -inf
    %3739 = vmax.xlane.f32.xlu0 %v3738
    %v3740 = vpop.xlane.xlu0 %3739
    %v3741 = vsel %vm1174, %v3529, -inf
    %3742 = vmax.xlane.f32.xlu0 %v3741
    %v3743 = vpop.xlane.xlu0 %3742
    %v3744 = vsel %vm1174, %v3573, -inf
    %3745 = vmax.xlane.f32.xlu0 %v3744
    %v3746 = vpop.xlane.xlu0 %3745
    %v3747 = vsel %vm1174, %v3576, -inf
    %3748 = vmax.xlane.f32.xlu0 %v3747
    %v3749 = vpop.xlane.xlu0 %3748
    %v3750 = vsel %vm1174, %v3620, -inf
    %3751 = vmax.xlane.f32.xlu0 %v3750
    %v3752 = vpop.xlane.xlu0 %3751
    %v3753 = vsel %vm1174, %v3623, -inf
    %3754 = vmax.xlane.f32.xlu0 %v3753
    %v3755 = vpop.xlane.xlu0 %3754
    %v3756 = vsel %vm1174, %v3667, -inf
    %3757 = vmax.xlane.f32.xlu0 %v3756
    %v3758 = vpop.xlane.xlu0 %3757
    %v3759 = vsel %vm1174, %v3670, -inf
    %3760 = vmax.xlane.f32.xlu0 %v3759
    %v3761 = vpop.xlane.xlu0 %3760
    %v3762 = vsel %vm1174, %v3714, -inf
    %3763 = vmax.xlane.f32.xlu0 %v3762
    %v3764 = vpop.xlane.xlu0 %3763
    %v3765 = vsel %vm1174, %v3717, -inf
    %3766 = vmax.xlane.f32.xlu0 %v3765
    %v3767 = vpop.xlane.xlu0 %3766
    %v3768 = vsub.f32 %v3385, %v3722
    %v3769 = vsub.f32 %v3388, %v3725
    %v3770 = vsub.f32 %v3432, %v3728
    %v3771 = vsub.f32 %v3435, %v3731
    %v3772 = vsub.f32 %v3479, %v3734
    %v3773 = vsub.f32 %v3482, %v3737
    %v3774 = vsub.f32 %v3526, %v3740
    %v3775 = vsub.f32 %v3529, %v3743
    %v3776 = vsub.f32 %v3573, %v3746
    %v3777 = vsub.f32 %v3576, %v3749
    %v3778 = vsub.f32 %v3620, %v3752
    %v3779 = vsub.f32 %v3623, %v3755
    %v3780 = vsub.f32 %v3667, %v3758
    %v3781 = vsub.f32 %v3670, %v3761
    %v3782 = vsub.f32 %v3714, %v3764
    %v3783 = vsub.f32 %v3717, %v3767
    %v3784 = vmul.f32 %v3768, 1.442695
    %v3785 = vpow.pop %v3784
    %v3786 = vmul.f32 %v3769, 1.442695
    %v3787 = vpow.pop %v3786
    %v3788 = vmul.f32 %v3770, 1.442695
    %v3789 = vpow.pop %v3788
    %v3790 = vmul.f32 %v3771, 1.442695
    %v3791 = vpow.pop %v3790
    %v3792 = vmul.f32 %v3772, 1.442695
    %v3793 = vpow.pop %v3792
    %v3794 = vmul.f32 %v3773, 1.442695
    %v3795 = vpow.pop %v3794
    %v3796 = vmul.f32 %v3774, 1.442695
    %v3797 = vpow.pop %v3796
    %v3798 = vmul.f32 %v3775, 1.442695
    %v3799 = vpow.pop %v3798
    %v3800 = vmul.f32 %v3776, 1.442695
    %v3801 = vpow.pop %v3800
    %v3802 = vmul.f32 %v3777, 1.442695
    %v3803 = vpow.pop %v3802
    %v3804 = vmul.f32 %v3778, 1.442695
    %v3805 = vpow.pop %v3804
    %v3806 = vmul.f32 %v3779, 1.442695
    %v3807 = vpow.pop %v3806
    %v3808 = vmul.f32 %v3780, 1.442695
    %v3809 = vpow.pop %v3808
    %v3810 = vmul.f32 %v3781, 1.442695
    %v3811 = vpow.pop %v3810
    %v3812 = vmul.f32 %v3782, 1.442695
    %v3813 = vpow.pop %v3812
    %v3814 = vmul.f32 %v3783, 1.442695
    %v3815 = vpow.pop %v3814
    %v3816 = vsel %vm1174, %v3785, 0.0
    %3817 = vadd.xlane.f32.xlu0 %v3816
    %v3818 = vpop.xlane.xlu0 %3817
    %v3819 = vsel %vm1174, %v3787, 0.0
    %3820 = vadd.xlane.f32.xlu0 %v3819
    %v3821 = vpop.xlane.xlu0 %3820
    %v3822 = vsel %vm1174, %v3789, 0.0
    %3823 = vadd.xlane.f32.xlu0 %v3822
    %v3824 = vpop.xlane.xlu0 %3823
    %v3825 = vsel %vm1174, %v3791, 0.0
    %3826 = vadd.xlane.f32.xlu0 %v3825
    %v3827 = vpop.xlane.xlu0 %3826
    %v3828 = vsel %vm1174, %v3793, 0.0
    %3829 = vadd.xlane.f32.xlu0 %v3828
    %v3830 = vpop.xlane.xlu0 %3829
    %v3831 = vsel %vm1174, %v3795, 0.0
    %3832 = vadd.xlane.f32.xlu0 %v3831
    %v3833 = vpop.xlane.xlu0 %3832
    %v3834 = vsel %vm1174, %v3797, 0.0
    %3835 = vadd.xlane.f32.xlu0 %v3834
    %v3836 = vpop.xlane.xlu0 %3835
    %v3837 = vsel %vm1174, %v3799, 0.0
    %3838 = vadd.xlane.f32.xlu0 %v3837
    %v3839 = vpop.xlane.xlu0 %3838
    %v3840 = vsel %vm1174, %v3801, 0.0
    %3841 = vadd.xlane.f32.xlu0 %v3840
    %v3842 = vpop.xlane.xlu0 %3841
    %v3843 = vsel %vm1174, %v3803, 0.0
    %3844 = vadd.xlane.f32.xlu0 %v3843
    %v3845 = vpop.xlane.xlu0 %3844
    %v3846 = vsel %vm1174, %v3805, 0.0
    %3847 = vadd.xlane.f32.xlu0 %v3846
    %v3848 = vpop.xlane.xlu0 %3847
    %v3849 = vsel %vm1174, %v3807, 0.0
    %3850 = vadd.xlane.f32.xlu0 %v3849
    %v3851 = vpop.xlane.xlu0 %3850
    %v3852 = vsel %vm1174, %v3809, 0.0
    %3853 = vadd.xlane.f32.xlu0 %v3852
    %v3854 = vpop.xlane.xlu0 %3853
    %v3855 = vsel %vm1174, %v3811, 0.0
    %3856 = vadd.xlane.f32.xlu0 %v3855
    %v3857 = vpop.xlane.xlu0 %3856
    %v3858 = vsel %vm1174, %v3813, 0.0
    %3859 = vadd.xlane.f32.xlu0 %v3858
    %v3860 = vpop.xlane.xlu0 %3859
    %v3861 = vsel %vm1174, %v3815, 0.0
    %3862 = vadd.xlane.f32.xlu0 %v3861
    %v3863 = vpop.xlane.xlu0 %3862
    %v3864 = vrcp.pop %v3818
    %v3865 = vrcp.pop %v3821
    %v3866 = vrcp.pop %v3824
    %v3867 = vrcp.pop %v3827
    %v3868 = vrcp.pop %v3830
    %v3869 = vrcp.pop %v3833
    %v3870 = vrcp.pop %v3836
    %v3871 = vrcp.pop %v3839
    %v3872 = vrcp.pop %v3842
    %v3873 = vrcp.pop %v3845
    %v3874 = vrcp.pop %v3848
    %v3875 = vrcp.pop %v3851
    %v3876 = vrcp.pop %v3854
    %v3877 = vrcp.pop %v3857
    %v3878 = vrcp.pop %v3860
    %v3879 = vrcp.pop %v3863
    %v3880 = vmul.f32 %v3785, %v3864
    %v3881 = vmul.f32 %v3787, %v3865
    %v3882 = vmul.f32 %v3789, %v3866
    %v3883 = vmul.f32 %v3791, %v3867
    %v3884 = vmul.f32 %v3793, %v3868
    %v3885 = vmul.f32 %v3795, %v3869
    %v3886 = vmul.f32 %v3797, %v3870
    %v3887 = vmul.f32 %v3799, %v3871
    %v3888 = vmul.f32 %v3801, %v3872
    %v3889 = vmul.f32 %v3803, %v3873
    %v3890 = vmul.f32 %v3805, %v3874
    %v3891 = vmul.f32 %v3807, %v3875
    %v3892 = vmul.f32 %v3809, %v3876
    %v3893 = vmul.f32 %v3811, %v3877
    %v3894 = vmul.f32 %v3813, %v3878
    %v3895 = vmul.f32 %v3815, %v3879
    %v3896 = vpack.c.bf16 %v3881, %v3880
    %v3897 = vpack.c.bf16 %v3883, %v3882
    %v3898 = vpack.c.bf16 %v3885, %v3884
    %v3899 = vpack.c.bf16 %v3887, %v3886
    %v3900 = vpack.c.bf16 %v3889, %v3888
    %v3901 = vpack.c.bf16 %v3891, %v3890
    %v3902 = vpack.c.bf16 %v3893, %v3892
    %v3903 = vpack.c.bf16 %v3895, %v3894
    %v3905 = vsel %vm1174, %v3896, 0
    %3907 = vmatprep.subr.bf16.mxu0 0
    %3908 = vmatpush1.bf16.msra.mxu0 0
    %3909 = vmatprep.subr.bf16.mxu0 0
    %3910 = vmatpush1.bf16.msra.mxu0 0
    %3911 = vmatprep.subr.bf16.mxu0 0
    %3912 = vmatpush1.bf16.msra.mxu0 0
    %3913 = vmatprep.subr.bf16.mxu0 0
    %3914 = vmatpush1.bf16.msra.mxu0 0
    %3915 = vmatprep.subr.bf16.mxu0 0
    %3916 = vmatpush1.bf16.msra.mxu0 0
    %3917 = vmatprep.subr.bf16.mxu0 0
    %3918 = vmatpush1.bf16.msra.mxu0 0
    %3919 = vmatprep.subr.bf16.mxu0 0
    %3920 = vmatpush1.bf16.msra.mxu0 0
    %3921 = vmatprep.subr.bf16.mxu0 0
    %3922 = vmatpush1.bf16.msra.mxu0 %v3292
    %3923 = vmatprep.subr.bf16.mxu0 0
    %3924 = vmatpush2.bf16.msra.mxu0 0
    %3925 = vmatprep.subr.bf16.mxu0 0
    %3926 = vmatpush2.bf16.msra.mxu0 0
    %3927 = vmatprep.subr.bf16.mxu0 0
    %3928 = vmatpush2.bf16.msra.mxu0 0
    %3929 = vmatprep.subr.bf16.mxu0 0
    %3930 = vmatpush2.bf16.msra.mxu0 0
    %3931 = vmatprep.subr.bf16.mxu0 0
    %3932 = vmatpush2.bf16.msra.mxu0 0
    %3933 = vmatprep.subr.bf16.mxu0 0
    %3934 = vmatpush2.bf16.msra.mxu0 0
    %3935 = vmatprep.subr.bf16.mxu0 0
    %3936 = vmatpush2.bf16.msra.mxu0 0
    %3937 = vmatprep.subr.bf16.mxu0 0
    %3938 = vmatpush2.bf16.msra.mxu0 0
    %3939 = vmatprep.mubr.bf16.mxu0 0
    %3940 = vmatmul.mubr.bf16.gmra.mxu0 %v3905
    %v3941 = vpop.f32.mrf.mxu0
    %v3942 = vadd.f32 0.0, %v3941
    %v3943 = vpop.f32.mrf.mxu0
    %v3944 = vpop.f32.mrf.mxu0
    %v3945 = vadd.f32 0.0, %v3944
    %v3946 = vpop.f32.mrf.mxu0
    %3947 = vdwg.mxu0
    %v3949 = vsel %vm1174, %v3897, 0
    %3951 = vmatprep.subr.bf16.mxu0 0
    %3952 = vmatpush1.bf16.msra.mxu0 0
    %3953 = vmatprep.subr.bf16.mxu0 0
    %3954 = vmatpush1.bf16.msra.mxu0 0
    %3955 = vmatprep.subr.bf16.mxu0 0
    %3956 = vmatpush1.bf16.msra.mxu0 0
    %3957 = vmatprep.subr.bf16.mxu0 0
    %3958 = vmatpush1.bf16.msra.mxu0 0
    %3959 = vmatprep.subr.bf16.mxu0 0
    %3960 = vmatpush1.bf16.msra.mxu0 0
    %3961 = vmatprep.subr.bf16.mxu0 0
    %3962 = vmatpush1.bf16.msra.mxu0 0
    %3963 = vmatprep.subr.bf16.mxu0 0
    %3964 = vmatpush1.bf16.msra.mxu0 0
    %3965 = vmatprep.subr.bf16.mxu0 0
    %3966 = vmatpush1.bf16.msra.mxu0 %v3295
    %3967 = vmatprep.subr.bf16.mxu0 0
    %3968 = vmatpush2.bf16.msra.mxu0 0
    %3969 = vmatprep.subr.bf16.mxu0 0
    %3970 = vmatpush2.bf16.msra.mxu0 0
    %3971 = vmatprep.subr.bf16.mxu0 0
    %3972 = vmatpush2.bf16.msra.mxu0 0
    %3973 = vmatprep.subr.bf16.mxu0 0
    %3974 = vmatpush2.bf16.msra.mxu0 0
    %3975 = vmatprep.subr.bf16.mxu0 0
    %3976 = vmatpush2.bf16.msra.mxu0 0
    %3977 = vmatprep.subr.bf16.mxu0 0
    %3978 = vmatpush2.bf16.msra.mxu0 0
    %3979 = vmatprep.subr.bf16.mxu0 0
    %3980 = vmatpush2.bf16.msra.mxu0 0
    %3981 = vmatprep.subr.bf16.mxu0 0
    %3982 = vmatpush2.bf16.msra.mxu0 0
    %3983 = vmatprep.mubr.bf16.mxu0 0
    %3984 = vmatmul.mubr.bf16.gmra.mxu0 %v3949
    %v3985 = vpop.f32.mrf.mxu0
    %v3986 = vadd.f32 0.0, %v3985
    %v3987 = vpop.f32.mrf.mxu0
    %v3988 = vpop.f32.mrf.mxu0
    %v3989 = vadd.f32 0.0, %v3988
    %v3990 = vpop.f32.mrf.mxu0
    %3991 = vdwg.mxu0
    %v3993 = vsel %vm1174, %v3898, 0
    %3995 = vmatprep.subr.bf16.mxu0 0
    %3996 = vmatpush1.bf16.msra.mxu0 0
    %3997 = vmatprep.subr.bf16.mxu0 0
    %3998 = vmatpush1.bf16.msra.mxu0 0
    %3999 = vmatprep.subr.bf16.mxu0 0
    %4000 = vmatpush1.bf16.msra.mxu0 0
    %4001 = vmatprep.subr.bf16.mxu0 0
    %4002 = vmatpush1.bf16.msra.mxu0 0
    %4003 = vmatprep.subr.bf16.mxu0 0
    %4004 = vmatpush1.bf16.msra.mxu0 0
    %4005 = vmatprep.subr.bf16.mxu0 0
    %4006 = vmatpush1.bf16.msra.mxu0 0
    %4007 = vmatprep.subr.bf16.mxu0 0
    %4008 = vmatpush1.bf16.msra.mxu0 0
    %4009 = vmatprep.subr.bf16.mxu0 0
    %4010 = vmatpush1.bf16.msra.mxu0 %v3327
    %4011 = vmatprep.subr.bf16.mxu0 0
    %4012 = vmatpush2.bf16.msra.mxu0 0
    %4013 = vmatprep.subr.bf16.mxu0 0
    %4014 = vmatpush2.bf16.msra.mxu0 0
    %4015 = vmatprep.subr.bf16.mxu0 0
    %4016 = vmatpush2.bf16.msra.mxu0 0
    %4017 = vmatprep.subr.bf16.mxu0 0
    %4018 = vmatpush2.bf16.msra.mxu0 0
    %4019 = vmatprep.subr.bf16.mxu0 0
    %4020 = vmatpush2.bf16.msra.mxu0 0
    %4021 = vmatprep.subr.bf16.mxu0 0
    %4022 = vmatpush2.bf16.msra.mxu0 0
    %4023 = vmatprep.subr.bf16.mxu0 0
    %4024 = vmatpush2.bf16.msra.mxu0 0
    %4025 = vmatprep.subr.bf16.mxu0 0
    %4026 = vmatpush2.bf16.msra.mxu0 0
    %4027 = vmatprep.mubr.bf16.mxu0 0
    %4028 = vmatmul.mubr.bf16.gmra.mxu0 %v3993
    %v4029 = vpop.f32.mrf.mxu0
    %v4030 = vadd.f32 0.0, %v4029
    %v4031 = vpop.f32.mrf.mxu0
    %v4032 = vpop.f32.mrf.mxu0
    %v4033 = vadd.f32 0.0, %v4032
    %v4034 = vpop.f32.mrf.mxu0
    %4035 = vdwg.mxu0
    %v4037 = vsel %vm1174, %v3899, 0
    %4039 = vmatprep.subr.bf16.mxu0 0
    %4040 = vmatpush1.bf16.msra.mxu0 0
    %4041 = vmatprep.subr.bf16.mxu0 0
    %4042 = vmatpush1.bf16.msra.mxu0 0
    %4043 = vmatprep.subr.bf16.mxu0 0
    %4044 = vmatpush1.bf16.msra.mxu0 0
    %4045 = vmatprep.subr.bf16.mxu0 0
    %4046 = vmatpush1.bf16.msra.mxu0 0
    %4047 = vmatprep.subr.bf16.mxu0 0
    %4048 = vmatpush1.bf16.msra.mxu0 0
    %4049 = vmatprep.subr.bf16.mxu0 0
    %4050 = vmatpush1.bf16.msra.mxu0 0
    %4051 = vmatprep.subr.bf16.mxu0 0
    %4052 = vmatpush1.bf16.msra.mxu0 0
    %4053 = vmatprep.subr.bf16.mxu0 0
    %4054 = vmatpush1.bf16.msra.mxu0 %v3329
    %4055 = vmatprep.subr.bf16.mxu0 0
    %4056 = vmatpush2.bf16.msra.mxu0 0
    %4057 = vmatprep.subr.bf16.mxu0 0
    %4058 = vmatpush2.bf16.msra.mxu0 0
    %4059 = vmatprep.subr.bf16.mxu0 0
    %4060 = vmatpush2.bf16.msra.mxu0 0
    %4061 = vmatprep.subr.bf16.mxu0 0
    %4062 = vmatpush2.bf16.msra.mxu0 0
    %4063 = vmatprep.subr.bf16.mxu0 0
    %4064 = vmatpush2.bf16.msra.mxu0 0
    %4065 = vmatprep.subr.bf16.mxu0 0
    %4066 = vmatpush2.bf16.msra.mxu0 0
    %4067 = vmatprep.subr.bf16.mxu0 0
    %4068 = vmatpush2.bf16.msra.mxu0 0
    %4069 = vmatprep.subr.bf16.mxu0 0
    %4070 = vmatpush2.bf16.msra.mxu0 0
    %4071 = vmatprep.mubr.bf16.mxu0 0
    %4072 = vmatmul.mubr.bf16.gmra.mxu0 %v4037
    %v4073 = vpop.f32.mrf.mxu0
    %v4074 = vadd.f32 0.0, %v4073
    %v4075 = vpop.f32.mrf.mxu0
    %v4076 = vpop.f32.mrf.mxu0
    %v4077 = vadd.f32 0.0, %v4076
    %v4078 = vpop.f32.mrf.mxu0
    %4079 = vdwg.mxu0
    %v4081 = vsel %vm1174, %v3900, 0
    %4083 = vmatprep.subr.bf16.mxu0 0
    %4084 = vmatpush1.bf16.msra.mxu0 0
    %4085 = vmatprep.subr.bf16.mxu0 0
    %4086 = vmatpush1.bf16.msra.mxu0 0
    %4087 = vmatprep.subr.bf16.mxu0 0
    %4088 = vmatpush1.bf16.msra.mxu0 0
    %4089 = vmatprep.subr.bf16.mxu0 0
    %4090 = vmatpush1.bf16.msra.mxu0 0
    %4091 = vmatprep.subr.bf16.mxu0 0
    %4092 = vmatpush1.bf16.msra.mxu0 0
    %4093 = vmatprep.subr.bf16.mxu0 0
    %4094 = vmatpush1.bf16.msra.mxu0 0
    %4095 = vmatprep.subr.bf16.mxu0 0
    %4096 = vmatpush1.bf16.msra.mxu0 0
    %4097 = vmatprep.subr.bf16.mxu0 0
    %4098 = vmatpush1.bf16.msra.mxu0 %v3333
    %4099 = vmatprep.subr.bf16.mxu0 0
    %4100 = vmatpush2.bf16.msra.mxu0 0
    %4101 = vmatprep.subr.bf16.mxu0 0
    %4102 = vmatpush2.bf16.msra.mxu0 0
    %4103 = vmatprep.subr.bf16.mxu0 0
    %4104 = vmatpush2.bf16.msra.mxu0 0
    %4105 = vmatprep.subr.bf16.mxu0 0
    %4106 = vmatpush2.bf16.msra.mxu0 0
    %4107 = vmatprep.subr.bf16.mxu0 0
    %4108 = vmatpush2.bf16.msra.mxu0 0
    %4109 = vmatprep.subr.bf16.mxu0 0
    %4110 = vmatpush2.bf16.msra.mxu0 0
    %4111 = vmatprep.subr.bf16.mxu0 0
    %4112 = vmatpush2.bf16.msra.mxu0 0
    %4113 = vmatprep.subr.bf16.mxu0 0
    %4114 = vmatpush2.bf16.msra.mxu0 0
    %4115 = vmatprep.mubr.bf16.mxu0 0
    %4116 = vmatmul.mubr.bf16.gmra.mxu0 %v4081
    %v4117 = vpop.f32.mrf.mxu0
    %v4118 = vadd.f32 0.0, %v4117
    %v4119 = vpop.f32.mrf.mxu0
    %v4120 = vpop.f32.mrf.mxu0
    %v4121 = vadd.f32 0.0, %v4120
    %v4122 = vpop.f32.mrf.mxu0
    %4123 = vdwg.mxu0
    %v4125 = vsel %vm1174, %v3901, 0
    %4127 = vmatprep.subr.bf16.mxu0 0
    %4128 = vmatpush1.bf16.msra.mxu0 0
    %4129 = vmatprep.subr.bf16.mxu0 0
    %4130 = vmatpush1.bf16.msra.mxu0 0
    %4131 = vmatprep.subr.bf16.mxu0 0
    %4132 = vmatpush1.bf16.msra.mxu0 0
    %4133 = vmatprep.subr.bf16.mxu0 0
    %4134 = vmatpush1.bf16.msra.mxu0 0
    %4135 = vmatprep.subr.bf16.mxu0 0
    %4136 = vmatpush1.bf16.msra.mxu0 0
    %4137 = vmatprep.subr.bf16.mxu0 0
    %4138 = vmatpush1.bf16.msra.mxu0 0
    %4139 = vmatprep.subr.bf16.mxu0 0
    %4140 = vmatpush1.bf16.msra.mxu0 0
    %4141 = vmatprep.subr.bf16.mxu0 0
    %4142 = vmatpush1.bf16.msra.mxu0 %v3335
    %4143 = vmatprep.subr.bf16.mxu0 0
    %4144 = vmatpush2.bf16.msra.mxu0 0
    %4145 = vmatprep.subr.bf16.mxu0 0
    %4146 = vmatpush2.bf16.msra.mxu0 0
    %4147 = vmatprep.subr.bf16.mxu0 0
    %4148 = vmatpush2.bf16.msra.mxu0 0
    %4149 = vmatprep.subr.bf16.mxu0 0
    %4150 = vmatpush2.bf16.msra.mxu0 0
    %4151 = vmatprep.subr.bf16.mxu0 0
    %4152 = vmatpush2.bf16.msra.mxu0 0
    %4153 = vmatprep.subr.bf16.mxu0 0
    %4154 = vmatpush2.bf16.msra.mxu0 0
    %4155 = vmatprep.subr.bf16.mxu0 0
    %4156 = vmatpush2.bf16.msra.mxu0 0
    %4157 = vmatprep.subr.bf16.mxu0 0
    %4158 = vmatpush2.bf16.msra.mxu0 0
    %4159 = vmatprep.mubr.bf16.mxu0 0
    %4160 = vmatmul.mubr.bf16.gmra.mxu0 %v4125
    %v4161 = vpop.f32.mrf.mxu0
    %v4162 = vadd.f32 0.0, %v4161
    %v4163 = vpop.f32.mrf.mxu0
    %v4164 = vpop.f32.mrf.mxu0
    %v4165 = vadd.f32 0.0, %v4164
    %v4166 = vpop.f32.mrf.mxu0
    %4167 = vdwg.mxu0
    %v4169 = vsel %vm1174, %v3902, 0
    %4171 = vmatprep.subr.bf16.mxu0 0
    %4172 = vmatpush1.bf16.msra.mxu0 0
    %4173 = vmatprep.subr.bf16.mxu0 0
    %4174 = vmatpush1.bf16.msra.mxu0 0
    %4175 = vmatprep.subr.bf16.mxu0 0
    %4176 = vmatpush1.bf16.msra.mxu0 0
    %4177 = vmatprep.subr.bf16.mxu0 0
    %4178 = vmatpush1.bf16.msra.mxu0 0
    %4179 = vmatprep.subr.bf16.mxu0 0
    %4180 = vmatpush1.bf16.msra.mxu0 0
    %4181 = vmatprep.subr.bf16.mxu0 0
    %4182 = vmatpush1.bf16.msra.mxu0 0
    %4183 = vmatprep.subr.bf16.mxu0 0
    %4184 = vmatpush1.bf16.msra.mxu0 0
    %4185 = vmatprep.subr.bf16.mxu0 0
    %4186 = vmatpush1.bf16.msra.mxu0 %v3339
    %4187 = vmatprep.subr.bf16.mxu0 0
    %4188 = vmatpush2.bf16.msra.mxu0 0
    %4189 = vmatprep.subr.bf16.mxu0 0
    %4190 = vmatpush2.bf16.msra.mxu0 0
    %4191 = vmatprep.subr.bf16.mxu0 0
    %4192 = vmatpush2.bf16.msra.mxu0 0
    %4193 = vmatprep.subr.bf16.mxu0 0
    %4194 = vmatpush2.bf16.msra.mxu0 0
    %4195 = vmatprep.subr.bf16.mxu0 0
    %4196 = vmatpush2.bf16.msra.mxu0 0
    %4197 = vmatprep.subr.bf16.mxu0 0
    %4198 = vmatpush2.bf16.msra.mxu0 0
    %4199 = vmatprep.subr.bf16.mxu0 0
    %4200 = vmatpush2.bf16.msra.mxu0 0
    %4201 = vmatprep.subr.bf16.mxu0 0
    %4202 = vmatpush2.bf16.msra.mxu0 0
    %4203 = vmatprep.mubr.bf16.mxu0 0
    %4204 = vmatmul.mubr.bf16.gmra.mxu0 %v4169
    %v4205 = vpop.f32.mrf.mxu0
    %v4206 = vadd.f32 0.0, %v4205
    %v4207 = vpop.f32.mrf.mxu0
    %v4208 = vpop.f32.mrf.mxu0
    %v4209 = vadd.f32 0.0, %v4208
    %v4210 = vpop.f32.mrf.mxu0
    %4211 = vdwg.mxu0
    %v4213 = vsel %vm1174, %v3903, 0
    %4215 = vmatprep.subr.bf16.mxu0 0
    %4216 = vmatpush1.bf16.msra.mxu0 0
    %4217 = vmatprep.subr.bf16.mxu0 0
    %4218 = vmatpush1.bf16.msra.mxu0 0
    %4219 = vmatprep.subr.bf16.mxu0 0
    %4220 = vmatpush1.bf16.msra.mxu0 0
    %4221 = vmatprep.subr.bf16.mxu0 0
    %4222 = vmatpush1.bf16.msra.mxu0 0
    %4223 = vmatprep.subr.bf16.mxu0 0
    %4224 = vmatpush1.bf16.msra.mxu0 0
    %4225 = vmatprep.subr.bf16.mxu0 0
    %4226 = vmatpush1.bf16.msra.mxu0 0
    %4227 = vmatprep.subr.bf16.mxu0 0
    %4228 = vmatpush1.bf16.msra.mxu0 0
    %4229 = vmatprep.subr.bf16.mxu0 0
    %4230 = vmatpush1.bf16.msra.mxu0 %v3341
    %4231 = vmatprep.subr.bf16.mxu0 0
    %4232 = vmatpush2.bf16.msra.mxu0 0
    %4233 = vmatprep.subr.bf16.mxu0 0
    %4234 = vmatpush2.bf16.msra.mxu0 0
    %4235 = vmatprep.subr.bf16.mxu0 0
    %4236 = vmatpush2.bf16.msra.mxu0 0
    %4237 = vmatprep.subr.bf16.mxu0 0
    %4238 = vmatpush2.bf16.msra.mxu0 0
    %4239 = vmatprep.subr.bf16.mxu0 0
    %4240 = vmatpush2.bf16.msra.mxu0 0
    %4241 = vmatprep.subr.bf16.mxu0 0
    %4242 = vmatpush2.bf16.msra.mxu0 0
    %4243 = vmatprep.subr.bf16.mxu0 0
    %4244 = vmatpush2.bf16.msra.mxu0 0
    %4245 = vmatprep.subr.bf16.mxu0 0
    %4246 = vmatpush2.bf16.msra.mxu0 0
    %4247 = vmatprep.mubr.bf16.mxu0 0
    %4248 = vmatmul.mubr.bf16.gmra.mxu0 %v4213
    %v4249 = vpop.f32.mrf.mxu0
    %v4250 = vadd.f32 0.0, %v4249
    %v4251 = vpop.f32.mrf.mxu0
    %v4252 = vpop.f32.mrf.mxu0
    %v4253 = vadd.f32 0.0, %v4252
    %v4254 = vpop.f32.mrf.mxu0
    %4255 = vdwg.mxu0
    %v4256 = vpack.c.bf16 %v3945, %v3942
    %v4257 = vpack.c.bf16 %v3989, %v3986
    %v4258 = vpack.c.bf16 %v4033, %v4030
    %v4259 = vpack.c.bf16 %v4077, %v4074
    %v4260 = vpack.c.bf16 %v4121, %v4118
    %v4261 = vpack.c.bf16 %v4165, %v4162
    %v4262 = vpack.c.bf16 %v4209, %v4206
    %v4263 = vpack.c.bf16 %v4253, %v4250
    %s4264 = scalar_lea.vmem [#allocation10], 64
    %v4265 = vld [vmem:[%s4264] sm:$0xf]
    %v4266 = vld [vmem:[%s4264 + $0x4] sm:$0xf]
    %v4267 = vld [vmem:[%s4264 + $0x8] sm:$0xf]
    %v4268 = vld [vmem:[%s4264 + $0xc] sm:$0xf]
    %v4269 = vld [vmem:[%s4264 + $0x10] sm:$0xf]
    %v4270 = vld [vmem:[%s4264 + $0x14] sm:$0xf]
    %v4271 = vld [vmem:[%s4264 + $0x18] sm:$0xf]
    %v4272 = vld [vmem:[%s4264 + $0x1c] sm:$0xf]
    %v4273 = vld [vmem:[%s4264 + $0x20] sm:$0xf]
    %v4274 = vld [vmem:[%s4264 + $0x24] sm:$0xf]
    %v4275 = vld [vmem:[%s4264 + $0x28] sm:$0xf]
    %v4276 = vld [vmem:[%s4264 + $0x2c] sm:$0xf]
    %v4277 = vld [vmem:[%s4264 + $0x30] sm:$0xf]
    %v4278 = vld [vmem:[%s4264 + $0x34] sm:$0xf]
    %v4279 = vld [vmem:[%s4264 + $0x38] sm:$0xf]
    %v4280 = vld [vmem:[%s4264 + $0x3c] sm:$0xf]
    %v4285 = vunpack.c.l.b16 %v4265
    %v4286 = vunpack.c.l.b16 %v4266
    %v4287 = vunpack.c.l.b16 %v4267
    %v4288 = vunpack.c.l.b16 %v4268
    %v4289 = vpack.c.b16 %v4286, %v4285
    %v4290 = vpack.c.b16 %v4288, %v4287
    %v4294 = vsel %vm797, %v4256, 0
    %v4297 = vsel %vm797, %v4257, 0
    %4299 = vmatprep.subr.bf16.mxu0 0
    %4300 = vmatpush1.bf16.msra.mxu0 0
    %4301 = vmatprep.subr.bf16.mxu0 0
    %4302 = vmatpush1.bf16.msra.mxu0 0
    %4303 = vmatprep.subr.bf16.mxu0 0
    %4304 = vmatpush1.bf16.msra.mxu0 0
    %4305 = vmatprep.subr.bf16.mxu0 0
    %4306 = vmatpush1.bf16.msra.mxu0 0
    %4307 = vmatprep.subr.bf16.mxu0 0
    %4308 = vmatpush1.bf16.msra.mxu0 0
    %4309 = vmatprep.subr.bf16.mxu0 0
    %4310 = vmatpush1.bf16.msra.mxu0 0
    %4311 = vmatprep.subr.bf16.mxu0 0
    %4312 = vmatpush1.bf16.msra.mxu0 %v4290
    %4313 = vmatprep.subr.bf16.mxu0 0
    %4314 = vmatpush1.bf16.msra.mxu0 %v4289
    %4315 = vmatprep.subr.bf16.mxu0 0
    %4316 = vmatpush2.bf16.msra.mxu0 0
    %4317 = vmatprep.subr.bf16.mxu0 0
    %4318 = vmatpush2.bf16.msra.mxu0 0
    %4319 = vmatprep.subr.bf16.mxu0 0
    %4320 = vmatpush2.bf16.msra.mxu0 0
    %4321 = vmatprep.subr.bf16.mxu0 0
    %4322 = vmatpush2.bf16.msra.mxu0 0
    %4323 = vmatprep.subr.bf16.mxu0 0
    %4324 = vmatpush2.bf16.msra.mxu0 0
    %4325 = vmatprep.subr.bf16.mxu0 0
    %4326 = vmatpush2.bf16.msra.mxu0 0
    %4327 = vmatprep.subr.bf16.mxu0 0
    %4328 = vmatpush2.bf16.msra.mxu0 0
    %4329 = vmatprep.subr.bf16.mxu0 0
    %4330 = vmatpush2.bf16.msra.mxu0 0
    %4331 = vmatprep.mubr.bf16.mxu0 0
    %4332 = vmatmul.mubr.bf16.gmra.mxu0 %v4294
    %v4333 = vpop.f32.mrf.mxu0
    %v4334 = vadd.f32 0.0, %v4333
    %v4335 = vpop.f32.mrf.mxu0
    %v4336 = vpop.f32.mrf.mxu0
    %v4337 = vadd.f32 0.0, %v4336
    %v4338 = vpop.f32.mrf.mxu0
    %4339 = vmatprep.mubr.bf16.mxu0 0
    %4340 = vmatmul.mubr.bf16.gmra.mxu0 %v4297
    %v4341 = vpop.f32.mrf.mxu0
    %v4342 = vadd.f32 0.0, %v4341
    %v4343 = vpop.f32.mrf.mxu0
    %v4344 = vpop.f32.mrf.mxu0
    %v4345 = vadd.f32 0.0, %v4344
    %v4346 = vpop.f32.mrf.mxu0
    %4347 = vdwg.mxu0
    %v4352 = vunpack.c.l.b16 %v4269
    %v4353 = vunpack.c.l.b16 %v4270
    %v4354 = vunpack.c.l.b16 %v4271
    %v4355 = vunpack.c.l.b16 %v4272
    %v4356 = vpack.c.b16 %v4353, %v4352
    %v4357 = vpack.c.b16 %v4355, %v4354
    %v4361 = vsel %vm797, %v4258, 0
    %v4364 = vsel %vm797, %v4259, 0
    %4366 = vmatprep.subr.bf16.mxu0 0
    %4367 = vmatpush1.bf16.msra.mxu0 0
    %4368 = vmatprep.subr.bf16.mxu0 0
    %4369 = vmatpush1.bf16.msra.mxu0 0
    %4370 = vmatprep.subr.bf16.mxu0 0
    %4371 = vmatpush1.bf16.msra.mxu0 0
    %4372 = vmatprep.subr.bf16.mxu0 0
    %4373 = vmatpush1.bf16.msra.mxu0 0
    %4374 = vmatprep.subr.bf16.mxu0 0
    %4375 = vmatpush1.bf16.msra.mxu0 0
    %4376 = vmatprep.subr.bf16.mxu0 0
    %4377 = vmatpush1.bf16.msra.mxu0 0
    %4378 = vmatprep.subr.bf16.mxu0 0
    %4379 = vmatpush1.bf16.msra.mxu0 %v4357
    %4380 = vmatprep.subr.bf16.mxu0 0
    %4381 = vmatpush1.bf16.msra.mxu0 %v4356
    %4382 = vmatprep.subr.bf16.mxu0 0
    %4383 = vmatpush2.bf16.msra.mxu0 0
    %4384 = vmatprep.subr.bf16.mxu0 0
    %4385 = vmatpush2.bf16.msra.mxu0 0
    %4386 = vmatprep.subr.bf16.mxu0 0
    %4387 = vmatpush2.bf16.msra.mxu0 0
    %4388 = vmatprep.subr.bf16.mxu0 0
    %4389 = vmatpush2.bf16.msra.mxu0 0
    %4390 = vmatprep.subr.bf16.mxu0 0
    %4391 = vmatpush2.bf16.msra.mxu0 0
    %4392 = vmatprep.subr.bf16.mxu0 0
    %4393 = vmatpush2.bf16.msra.mxu0 0
    %4394 = vmatprep.subr.bf16.mxu0 0
    %4395 = vmatpush2.bf16.msra.mxu0 0
    %4396 = vmatprep.subr.bf16.mxu0 0
    %4397 = vmatpush2.bf16.msra.mxu0 0
    %4398 = vmatprep.mubr.bf16.mxu0 0
    %4399 = vmatmul.mubr.bf16.gmra.mxu0 %v4361
    %v4400 = vpop.f32.mrf.mxu0
    %v4401 = vadd.f32 0.0, %v4400
    %v4402 = vpop.f32.mrf.mxu0
    %v4403 = vpop.f32.mrf.mxu0
    %v4404 = vadd.f32 0.0, %v4403
    %v4405 = vpop.f32.mrf.mxu0
    %4406 = vmatprep.mubr.bf16.mxu0 0
    %4407 = vmatmul.mubr.bf16.gmra.mxu0 %v4364
    %v4408 = vpop.f32.mrf.mxu0
    %v4409 = vadd.f32 0.0, %v4408
    %v4410 = vpop.f32.mrf.mxu0
    %v4411 = vpop.f32.mrf.mxu0
    %v4412 = vadd.f32 0.0, %v4411
    %v4413 = vpop.f32.mrf.mxu0
    %4414 = vdwg.mxu0
    %v4419 = vunpack.c.l.b16 %v4273
    %v4420 = vunpack.c.l.b16 %v4274
    %v4421 = vunpack.c.l.b16 %v4275
    %v4422 = vunpack.c.l.b16 %v4276
    %v4423 = vpack.c.b16 %v4420, %v4419
    %v4424 = vpack.c.b16 %v4422, %v4421
    %v4428 = vsel %vm797, %v4260, 0
    %v4431 = vsel %vm797, %v4261, 0
    %4433 = vmatprep.subr.bf16.mxu0 0
    %4434 = vmatpush1.bf16.msra.mxu0 0
    %4435 = vmatprep.subr.bf16.mxu0 0
    %4436 = vmatpush1.bf16.msra.mxu0 0
    %4437 = vmatprep.subr.bf16.mxu0 0
    %4438 = vmatpush1.bf16.msra.mxu0 0
    %4439 = vmatprep.subr.bf16.mxu0 0
    %4440 = vmatpush1.bf16.msra.mxu0 0
    %4441 = vmatprep.subr.bf16.mxu0 0
    %4442 = vmatpush1.bf16.msra.mxu0 0
    %4443 = vmatprep.subr.bf16.mxu0 0
    %4444 = vmatpush1.bf16.msra.mxu0 0
    %4445 = vmatprep.subr.bf16.mxu0 0
    %4446 = vmatpush1.bf16.msra.mxu0 %v4424
    %4447 = vmatprep.subr.bf16.mxu0 0
    %4448 = vmatpush1.bf16.msra.mxu0 %v4423
    %4449 = vmatprep.subr.bf16.mxu0 0
    %4450 = vmatpush2.bf16.msra.mxu0 0
    %4451 = vmatprep.subr.bf16.mxu0 0
    %4452 = vmatpush2.bf16.msra.mxu0 0
    %4453 = vmatprep.subr.bf16.mxu0 0
    %4454 = vmatpush2.bf16.msra.mxu0 0
    %4455 = vmatprep.subr.bf16.mxu0 0
    %4456 = vmatpush2.bf16.msra.mxu0 0
    %4457 = vmatprep.subr.bf16.mxu0 0
    %4458 = vmatpush2.bf16.msra.mxu0 0
    %4459 = vmatprep.subr.bf16.mxu0 0
    %4460 = vmatpush2.bf16.msra.mxu0 0
    %4461 = vmatprep.subr.bf16.mxu0 0
    %4462 = vmatpush2.bf16.msra.mxu0 0
    %4463 = vmatprep.subr.bf16.mxu0 0
    %4464 = vmatpush2.bf16.msra.mxu0 0
    %4465 = vmatprep.mubr.bf16.mxu0 0
    %4466 = vmatmul.mubr.bf16.gmra.mxu0 %v4428
    %v4467 = vpop.f32.mrf.mxu0
    %v4468 = vadd.f32 0.0, %v4467
    %v4469 = vpop.f32.mrf.mxu0
    %v4470 = vpop.f32.mrf.mxu0
    %v4471 = vadd.f32 0.0, %v4470
    %v4472 = vpop.f32.mrf.mxu0
    %4473 = vmatprep.mubr.bf16.mxu0 0
    %4474 = vmatmul.mubr.bf16.gmra.mxu0 %v4431
    %v4475 = vpop.f32.mrf.mxu0
    %v4476 = vadd.f32 0.0, %v4475
    %v4477 = vpop.f32.mrf.mxu0
    %v4478 = vpop.f32.mrf.mxu0
    %v4479 = vadd.f32 0.0, %v4478
    %v4480 = vpop.f32.mrf.mxu0
    %4481 = vdwg.mxu0
    %v4486 = vunpack.c.l.b16 %v4277
    %v4487 = vunpack.c.l.b16 %v4278
    %v4488 = vunpack.c.l.b16 %v4279
    %v4489 = vunpack.c.l.b16 %v4280
    %v4490 = vpack.c.b16 %v4487, %v4486
    %v4491 = vpack.c.b16 %v4489, %v4488
    %v4495 = vsel %vm797, %v4262, 0
    %v4498 = vsel %vm797, %v4263, 0
    %4500 = vmatprep.subr.bf16.mxu0 0
    %4501 = vmatpush1.bf16.msra.mxu0 0
    %4502 = vmatprep.subr.bf16.mxu0 0
    %4503 = vmatpush1.bf16.msra.mxu0 0
    %4504 = vmatprep.subr.bf16.mxu0 0
    %4505 = vmatpush1.bf16.msra.mxu0 0
    %4506 = vmatprep.subr.bf16.mxu0 0
    %4507 = vmatpush1.bf16.msra.mxu0 0
    %4508 = vmatprep.subr.bf16.mxu0 0
    %4509 = vmatpush1.bf16.msra.mxu0 0
    %4510 = vmatprep.subr.bf16.mxu0 0
    %4511 = vmatpush1.bf16.msra.mxu0 0
    %4512 = vmatprep.subr.bf16.mxu0 0
    %4513 = vmatpush1.bf16.msra.mxu0 %v4491
    %4514 = vmatprep.subr.bf16.mxu0 0
    %4515 = vmatpush1.bf16.msra.mxu0 %v4490
    %4516 = vmatprep.subr.bf16.mxu0 0
    %4517 = vmatpush2.bf16.msra.mxu0 0
    %4518 = vmatprep.subr.bf16.mxu0 0
    %4519 = vmatpush2.bf16.msra.mxu0 0
    %4520 = vmatprep.subr.bf16.mxu0 0
    %4521 = vmatpush2.bf16.msra.mxu0 0
    %4522 = vmatprep.subr.bf16.mxu0 0
    %4523 = vmatpush2.bf16.msra.mxu0 0
    %4524 = vmatprep.subr.bf16.mxu0 0
    %4525 = vmatpush2.bf16.msra.mxu0 0
    %4526 = vmatprep.subr.bf16.mxu0 0
    %4527 = vmatpush2.bf16.msra.mxu0 0
    %4528 = vmatprep.subr.bf16.mxu0 0
    %4529 = vmatpush2.bf16.msra.mxu0 0
    %4530 = vmatprep.subr.bf16.mxu0 0
    %4531 = vmatpush2.bf16.msra.mxu0 0
    %4532 = vmatprep.mubr.bf16.mxu0 0
    %4533 = vmatmul.mubr.bf16.gmra.mxu0 %v4495
    %v4534 = vpop.f32.mrf.mxu0
    %v4535 = vadd.f32 0.0, %v4534
    %v4536 = vpop.f32.mrf.mxu0
    %v4537 = vpop.f32.mrf.mxu0
    %v4538 = vadd.f32 0.0, %v4537
    %v4539 = vpop.f32.mrf.mxu0
    %4540 = vmatprep.mubr.bf16.mxu0 0
    %4541 = vmatmul.mubr.bf16.gmra.mxu0 %v4498
    %v4542 = vpop.f32.mrf.mxu0
    %v4543 = vadd.f32 0.0, %v4542
    %v4544 = vpop.f32.mrf.mxu0
    %v4545 = vpop.f32.mrf.mxu0
    %v4546 = vadd.f32 0.0, %v4545
    %v4547 = vpop.f32.mrf.mxu0
    %4548 = vdwg.mxu0
    %v4549 = vadd.f32 %v4334, %v4401
    %v4550 = vadd.f32 %v4549, %v4468
    %v4551 = vadd.f32 %v4550, %v4535
    %v4552 = vadd.f32 %v4337, %v4404
    %v4553 = vadd.f32 %v4552, %v4471
    %v4554 = vadd.f32 %v4553, %v4538
    %v4555 = vadd.f32 %v4342, %v4409
    %v4556 = vadd.f32 %v4555, %v4476
    %v4557 = vadd.f32 %v4556, %v4543
    %v4558 = vadd.f32 %v4345, %v4412
    %v4559 = vadd.f32 %v4558, %v4479
    %v4560 = vadd.f32 %v4559, %v4546
    %v4561 = vadd.f32 %v2935, %v4551
    %v4562 = vadd.f32 %v2936, %v4554
    %v4563 = vadd.f32 %v2937, %v4557
    %v4564 = vadd.f32 %v2938, %v4560
    %s4565 = scalar_lea.vmem %s10, 1
    %v4566 = vld [vmem:[%s4565] sm:$0x1]
    %v4568 = vlaneseq
    %v4569 = vshrl.u32 %v4568, 7
    %v4570 = vsub.s32 0, %v4569
    %v4571 = vrot.slane %v4566, %v4570
    %v4573 = vadd.f32 %v4561, %v4571
    %v4574 = vadd.f32 %v4562, %v4571
    %v4575 = vadd.f32 %v4563, %v4571
    %v4576 = vadd.f32 %v4564, %v4571
    %s4577 = scalar_lea.vmem %s11, 1
    %v4578 = vld [vmem:[%s4577] sm:$0x1]
    %s4579 = scalar_lea.vmem %s12, 1
    %v4580 = vld [vmem:[%s4579] sm:$0x1]
    %4581 = vadd.xlane.f32.xlu0 %v4573
    %v4582 = vpop.xlane.xlu0 %4581
    %4583 = vadd.xlane.f32.xlu0 %v4574
    %v4584 = vpop.xlane.xlu0 %4583
    %4585 = vadd.xlane.f32.xlu0 %v4575
    %v4586 = vpop.xlane.xlu0 %4585
    %4587 = vadd.xlane.f32.xlu0 %v4576
    %v4588 = vpop.xlane.xlu0 %4587
    %v4589 = vmul.f32 %v4582, %v405
    %v4590 = vmul.f32 %v4584, %v405
    %v4591 = vmul.f32 %v4586, %v405
    %v4592 = vmul.f32 %v4588, %v405
    %v4593 = vsub.f32 %v4573, %v4589
    %v4594 = vsub.f32 %v4574, %v4590
    %v4595 = vsub.f32 %v4575, %v4591
    %v4596 = vsub.f32 %v4576, %v4592
    %v4597 = vmul.f32 %v4593, %v4593
    %v4598 = vmul.f32 %v4594, %v4594
    %v4599 = vmul.f32 %v4595, %v4595
    %v4600 = vmul.f32 %v4596, %v4596
    %4601 = vadd.xlane.f32.xlu0 %v4597
    %v4602 = vpop.xlane.xlu0 %4601
    %4603 = vadd.xlane.f32.xlu0 %v4598
    %v4604 = vpop.xlane.xlu0 %4603
    %4605 = vadd.xlane.f32.xlu0 %v4599
    %v4606 = vpop.xlane.xlu0 %4605
    %4607 = vadd.xlane.f32.xlu0 %v4600
    %v4608 = vpop.xlane.xlu0 %4607
    %v4609 = vmul.f32 %v4602, %v405
    %v4610 = vmul.f32 %v4604, %v405
    %v4611 = vmul.f32 %v4606, %v405
    %v4612 = vmul.f32 %v4608, %v405
    %v4613 = vadd.f32 %v4609, 1e-05
    %v4614 = vadd.f32 %v4610, 1e-05
    %v4615 = vadd.f32 %v4611, 1e-05
    %v4616 = vadd.f32 %v4612, 1e-05
    %v4617 = vrsqrt.pop %v4613
    %v4618 = vrsqrt.pop %v4614
    %v4619 = vrsqrt.pop %v4615
    %v4620 = vrsqrt.pop %v4616
    %v4621 = vmul.f32 %v4593, %v4617
    %v4622 = vmul.f32 %v4594, %v4618
    %v4623 = vmul.f32 %v4595, %v4619
    %v4624 = vmul.f32 %v4596, %v4620
    %v4626 = vlaneseq
    %v4627 = vshrl.u32 %v4626, 7
    %v4628 = vsub.s32 0, %v4627
    %v4629 = vrot.slane %v4578, %v4628
    %v4631 = vmul.f32 %v4621, %v4629
    %v4632 = vmul.f32 %v4622, %v4629
    %v4633 = vmul.f32 %v4623, %v4629
    %v4634 = vmul.f32 %v4624, %v4629
    %v4636 = vlaneseq
    %v4637 = vshrl.u32 %v4636, 7
    %v4638 = vsub.s32 0, %v4637
    %v4639 = vrot.slane %v4580, %v4638
    %v4641 = vadd.f32 %v4631, %v4639
    %v4642 = vadd.f32 %v4632, %v4639
    %v4643 = vadd.f32 %v4633, %v4639
    %v4644 = vadd.f32 %v4634, %v4639
    %v4645 = vpack.c.bf16 %v4642, %v4641
    %v4646 = vpack.c.bf16 %v4644, %v4643
    %s4647 = scalar_lea.vmem [#allocation11], 256
    %v4648 = vld [vmem:[%s4647] sm:$0xff]
    %v4649 = vld [vmem:[%s4647 + $0x8] sm:$0xff]
    %v4650 = vld [vmem:[%s4647 + $0x10] sm:$0xff]
    %v4651 = vld [vmem:[%s4647 + $0x18] sm:$0xff]
    %v4652 = vld [vmem:[%s4647 + $0x20] sm:$0xff]
    %v4653 = vld [vmem:[%s4647 + $0x28] sm:$0xff]
    %v4654 = vld [vmem:[%s4647 + $0x30] sm:$0xff]
    %v4655 = vld [vmem:[%s4647 + $0x38] sm:$0xff]
    %v4656 = vld [vmem:[%s4647 + $0x40] sm:$0xff]
    %v4657 = vld [vmem:[%s4647 + $0x48] sm:$0xff]
    %v4658 = vld [vmem:[%s4647 + $0x50] sm:$0xff]
    %v4659 = vld [vmem:[%s4647 + $0x58] sm:$0xff]
    %v4660 = vld [vmem:[%s4647 + $0x60] sm:$0xff]
    %v4661 = vld [vmem:[%s4647 + $0x68] sm:$0xff]
    %v4662 = vld [vmem:[%s4647 + $0x70] sm:$0xff]
    %v4663 = vld [vmem:[%s4647 + $0x78] sm:$0xff]
    %v4664 = vld [vmem:[%s4647 + $0x80] sm:$0xff]
    %v4665 = vld [vmem:[%s4647 + $0x88] sm:$0xff]
    %v4666 = vld [vmem:[%s4647 + $0x90] sm:$0xff]
    %v4667 = vld [vmem:[%s4647 + $0x98] sm:$0xff]
    %v4668 = vld [vmem:[%s4647 + $0xa0] sm:$0xff]
    %v4669 = vld [vmem:[%s4647 + $0xa8] sm:$0xff]
    %v4670 = vld [vmem:[%s4647 + $0xb0] sm:$0xff]
    %v4671 = vld [vmem:[%s4647 + $0xb8] sm:$0xff]
    %v4672 = vld [vmem:[%s4647 + $0xc0] sm:$0xff]
    %v4673 = vld [vmem:[%s4647 + $0xc8] sm:$0xff]
    %v4674 = vld [vmem:[%s4647 + $0xd0] sm:$0xff]
    %v4675 = vld [vmem:[%s4647 + $0xd8] sm:$0xff]
    %v4676 = vld [vmem:[%s4647 + $0xe0] sm:$0xff]
    %v4677 = vld [vmem:[%s4647 + $0xe8] sm:$0xff]
    %v4678 = vld [vmem:[%s4647 + $0xf0] sm:$0xff]
    %v4679 = vld [vmem:[%s4647 + $0xf8] sm:$0xff]
    %s4680 = scalar_lea.vmem %s14, 4
    %v4681 = vld [vmem:[%s4680] sm:$0xf]
    %v4683 = vlaneseq
    %v4684 = vshrl.u32 %v4683, 7
    %v4685 = vsub.s32 0, %v4684
    %v4686 = vrot.slane %v4681, %v4685
    %v4687 = vlaneseq
    %v4688 = vshrl.u32 %v4687, 7
    %v4689 = vsub.s32 1, %v4688
    %v4690 = vrot.slane %v4681, %v4689
    %v4691 = vlaneseq
    %v4692 = vshrl.u32 %v4691, 7
    %v4693 = vsub.s32 2, %v4692
    %v4694 = vrot.slane %v4681, %v4693
    %v4695 = vlaneseq
    %v4696 = vshrl.u32 %v4695, 7
    %v4697 = vsub.s32 3, %v4696
    %v4698 = vrot.slane %v4681, %v4697
    %v4735 = vunpack.c.l.b16 %v4648
    %v4736 = vunpack.c.h.b16 %v4648
    %v4737 = vunpack.c.l.b16 %v4649
    %v4738 = vunpack.c.h.b16 %v4649
    %v4739 = vunpack.c.l.b16 %v4650
    %v4740 = vunpack.c.h.b16 %v4650
    %v4741 = vunpack.c.l.b16 %v4651
    %v4742 = vunpack.c.h.b16 %v4651
    %v4743 = vunpack.c.l.b16 %v4652
    %v4744 = vunpack.c.h.b16 %v4652
    %v4745 = vunpack.c.l.b16 %v4653
    %v4746 = vunpack.c.h.b16 %v4653
    %v4747 = vunpack.c.l.b16 %v4654
    %v4748 = vunpack.c.h.b16 %v4654
    %v4749 = vunpack.c.l.b16 %v4655
    %v4750 = vunpack.c.h.b16 %v4655
    %v4751 = vunpack.c.l.b16 %v4656
    %v4752 = vunpack.c.h.b16 %v4656
    %v4753 = vunpack.c.l.b16 %v4657
    %v4754 = vunpack.c.h.b16 %v4657
    %v4755 = vunpack.c.l.b16 %v4658
    %v4756 = vunpack.c.h.b16 %v4658
    %v4757 = vunpack.c.l.b16 %v4659
    %v4758 = vunpack.c.h.b16 %v4659
    %v4759 = vunpack.c.l.b16 %v4660
    %v4760 = vunpack.c.h.b16 %v4660
    %v4761 = vunpack.c.l.b16 %v4661
    %v4762 = vunpack.c.h.b16 %v4661
    %v4763 = vunpack.c.l.b16 %v4662
    %v4764 = vunpack.c.h.b16 %v4662
    %v4765 = vunpack.c.l.b16 %v4663
    %v4766 = vunpack.c.h.b16 %v4663
    %v4767 = vunpack.c.l.b16 %v4664
    %v4768 = vunpack.c.h.b16 %v4664
    %v4769 = vunpack.c.l.b16 %v4665
    %v4770 = vunpack.c.h.b16 %v4665
    %v4771 = vunpack.c.l.b16 %v4666
    %v4772 = vunpack.c.h.b16 %v4666
    %v4773 = vunpack.c.l.b16 %v4667
    %v4774 = vunpack.c.h.b16 %v4667
    %v4775 = vunpack.c.l.b16 %v4668
    %v4776 = vunpack.c.h.b16 %v4668
    %v4777 = vunpack.c.l.b16 %v4669
    %v4778 = vunpack.c.h.b16 %v4669
    %v4779 = vunpack.c.l.b16 %v4670
    %v4780 = vunpack.c.h.b16 %v4670
    %v4781 = vunpack.c.l.b16 %v4671
    %v4782 = vunpack.c.h.b16 %v4671
    %v4783 = vunpack.c.l.b16 %v4672
    %v4784 = vunpack.c.h.b16 %v4672
    %v4785 = vunpack.c.l.b16 %v4673
    %v4786 = vunpack.c.h.b16 %v4673
    %v4787 = vunpack.c.l.b16 %v4674
    %v4788 = vunpack.c.h.b16 %v4674
    %v4789 = vunpack.c.l.b16 %v4675
    %v4790 = vunpack.c.h.b16 %v4675
    %v4791 = vunpack.c.l.b16 %v4676
    %v4792 = vunpack.c.h.b16 %v4676
    %v4793 = vunpack.c.l.b16 %v4677
    %v4794 = vunpack.c.h.b16 %v4677
    %v4795 = vunpack.c.l.b16 %v4678
    %v4796 = vunpack.c.h.b16 %v4678
    %v4797 = vunpack.c.l.b16 %v4679
    %v4798 = vunpack.c.h.b16 %v4679
    %v4799 = vpack.c.b16 %v4739, %v4735
    %v4800 = vpack.c.b16 %v4740, %v4736
    %v4801 = vpack.c.b16 %v4741, %v4737
    %v4802 = vpack.c.b16 %v4742, %v4738
    %v4803 = vpack.c.b16 %v4747, %v4743
    %v4804 = vpack.c.b16 %v4748, %v4744
    %v4805 = vpack.c.b16 %v4749, %v4745
    %v4806 = vpack.c.b16 %v4750, %v4746
    %v4807 = vpack.c.b16 %v4755, %v4751
    %v4808 = vpack.c.b16 %v4756, %v4752
    %v4809 = vpack.c.b16 %v4757, %v4753
    %v4810 = vpack.c.b16 %v4758, %v4754
    %v4811 = vpack.c.b16 %v4763, %v4759
    %v4812 = vpack.c.b16 %v4764, %v4760
    %v4813 = vpack.c.b16 %v4765, %v4761
    %v4814 = vpack.c.b16 %v4766, %v4762
    %v4815 = vpack.c.b16 %v4771, %v4767
    %v4816 = vpack.c.b16 %v4772, %v4768
    %v4817 = vpack.c.b16 %v4773, %v4769
    %v4818 = vpack.c.b16 %v4774, %v4770
    %v4819 = vpack.c.b16 %v4779, %v4775
    %v4820 = vpack.c.b16 %v4780, %v4776
    %v4821 = vpack.c.b16 %v4781, %v4777
    %v4822 = vpack.c.b16 %v4782, %v4778
    %v4823 = vpack.c.b16 %v4787, %v4783
    %v4824 = vpack.c.b16 %v4788, %v4784
    %v4825 = vpack.c.b16 %v4789, %v4785
    %v4826 = vpack.c.b16 %v4790, %v4786
    %v4827 = vpack.c.b16 %v4795, %v4791
    %v4828 = vpack.c.b16 %v4796, %v4792
    %v4829 = vpack.c.b16 %v4797, %v4793
    %v4830 = vpack.c.b16 %v4798, %v4794
    %4863 = vmatprep.subr.bf16.mxu0 %v4828
    %4864 = vmatpush1.bf16.msra.mxu0 %v4827
    %4865 = vmatprep.subr.bf16.mxu0 %v4824
    %4866 = vmatpush1.bf16.msra.mxu0 %v4823
    %4867 = vmatprep.subr.bf16.mxu0 %v4820
    %4868 = vmatpush1.bf16.msra.mxu0 %v4819
    %4869 = vmatprep.subr.bf16.mxu0 %v4816
    %4870 = vmatpush1.bf16.msra.mxu0 %v4815
    %4871 = vmatprep.subr.bf16.mxu0 %v4812
    %4872 = vmatpush1.bf16.msra.mxu0 %v4811
    %4873 = vmatprep.subr.bf16.mxu0 %v4808
    %4874 = vmatpush1.bf16.msra.mxu0 %v4807
    %4875 = vmatprep.subr.bf16.mxu0 %v4804
    %4876 = vmatpush1.bf16.msra.mxu0 %v4803
    %4877 = vmatprep.subr.bf16.mxu0 %v4800
    %4878 = vmatpush1.bf16.msra.mxu0 %v4799
    %4879 = vmatprep.subr.bf16.mxu0 0
    %4880 = vmatpush2.bf16.msra.mxu0 0
    %4881 = vmatprep.subr.bf16.mxu0 0
    %4882 = vmatpush2.bf16.msra.mxu0 0
    %4883 = vmatprep.subr.bf16.mxu0 0
    %4884 = vmatpush2.bf16.msra.mxu0 0
    %4885 = vmatprep.subr.bf16.mxu0 0
    %4886 = vmatpush2.bf16.msra.mxu0 0
    %4887 = vmatprep.subr.bf16.mxu0 0
    %4888 = vmatpush2.bf16.msra.mxu0 0
    %4889 = vmatprep.subr.bf16.mxu0 0
    %4890 = vmatpush2.bf16.msra.mxu0 0
    %4891 = vmatprep.subr.bf16.mxu0 0
    %4892 = vmatpush2.bf16.msra.mxu0 0
    %4893 = vmatprep.subr.bf16.mxu0 0
    %4894 = vmatpush2.bf16.msra.mxu0 0
    %4895 = vmatprep.mubr.bf16.mxu0 0
    %4896 = vmatmul.mubr.bf16.gmra.mxu0 %v4645
    %v4897 = vpop.f32.mrf.mxu0
    %v4898 = vadd.f32 %v4686, %v4897
    %v4899 = vpop.f32.mrf.mxu0
    %v4900 = vadd.f32 %v4690, %v4899
    %v4901 = vpop.f32.mrf.mxu0
    %v4902 = vadd.f32 %v4686, %v4901
    %v4903 = vpop.f32.mrf.mxu0
    %v4904 = vadd.f32 %v4690, %v4903
    %4905 = vmatprep.mubr.bf16.mxu0 0
    %4906 = vmatmul.mubr.bf16.gmra.mxu0 %v4646
    %v4907 = vpop.f32.mrf.mxu0
    %v4908 = vadd.f32 %v4686, %v4907
    %v4909 = vpop.f32.mrf.mxu0
    %v4910 = vadd.f32 %v4690, %v4909
    %v4911 = vpop.f32.mrf.mxu0
    %v4912 = vadd.f32 %v4686, %v4911
    %v4913 = vpop.f32.mrf.mxu0
    %v4914 = vadd.f32 %v4690, %v4913
    %4915 = vdwg.mxu0
    %4916 = vmatprep.subr.bf16.mxu0 %v4830
    %4917 = vmatpush1.bf16.msra.mxu0 %v4829
    %4918 = vmatprep.subr.bf16.mxu0 %v4826
    %4919 = vmatpush1.bf16.msra.mxu0 %v4825
    %4920 = vmatprep.subr.bf16.mxu0 %v4822
    %4921 = vmatpush1.bf16.msra.mxu0 %v4821
    %4922 = vmatprep.subr.bf16.mxu0 %v4818
    %4923 = vmatpush1.bf16.msra.mxu0 %v4817
    %4924 = vmatprep.subr.bf16.mxu0 %v4814
    %4925 = vmatpush1.bf16.msra.mxu0 %v4813
    %4926 = vmatprep.subr.bf16.mxu0 %v4810
    %4927 = vmatpush1.bf16.msra.mxu0 %v4809
    %4928 = vmatprep.subr.bf16.mxu0 %v4806
    %4929 = vmatpush1.bf16.msra.mxu0 %v4805
    %4930 = vmatprep.subr.bf16.mxu0 %v4802
    %4931 = vmatpush1.bf16.msra.mxu0 %v4801
    %4932 = vmatprep.subr.bf16.mxu0 0
    %4933 = vmatpush2.bf16.msra.mxu0 0
    %4934 = vmatprep.subr.bf16.mxu0 0
    %4935 = vmatpush2.bf16.msra.mxu0 0
    %4936 = vmatprep.subr.bf16.mxu0 0
    %4937 = vmatpush2.bf16.msra.mxu0 0
    %4938 = vmatprep.subr.bf16.mxu0 0
    %4939 = vmatpush2.bf16.msra.mxu0 0
    %4940 = vmatprep.subr.bf16.mxu0 0
    %4941 = vmatpush2.bf16.msra.mxu0 0
    %4942 = vmatprep.subr.bf16.mxu0 0
    %4943 = vmatpush2.bf16.msra.mxu0 0
    %4944 = vmatprep.subr.bf16.mxu0 0
    %4945 = vmatpush2.bf16.msra.mxu0 0
    %4946 = vmatprep.subr.bf16.mxu0 0
    %4947 = vmatpush2.bf16.msra.mxu0 0
    %4948 = vmatprep.mubr.bf16.mxu0 0
    %4949 = vmatmul.mubr.bf16.gmra.mxu0 %v4645
    %v4950 = vpop.f32.mrf.mxu0
    %v4951 = vadd.f32 %v4694, %v4950
    %v4952 = vpop.f32.mrf.mxu0
    %v4953 = vadd.f32 %v4698, %v4952
    %v4954 = vpop.f32.mrf.mxu0
    %v4955 = vadd.f32 %v4694, %v4954
    %v4956 = vpop.f32.mrf.mxu0
    %v4957 = vadd.f32 %v4698, %v4956
    %4958 = vmatprep.mubr.bf16.mxu0 0
    %4959 = vmatmul.mubr.bf16.gmra.mxu0 %v4646
    %v4960 = vpop.f32.mrf.mxu0
    %v4961 = vadd.f32 %v4694, %v4960
    %v4962 = vpop.f32.mrf.mxu0
    %v4963 = vadd.f32 %v4698, %v4962
    %v4964 = vpop.f32.mrf.mxu0
    %v4965 = vadd.f32 %v4694, %v4964
    %v4966 = vpop.f32.mrf.mxu0
    %v4967 = vadd.f32 %v4698, %v4966
    %4968 = vdwg.mxu0
    %v4969 = vmul.f32 %v4898, %v4898
    %v4970 = vmul.f32 %v4900, %v4900
    %v4971 = vmul.f32 %v4951, %v4951
    %v4972 = vmul.f32 %v4953, %v4953
    %v4973 = vmul.f32 %v4902, %v4902
    %v4974 = vmul.f32 %v4904, %v4904
    %v4975 = vmul.f32 %v4955, %v4955
    %v4976 = vmul.f32 %v4957, %v4957
    %v4977 = vmul.f32 %v4908, %v4908
    %v4978 = vmul.f32 %v4910, %v4910
    %v4979 = vmul.f32 %v4961, %v4961
    %v4980 = vmul.f32 %v4963, %v4963
    %v4981 = vmul.f32 %v4912, %v4912
    %v4982 = vmul.f32 %v4914, %v4914
    %v4983 = vmul.f32 %v4965, %v4965
    %v4984 = vmul.f32 %v4967, %v4967
    %v4985 = vmul.f32 %v4898, %v4969
    %v4986 = vmul.f32 %v4900, %v4970
    %v4987 = vmul.f32 %v4951, %v4971
    %v4988 = vmul.f32 %v4953, %v4972
    %v4989 = vmul.f32 %v4902, %v4973
    %v4990 = vmul.f32 %v4904, %v4974
    %v4991 = vmul.f32 %v4955, %v4975
    %v4992 = vmul.f32 %v4957, %v4976
    %v4993 = vmul.f32 %v4908, %v4977
    %v4994 = vmul.f32 %v4910, %v4978
    %v4995 = vmul.f32 %v4961, %v4979
    %v4996 = vmul.f32 %v4963, %v4980
    %v4997 = vmul.f32 %v4912, %v4981
    %v4998 = vmul.f32 %v4914, %v4982
    %v4999 = vmul.f32 %v4965, %v4983
    %v5000 = vmul.f32 %v4967, %v4984
    %v5001 = vmul.f32 %v4985, 0.044715
    %v5002 = vmul.f32 %v4986, 0.044715
    %v5003 = vmul.f32 %v4987, 0.044715
    %v5004 = vmul.f32 %v4988, 0.044715
    %v5005 = vmul.f32 %v4989, 0.044715
    %v5006 = vmul.f32 %v4990, 0.044715
    %v5007 = vmul.f32 %v4991, 0.044715
    %v5008 = vmul.f32 %v4992, 0.044715
    %v5009 = vmul.f32 %v4993, 0.044715
    %v5010 = vmul.f32 %v4994, 0.044715
    %v5011 = vmul.f32 %v4995, 0.044715
    %v5012 = vmul.f32 %v4996, 0.044715
    %v5013 = vmul.f32 %v4997, 0.044715
    %v5014 = vmul.f32 %v4998, 0.044715
    %v5015 = vmul.f32 %v4999, 0.044715
    %v5016 = vmul.f32 %v5000, 0.044715
    %v5017 = vadd.f32 %v4898, %v5001
    %v5018 = vadd.f32 %v4900, %v5002
    %v5019 = vadd.f32 %v4951, %v5003
    %v5020 = vadd.f32 %v4953, %v5004
    %v5021 = vadd.f32 %v4902, %v5005
    %v5022 = vadd.f32 %v4904, %v5006
    %v5023 = vadd.f32 %v4955, %v5007
    %v5024 = vadd.f32 %v4957, %v5008
    %v5025 = vadd.f32 %v4908, %v5009
    %v5026 = vadd.f32 %v4910, %v5010
    %v5027 = vadd.f32 %v4961, %v5011
    %v5028 = vadd.f32 %v4963, %v5012
    %v5029 = vadd.f32 %v4912, %v5013
    %v5030 = vadd.f32 %v4914, %v5014
    %v5031 = vadd.f32 %v4965, %v5015
    %v5032 = vadd.f32 %v4967, %v5016
    %v5033 = vmul.f32 %v5017, 0.7978846
    %v5034 = vmul.f32 %v5018, 0.7978846
    %v5035 = vmul.f32 %v5019, 0.7978846
    %v5036 = vmul.f32 %v5020, 0.7978846
    %v5037 = vmul.f32 %v5021, 0.7978846
    %v5038 = vmul.f32 %v5022, 0.7978846
    %v5039 = vmul.f32 %v5023, 0.7978846
    %v5040 = vmul.f32 %v5024, 0.7978846
    %v5041 = vmul.f32 %v5025, 0.7978846
    %v5042 = vmul.f32 %v5026, 0.7978846
    %v5043 = vmul.f32 %v5027, 0.7978846
    %v5044 = vmul.f32 %v5028, 0.7978846
    %v5045 = vmul.f32 %v5029, 0.7978846
    %v5046 = vmul.f32 %v5030, 0.7978846
    %v5047 = vmul.f32 %v5031, 0.7978846
    %v5048 = vmul.f32 %v5032, 0.7978846
    %v5049 = vtanh.pop %v5033
    %v5050 = vtanh.pop %v5034
    %v5051 = vtanh.pop %v5035
    %v5052 = vtanh.pop %v5036
    %v5053 = vtanh.pop %v5037
    %v5054 = vtanh.pop %v5038
    %v5055 = vtanh.pop %v5039
    %v5056 = vtanh.pop %v5040
    %v5057 = vtanh.pop %v5041
    %v5058 = vtanh.pop %v5042
    %v5059 = vtanh.pop %v5043
    %v5060 = vtanh.pop %v5044
    %v5061 = vtanh.pop %v5045
    %v5062 = vtanh.pop %v5046
    %v5063 = vtanh.pop %v5047
    %v5064 = vtanh.pop %v5048
    %v5065 = vadd.f32 %v5049, 1.0
    %v5066 = vadd.f32 %v5050, 1.0
    %v5067 = vadd.f32 %v5051, 1.0
    %v5068 = vadd.f32 %v5052, 1.0
    %v5069 = vadd.f32 %v5053, 1.0
    %v5070 = vadd.f32 %v5054, 1.0
    %v5071 = vadd.f32 %v5055, 1.0
    %v5072 = vadd.f32 %v5056, 1.0
    %v5073 = vadd.f32 %v5057, 1.0
    %v5074 = vadd.f32 %v5058, 1.0
    %v5075 = vadd.f32 %v5059, 1.0
    %v5076 = vadd.f32 %v5060, 1.0
    %v5077 = vadd.f32 %v5061, 1.0
    %v5078 = vadd.f32 %v5062, 1.0
    %v5079 = vadd.f32 %v5063, 1.0
    %v5080 = vadd.f32 %v5064, 1.0
    %v5081 = vmul.f32 %v5065, 0.5
    %v5082 = vmul.f32 %v5066, 0.5
    %v5083 = vmul.f32 %v5067, 0.5
    %v5084 = vmul.f32 %v5068, 0.5
    %v5085 = vmul.f32 %v5069, 0.5
    %v5086 = vmul.f32 %v5070, 0.5
    %v5087 = vmul.f32 %v5071, 0.5
    %v5088 = vmul.f32 %v5072, 0.5
    %v5089 = vmul.f32 %v5073, 0.5
    %v5090 = vmul.f32 %v5074, 0.5
    %v5091 = vmul.f32 %v5075, 0.5
    %v5092 = vmul.f32 %v5076, 0.5
    %v5093 = vmul.f32 %v5077, 0.5
    %v5094 = vmul.f32 %v5078, 0.5
    %v5095 = vmul.f32 %v5079, 0.5
    %v5096 = vmul.f32 %v5080, 0.5
    %v5097 = vmul.f32 %v4898, %v5081
    %v5098 = vmul.f32 %v4900, %v5082
    %v5099 = vmul.f32 %v4951, %v5083
    %v5100 = vmul.f32 %v4953, %v5084
    %v5101 = vmul.f32 %v4902, %v5085
    %v5102 = vmul.f32 %v4904, %v5086
    %v5103 = vmul.f32 %v4955, %v5087
    %v5104 = vmul.f32 %v4957, %v5088
    %v5105 = vmul.f32 %v4908, %v5089
    %v5106 = vmul.f32 %v4910, %v5090
    %v5107 = vmul.f32 %v4961, %v5091
    %v5108 = vmul.f32 %v4963, %v5092
    %v5109 = vmul.f32 %v4912, %v5093
    %v5110 = vmul.f32 %v4914, %v5094
    %v5111 = vmul.f32 %v4965, %v5095
    %v5112 = vmul.f32 %v4967, %v5096
    %v5113 = vpack.c.bf16 %v5101, %v5097
    %v5114 = vpack.c.bf16 %v5102, %v5098
    %v5115 = vpack.c.bf16 %v5103, %v5099
    %v5116 = vpack.c.bf16 %v5104, %v5100
    %v5117 = vpack.c.bf16 %v5109, %v5105
    %v5118 = vpack.c.bf16 %v5110, %v5106
    %v5119 = vpack.c.bf16 %v5111, %v5107
    %v5120 = vpack.c.bf16 %v5112, %v5108
    %s5121 = scalar_lea.vmem [#allocation13], 256
    %v5122 = vld [vmem:[%s5121] sm:$0xf]
    %v5123 = vld [vmem:[%s5121 + $0x4] sm:$0xf]
    %v5124 = vld [vmem:[%s5121 + $0x8] sm:$0xf]
    %v5125 = vld [vmem:[%s5121 + $0xc] sm:$0xf]
    %v5126 = vld [vmem:[%s5121 + $0x10] sm:$0xf]
    %v5127 = vld [vmem:[%s5121 + $0x14] sm:$0xf]
    %v5128 = vld [vmem:[%s5121 + $0x18] sm:$0xf]
    %v5129 = vld [vmem:[%s5121 + $0x1c] sm:$0xf]
    %v5130 = vld [vmem:[%s5121 + $0x20] sm:$0xf]
    %v5131 = vld [vmem:[%s5121 + $0x24] sm:$0xf]
    %v5132 = vld [vmem:[%s5121 + $0x28] sm:$0xf]
    %v5133 = vld [vmem:[%s5121 + $0x2c] sm:$0xf]
    %v5134 = vld [vmem:[%s5121 + $0x30] sm:$0xf]
    %v5135 = vld [vmem:[%s5121 + $0x34] sm:$0xf]
    %v5136 = vld [vmem:[%s5121 + $0x38] sm:$0xf]
    %v5137 = vld [vmem:[%s5121 + $0x3c] sm:$0xf]
    %v5138 = vld [vmem:[%s5121 + $0x40] sm:$0xf]
    %v5139 = vld [vmem:[%s5121 + $0x44] sm:$0xf]
    %v5140 = vld [vmem:[%s5121 + $0x48] sm:$0xf]
    %v5141 = vld [vmem:[%s5121 + $0x4c] sm:$0xf]
    %v5142 = vld [vmem:[%s5121 + $0x50] sm:$0xf]
    %v5143 = vld [vmem:[%s5121 + $0x54] sm:$0xf]
    %v5144 = vld [vmem:[%s5121 + $0x58] sm:$0xf]
    %v5145 = vld [vmem:[%s5121 + $0x5c] sm:$0xf]
    %v5146 = vld [vmem:[%s5121 + $0x60] sm:$0xf]
    %v5147 = vld [vmem:[%s5121 + $0x64] sm:$0xf]
    %v5148 = vld [vmem:[%s5121 + $0x68] sm:$0xf]
    %v5149 = vld [vmem:[%s5121 + $0x6c] sm:$0xf]
    %v5150 = vld [vmem:[%s5121 + $0x70] sm:$0xf]
    %v5151 = vld [vmem:[%s5121 + $0x74] sm:$0xf]
    %v5152 = vld [vmem:[%s5121 + $0x78] sm:$0xf]
    %v5153 = vld [vmem:[%s5121 + $0x7c] sm:$0xf]
    %v5154 = vld [vmem:[%s5121 + $0x80] sm:$0xf]
    %v5155 = vld [vmem:[%s5121 + $0x84] sm:$0xf]
    %v5156 = vld [vmem:[%s5121 + $0x88] sm:$0xf]
    %v5157 = vld [vmem:[%s5121 + $0x8c] sm:$0xf]
    %v5158 = vld [vmem:[%s5121 + $0x90] sm:$0xf]
    %v5159 = vld [vmem:[%s5121 + $0x94] sm:$0xf]
    %v5160 = vld [vmem:[%s5121 + $0x98] sm:$0xf]
    %v5161 = vld [vmem:[%s5121 + $0x9c] sm:$0xf]
    %v5162 = vld [vmem:[%s5121 + $0xa0] sm:$0xf]
    %v5163 = vld [vmem:[%s5121 + $0xa4] sm:$0xf]
    %v5164 = vld [vmem:[%s5121 + $0xa8] sm:$0xf]
    %v5165 = vld [vmem:[%s5121 + $0xac] sm:$0xf]
    %v5166 = vld [vmem:[%s5121 + $0xb0] sm:$0xf]
    %v5167 = vld [vmem:[%s5121 + $0xb4] sm:$0xf]
    %v5168 = vld [vmem:[%s5121 + $0xb8] sm:$0xf]
    %v5169 = vld [vmem:[%s5121 + $0xbc] sm:$0xf]
    %v5170 = vld [vmem:[%s5121 + $0xc0] sm:$0xf]
    %v5171 = vld [vmem:[%s5121 + $0xc4] sm:$0xf]
    %v5172 = vld [vmem:[%s5121 + $0xc8] sm:$0xf]
    %v5173 = vld [vmem:[%s5121 + $0xcc] sm:$0xf]
    %v5174 = vld [vmem:[%s5121 + $0xd0] sm:$0xf]
    %v5175 = vld [vmem:[%s5121 + $0xd4] sm:$0xf]
    %v5176 = vld [vmem:[%s5121 + $0xd8] sm:$0xf]
    %v5177 = vld [vmem:[%s5121 + $0xdc] sm:$0xf]
    %v5178 = vld [vmem:[%s5121 + $0xe0] sm:$0xf]
    %v5179 = vld [vmem:[%s5121 + $0xe4] sm:$0xf]
    %v5180 = vld [vmem:[%s5121 + $0xe8] sm:$0xf]
    %v5181 = vld [vmem:[%s5121 + $0xec] sm:$0xf]
    %v5182 = vld [vmem:[%s5121 + $0xf0] sm:$0xf]
    %v5183 = vld [vmem:[%s5121 + $0xf4] sm:$0xf]
    %v5184 = vld [vmem:[%s5121 + $0xf8] sm:$0xf]
    %v5185 = vld [vmem:[%s5121 + $0xfc] sm:$0xf]
    %v5250 = vunpack.c.l.b16 %v5122
    %v5251 = vunpack.c.l.b16 %v5123
    %v5252 = vunpack.c.l.b16 %v5124
    %v5253 = vunpack.c.l.b16 %v5125
    %v5254 = vunpack.c.l.b16 %v5126
    %v5255 = vunpack.c.l.b16 %v5127
    %v5256 = vunpack.c.l.b16 %v5128
    %v5257 = vunpack.c.l.b16 %v5129
    %v5258 = vunpack.c.l.b16 %v5130
    %v5259 = vunpack.c.l.b16 %v5131
    %v5260 = vunpack.c.l.b16 %v5132
    %v5261 = vunpack.c.l.b16 %v5133
    %v5262 = vunpack.c.l.b16 %v5134
    %v5263 = vunpack.c.l.b16 %v5135
    %v5264 = vunpack.c.l.b16 %v5136
    %v5265 = vunpack.c.l.b16 %v5137
    %v5266 = vunpack.c.l.b16 %v5138
    %v5267 = vunpack.c.l.b16 %v5139
    %v5268 = vunpack.c.l.b16 %v5140
    %v5269 = vunpack.c.l.b16 %v5141
    %v5270 = vunpack.c.l.b16 %v5142
    %v5271 = vunpack.c.l.b16 %v5143
    %v5272 = vunpack.c.l.b16 %v5144
    %v5273 = vunpack.c.l.b16 %v5145
    %v5274 = vunpack.c.l.b16 %v5146
    %v5275 = vunpack.c.l.b16 %v5147
    %v5276 = vunpack.c.l.b16 %v5148
    %v5277 = vunpack.c.l.b16 %v5149
    %v5278 = vunpack.c.l.b16 %v5150
    %v5279 = vunpack.c.l.b16 %v5151
    %v5280 = vunpack.c.l.b16 %v5152
    %v5281 = vunpack.c.l.b16 %v5153
    %v5282 = vunpack.c.l.b16 %v5154
    %v5283 = vunpack.c.l.b16 %v5155
    %v5284 = vunpack.c.l.b16 %v5156
    %v5285 = vunpack.c.l.b16 %v5157
    %v5286 = vunpack.c.l.b16 %v5158
    %v5287 = vunpack.c.l.b16 %v5159
    %v5288 = vunpack.c.l.b16 %v5160
    %v5289 = vunpack.c.l.b16 %v5161
    %v5290 = vunpack.c.l.b16 %v5162
    %v5291 = vunpack.c.l.b16 %v5163
    %v5292 = vunpack.c.l.b16 %v5164
    %v5293 = vunpack.c.l.b16 %v5165
    %v5294 = vunpack.c.l.b16 %v5166
    %v5295 = vunpack.c.l.b16 %v5167
    %v5296 = vunpack.c.l.b16 %v5168
    %v5297 = vunpack.c.l.b16 %v5169
    %v5298 = vunpack.c.l.b16 %v5170
    %v5299 = vunpack.c.l.b16 %v5171
    %v5300 = vunpack.c.l.b16 %v5172
    %v5301 = vunpack.c.l.b16 %v5173
    %v5302 = vunpack.c.l.b16 %v5174
    %v5303 = vunpack.c.l.b16 %v5175
    %v5304 = vunpack.c.l.b16 %v5176
    %v5305 = vunpack.c.l.b16 %v5177
    %v5306 = vunpack.c.l.b16 %v5178
    %v5307 = vunpack.c.l.b16 %v5179
    %v5308 = vunpack.c.l.b16 %v5180
    %v5309 = vunpack.c.l.b16 %v5181
    %v5310 = vunpack.c.l.b16 %v5182
    %v5311 = vunpack.c.l.b16 %v5183
    %v5312 = vunpack.c.l.b16 %v5184
    %v5313 = vunpack.c.l.b16 %v5185
    %v5314 = vpack.c.b16 %v5251, %v5250
    %v5315 = vpack.c.b16 %v5253, %v5252
    %v5316 = vpack.c.b16 %v5255, %v5254
    %v5317 = vpack.c.b16 %v5257, %v5256
    %v5318 = vpack.c.b16 %v5259, %v5258
    %v5319 = vpack.c.b16 %v5261, %v5260
    %v5320 = vpack.c.b16 %v5263, %v5262
    %v5321 = vpack.c.b16 %v5265, %v5264
    %v5322 = vpack.c.b16 %v5267, %v5266
    %v5323 = vpack.c.b16 %v5269, %v5268
    %v5324 = vpack.c.b16 %v5271, %v5270
    %v5325 = vpack.c.b16 %v5273, %v5272
    %v5326 = vpack.c.b16 %v5275, %v5274
    %v5327 = vpack.c.b16 %v5277, %v5276
    %v5328 = vpack.c.b16 %v5279, %v5278
    %v5329 = vpack.c.b16 %v5281, %v5280
    %v5330 = vpack.c.b16 %v5283, %v5282
    %v5331 = vpack.c.b16 %v5285, %v5284
    %v5332 = vpack.c.b16 %v5287, %v5286
    %v5333 = vpack.c.b16 %v5289, %v5288
    %v5334 = vpack.c.b16 %v5291, %v5290
    %v5335 = vpack.c.b16 %v5293, %v5292
    %v5336 = vpack.c.b16 %v5295, %v5294
    %v5337 = vpack.c.b16 %v5297, %v5296
    %v5338 = vpack.c.b16 %v5299, %v5298
    %v5339 = vpack.c.b16 %v5301, %v5300
    %v5340 = vpack.c.b16 %v5303, %v5302
    %v5341 = vpack.c.b16 %v5305, %v5304
    %v5342 = vpack.c.b16 %v5307, %v5306
    %v5343 = vpack.c.b16 %v5309, %v5308
    %v5344 = vpack.c.b16 %v5311, %v5310
    %v5345 = vpack.c.b16 %v5313, %v5312
    %5378 = vmatprep.subr.bf16.mxu0 0
    %5379 = vmatpush1.bf16.msra.mxu0 %v5321
    %5380 = vmatprep.subr.bf16.mxu0 0
    %5381 = vmatpush1.bf16.msra.mxu0 %v5320
    %5382 = vmatprep.subr.bf16.mxu0 0
    %5383 = vmatpush1.bf16.msra.mxu0 %v5319
    %5384 = vmatprep.subr.bf16.mxu0 0
    %5385 = vmatpush1.bf16.msra.mxu0 %v5318
    %5386 = vmatprep.subr.bf16.mxu0 0
    %5387 = vmatpush1.bf16.msra.mxu0 %v5317
    %5388 = vmatprep.subr.bf16.mxu0 0
    %5389 = vmatpush1.bf16.msra.mxu0 %v5316
    %5390 = vmatprep.subr.bf16.mxu0 0
    %5391 = vmatpush1.bf16.msra.mxu0 %v5315
    %5392 = vmatprep.subr.bf16.mxu0 0
    %5393 = vmatpush1.bf16.msra.mxu0 %v5314
    %5394 = vmatprep.subr.bf16.mxu0 0
    %5395 = vmatpush2.bf16.msra.mxu0 %v5329
    %5396 = vmatprep.subr.bf16.mxu0 0
    %5397 = vmatpush2.bf16.msra.mxu0 %v5328
    %5398 = vmatprep.subr.bf16.mxu0 0
    %5399 = vmatpush2.bf16.msra.mxu0 %v5327
    %5400 = vmatprep.subr.bf16.mxu0 0
    %5401 = vmatpush2.bf16.msra.mxu0 %v5326
    %5402 = vmatprep.subr.bf16.mxu0 0
    %5403 = vmatpush2.bf16.msra.mxu0 %v5325
    %5404 = vmatprep.subr.bf16.mxu0 0
    %5405 = vmatpush2.bf16.msra.mxu0 %v5324
    %5406 = vmatprep.subr.bf16.mxu0 0
    %5407 = vmatpush2.bf16.msra.mxu0 %v5323
    %5408 = vmatprep.subr.bf16.mxu0 0
    %5409 = vmatpush2.bf16.msra.mxu0 %v5322
    %5410 = vmatprep.mubr.bf16.mxu0 %v5114
    %5411 = vmatmul.mubr.bf16.gmra.mxu0 %v5113
    %v5412 = vpop.f32.mrf.mxu0
    %v5413 = vadd.f32 0.0, %v5412
    %v5414 = vpop.f32.mrf.mxu0
    %v5415 = vpop.f32.mrf.mxu0
    %v5416 = vadd.f32 0.0, %v5415
    %v5417 = vpop.f32.mrf.mxu0
    %5418 = vmatprep.mubr.bf16.mxu0 %v5118
    %5419 = vmatmul.mubr.bf16.gmra.mxu0 %v5117
    %v5420 = vpop.f32.mrf.mxu0
    %v5421 = vadd.f32 0.0, %v5420
    %v5422 = vpop.f32.mrf.mxu0
    %v5423 = vpop.f32.mrf.mxu0
    %v5424 = vadd.f32 0.0, %v5423
    %v5425 = vpop.f32.mrf.mxu0
    %5426 = vdwg.mxu0
    %5427 = vmatprep.subr.bf16.mxu0 0
    %5428 = vmatpush1.bf16.msra.mxu0 %v5337
    %5429 = vmatprep.subr.bf16.mxu0 0
    %5430 = vmatpush1.bf16.msra.mxu0 %v5336
    %5431 = vmatprep.subr.bf16.mxu0 0
    %5432 = vmatpush1.bf16.msra.mxu0 %v5335
    %5433 = vmatprep.subr.bf16.mxu0 0
    %5434 = vmatpush1.bf16.msra.mxu0 %v5334
    %5435 = vmatprep.subr.bf16.mxu0 0
    %5436 = vmatpush1.bf16.msra.mxu0 %v5333
    %5437 = vmatprep.subr.bf16.mxu0 0
    %5438 = vmatpush1.bf16.msra.mxu0 %v5332
    %5439 = vmatprep.subr.bf16.mxu0 0
    %5440 = vmatpush1.bf16.msra.mxu0 %v5331
    %5441 = vmatprep.subr.bf16.mxu0 0
    %5442 = vmatpush1.bf16.msra.mxu0 %v5330
    %5443 = vmatprep.subr.bf16.mxu0 0
    %5444 = vmatpush2.bf16.msra.mxu0 %v5345
    %5445 = vmatprep.subr.bf16.mxu0 0
    %5446 = vmatpush2.bf16.msra.mxu0 %v5344
    %5447 = vmatprep.subr.bf16.mxu0 0
    %5448 = vmatpush2.bf16.msra.mxu0 %v5343
    %5449 = vmatprep.subr.bf16.mxu0 0
    %5450 = vmatpush2.bf16.msra.mxu0 %v5342
    %5451 = vmatprep.subr.bf16.mxu0 0
    %5452 = vmatpush2.bf16.msra.mxu0 %v5341
    %5453 = vmatprep.subr.bf16.mxu0 0
    %5454 = vmatpush2.bf16.msra.mxu0 %v5340
    %5455 = vmatprep.subr.bf16.mxu0 0
    %5456 = vmatpush2.bf16.msra.mxu0 %v5339
    %5457 = vmatprep.subr.bf16.mxu0 0
    %5458 = vmatpush2.bf16.msra.mxu0 %v5338
    %5459 = vmatprep.mubr.bf16.mxu0 %v5116
    %5460 = vmatmul.mubr.bf16.gmra.mxu0 %v5115
    %v5461 = vpop.f32.mrf.mxu0
    %v5462 = vadd.f32 %v5413, %v5461
    %v5463 = vpop.f32.mrf.mxu0
    %v5464 = vpop.f32.mrf.mxu0
    %v5465 = vadd.f32 %v5416, %v5464
    %v5466 = vpop.f32.mrf.mxu0
    %5467 = vmatprep.mubr.bf16.mxu0 %v5120
    %5468 = vmatmul.mubr.bf16.gmra.mxu0 %v5119
    %v5469 = vpop.f32.mrf.mxu0
    %v5470 = vadd.f32 %v5421, %v5469
    %v5471 = vpop.f32.mrf.mxu0
    %v5472 = vpop.f32.mrf.mxu0
    %v5473 = vadd.f32 %v5424, %v5472
    %v5474 = vpop.f32.mrf.mxu0
    %5475 = vdwg.mxu0
    %v5476 = vadd.f32 %v4573, %v5462
    %v5477 = vadd.f32 %v4574, %v5465
    %v5478 = vadd.f32 %v4575, %v5470
    %v5479 = vadd.f32 %v4576, %v5473
    %s5480 = scalar_lea.vmem %s16, 1
    %v5481 = vld [vmem:[%s5480] sm:$0x1]
    %v5483 = vlaneseq
    %v5484 = vshrl.u32 %v5483, 7
    %v5485 = vsub.s32 0, %v5484
    %v5486 = vrot.slane %v5481, %v5485
    %v5488 = vadd.f32 %v5476, %v5486
    %v5489 = vadd.f32 %v5477, %v5486
    %v5490 = vadd.f32 %v5478, %v5486
    %v5491 = vadd.f32 %v5479, %v5486
    %v5492 = vld [vmem:[%s17] sm:$0x1]
    %v5493 = vld [vmem:[%s18] sm:$0x1]
    %5494 = vadd.xlane.f32.xlu0 %v5488
    %v5495 = vpop.xlane.xlu0 %5494
    %5496 = vadd.xlane.f32.xlu0 %v5489
    %v5497 = vpop.xlane.xlu0 %5496
    %5498 = vadd.xlane.f32.xlu0 %v5490
    %v5499 = vpop.xlane.xlu0 %5498
    %5500 = vadd.xlane.f32.xlu0 %v5491
    %v5501 = vpop.xlane.xlu0 %5500
    %v5502 = vmul.f32 %v5495, %v405
    %v5503 = vmul.f32 %v5497, %v405
    %v5504 = vmul.f32 %v5499, %v405
    %v5505 = vmul.f32 %v5501, %v405
    %v5506 = vsub.f32 %v5488, %v5502
    %v5507 = vsub.f32 %v5489, %v5503
    %v5508 = vsub.f32 %v5490, %v5504
    %v5509 = vsub.f32 %v5491, %v5505
    %v5510 = vmul.f32 %v5506, %v5506
    %v5511 = vmul.f32 %v5507, %v5507
    %v5512 = vmul.f32 %v5508, %v5508
    %v5513 = vmul.f32 %v5509, %v5509
    %5514 = vadd.xlane.f32.xlu0 %v5510
    %v5515 = vpop.xlane.xlu0 %5514
    %5516 = vadd.xlane.f32.xlu0 %v5511
    %v5517 = vpop.xlane.xlu0 %5516
    %5518 = vadd.xlane.f32.xlu0 %v5512
    %v5519 = vpop.xlane.xlu0 %5518
    %5520 = vadd.xlane.f32.xlu0 %v5513
    %v5521 = vpop.xlane.xlu0 %5520
    %v5522 = vmul.f32 %v5515, %v405
    %v5523 = vmul.f32 %v5517, %v405
    %v5524 = vmul.f32 %v5519, %v405
    %v5525 = vmul.f32 %v5521, %v405
    %v5526 = vadd.f32 %v5522, 1e-05
    %v5527 = vadd.f32 %v5523, 1e-05
    %v5528 = vadd.f32 %v5524, 1e-05
    %v5529 = vadd.f32 %v5525, 1e-05
    %v5530 = vrsqrt.pop %v5526
    %v5531 = vrsqrt.pop %v5527
    %v5532 = vrsqrt.pop %v5528
    %v5533 = vrsqrt.pop %v5529
    %v5534 = vmul.f32 %v5506, %v5530
    %v5535 = vmul.f32 %v5507, %v5531
    %v5536 = vmul.f32 %v5508, %v5532
    %v5537 = vmul.f32 %v5509, %v5533
    %v5539 = vlaneseq
    %v5540 = vshrl.u32 %v5539, 7
    %v5541 = vsub.s32 0, %v5540
    %v5542 = vrot.slane %v5492, %v5541
    %v5544 = vmul.f32 %v5534, %v5542
    %v5545 = vmul.f32 %v5535, %v5542
    %v5546 = vmul.f32 %v5536, %v5542
    %v5547 = vmul.f32 %v5537, %v5542
    %v5549 = vlaneseq
    %v5550 = vshrl.u32 %v5549, 7
    %v5551 = vsub.s32 0, %v5550
    %v5552 = vrot.slane %v5493, %v5551
    %v5554 = vadd.f32 %v5544, %v5552
    %v5555 = vadd.f32 %v5545, %v5552
    %v5556 = vadd.f32 %v5546, %v5552
    %v5557 = vadd.f32 %v5547, %v5552
    %v5558 = vpack.c.bf16 %v5555, %v5554
    %v5559 = vpack.c.bf16 %v5557, %v5556
    %v5560 = vld [vmem:[#allocation14] sm:$0xff]
    %v5561 = vld [vmem:[#allocation14 + $0x8] sm:$0xff]
    %v5562 = vld [vmem:[#allocation14 + $0x10] sm:$0xff]
    %v5563 = vld [vmem:[#allocation14 + $0x18] sm:$0xff]
    %v5564 = vld [vmem:[#allocation14 + $0x20] sm:$0xff]
    %v5565 = vld [vmem:[#allocation14 + $0x28] sm:$0xff]
    %v5566 = vld [vmem:[#allocation14 + $0x30] sm:$0xff]
    %v5567 = vld [vmem:[#allocation14 + $0x38] sm:$0xff]
    %v5568 = vld [vmem:[#allocation14 + $0x40] sm:$0xff]
    %v5569 = vld [vmem:[#allocation14 + $0x48] sm:$0xff]
    %v5570 = vld [vmem:[#allocation14 + $0x50] sm:$0xff]
    %v5571 = vld [vmem:[#allocation14 + $0x58] sm:$0xff]
    %v5572 = vld [vmem:[#allocation14 + $0x60] sm:$0xff]
    %v5573 = vld [vmem:[#allocation14 + $0x68] sm:$0xff]
    %v5574 = vld [vmem:[#allocation14 + $0x70] sm:$0xff]
    %v5575 = vld [vmem:[#allocation14 + $0x78] sm:$0xff]
    %v5576 = vld [vmem:[%s20] sm:$0x3]
    %v5578 = vlaneseq
    %v5579 = vshrl.u32 %v5578, 7
    %v5580 = vsub.s32 0, %v5579
    %v5581 = vrot.slane %v5576, %v5580
    %v5582 = vlaneseq
    %v5583 = vshrl.u32 %v5582, 7
    %v5584 = vsub.s32 1, %v5583
    %v5585 = vrot.slane %v5576, %v5584
    %v5604 = vunpack.c.l.b16 %v5560
    %v5605 = vunpack.c.h.b16 %v5560
    %v5606 = vunpack.c.l.b16 %v5561
    %v5607 = vunpack.c.h.b16 %v5561
    %v5608 = vunpack.c.l.b16 %v5562
    %v5609 = vunpack.c.h.b16 %v5562
    %v5610 = vunpack.c.l.b16 %v5563
    %v5611 = vunpack.c.h.b16 %v5563
    %v5612 = vunpack.c.l.b16 %v5564
    %v5613 = vunpack.c.h.b16 %v5564
    %v5614 = vunpack.c.l.b16 %v5565
    %v5615 = vunpack.c.h.b16 %v5565
    %v5616 = vunpack.c.l.b16 %v5566
    %v5617 = vunpack.c.h.b16 %v5566
    %v5618 = vunpack.c.l.b16 %v5567
    %v5619 = vunpack.c.h.b16 %v5567
    %v5620 = vunpack.c.l.b16 %v5568
    %v5621 = vunpack.c.h.b16 %v5568
    %v5622 = vunpack.c.l.b16 %v5569
    %v5623 = vunpack.c.h.b16 %v5569
    %v5624 = vunpack.c.l.b16 %v5570
    %v5625 = vunpack.c.h.b16 %v5570
    %v5626 = vunpack.c.l.b16 %v5571
    %v5627 = vunpack.c.h.b16 %v5571
    %v5628 = vunpack.c.l.b16 %v5572
    %v5629 = vunpack.c.h.b16 %v5572
    %v5630 = vunpack.c.l.b16 %v5573
    %v5631 = vunpack.c.h.b16 %v5573
    %v5632 = vunpack.c.l.b16 %v5574
    %v5633 = vunpack.c.h.b16 %v5574
    %v5634 = vunpack.c.l.b16 %v5575
    %v5635 = vunpack.c.h.b16 %v5575
    %v5636 = vpack.c.b16 %v5606, %v5604
    %v5637 = vpack.c.b16 %v5607, %v5605
    %v5638 = vpack.c.b16 %v5610, %v5608
    %v5639 = vpack.c.b16 %v5611, %v5609
    %v5640 = vpack.c.b16 %v5614, %v5612
    %v5641 = vpack.c.b16 %v5615, %v5613
    %v5642 = vpack.c.b16 %v5618, %v5616
    %v5643 = vpack.c.b16 %v5619, %v5617
    %v5644 = vpack.c.b16 %v5622, %v5620
    %v5645 = vpack.c.b16 %v5623, %v5621
    %v5646 = vpack.c.b16 %v5626, %v5624
    %v5647 = vpack.c.b16 %v5627, %v5625
    %v5648 = vpack.c.b16 %v5630, %v5628
    %v5649 = vpack.c.b16 %v5631, %v5629
    %v5650 = vpack.c.b16 %v5634, %v5632
    %v5651 = vpack.c.b16 %v5635, %v5633
    %5668 = vmatprep.subr.bf16.mxu0 %v5651
    %5669 = vmatpush1.bf16.msra.mxu0 %v5650
    %5670 = vmatprep.subr.bf16.mxu0 %v5649
    %5671 = vmatpush1.bf16.msra.mxu0 %v5648
    %5672 = vmatprep.subr.bf16.mxu0 %v5647
    %5673 = vmatpush1.bf16.msra.mxu0 %v5646
    %5674 = vmatprep.subr.bf16.mxu0 %v5645
    %5675 = vmatpush1.bf16.msra.mxu0 %v5644
    %5676 = vmatprep.subr.bf16.mxu0 %v5643
    %5677 = vmatpush1.bf16.msra.mxu0 %v5642
    %5678 = vmatprep.subr.bf16.mxu0 %v5641
    %5679 = vmatpush1.bf16.msra.mxu0 %v5640
    %5680 = vmatprep.subr.bf16.mxu0 %v5639
    %5681 = vmatpush1.bf16.msra.mxu0 %v5638
    %5682 = vmatprep.subr.bf16.mxu0 %v5637
    %5683 = vmatpush1.bf16.msra.mxu0 %v5636
    %5684 = vmatprep.subr.bf16.mxu0 0
    %5685 = vmatpush2.bf16.msra.mxu0 0
    %5686 = vmatprep.subr.bf16.mxu0 0
    %5687 = vmatpush2.bf16.msra.mxu0 0
    %5688 = vmatprep.subr.bf16.mxu0 0
    %5689 = vmatpush2.bf16.msra.mxu0 0
    %5690 = vmatprep.subr.bf16.mxu0 0
    %5691 = vmatpush2.bf16.msra.mxu0 0
    %5692 = vmatprep.subr.bf16.mxu0 0
    %5693 = vmatpush2.bf16.msra.mxu0 0
    %5694 = vmatprep.subr.bf16.mxu0 0
    %5695 = vmatpush2.bf16.msra.mxu0 0
    %5696 = vmatprep.subr.bf16.mxu0 0
    %5697 = vmatpush2.bf16.msra.mxu0 0
    %5698 = vmatprep.subr.bf16.mxu0 0
    %5699 = vmatpush2.bf16.msra.mxu0 0
    %5700 = vmatprep.mubr.bf16.mxu0 0
    %5701 = vmatmul.mubr.bf16.gmra.mxu0 %v5558
    %v5702 = vpop.f32.mrf.mxu0
    %v5703 = vadd.f32 %v5581, %v5702
    %v5704 = vpop.f32.mrf.mxu0
    %v5705 = vadd.f32 %v5585, %v5704
    %v5706 = vpop.f32.mrf.mxu0
    %v5707 = vadd.f32 %v5581, %v5706
    %v5708 = vpop.f32.mrf.mxu0
    %v5709 = vadd.f32 %v5585, %v5708
    %5710 = vmatprep.mubr.bf16.mxu0 0
    %5711 = vmatmul.mubr.bf16.gmra.mxu0 %v5559
    %v5712 = vpop.f32.mrf.mxu0
    %v5713 = vadd.f32 %v5581, %v5712
    %v5714 = vpop.f32.mrf.mxu0
    %v5715 = vadd.f32 %v5585, %v5714
    %v5716 = vpop.f32.mrf.mxu0
    %v5717 = vadd.f32 %v5581, %v5716
    %v5718 = vpop.f32.mrf.mxu0
    %v5719 = vadd.f32 %v5585, %v5718
    %5720 = vdwg.mxu0
    %5722 = vset.pattern.permute.xlu0 0
    %5723 = vperm.xlu0 %5722, %v187
    %v5724 = vpop.permute.xlu0 %5723
    %5727 = vset.pattern.permute.xlu0 0
    %5728 = vperm.xlu0 %5727, %v188
    %v5729 = vpop.permute.xlu0 %5728
    %5732 = vset.pattern.permute.xlu0 0
    %5733 = vperm.xlu0 %5732, %v189
    %v5734 = vpop.permute.xlu0 %5733
    %5737 = vset.pattern.permute.xlu0 0
    %5738 = vperm.xlu0 %5737, %v190
    %v5739 = vpop.permute.xlu0 %5738
    %v5741 = vmul.f32 %v5703, %v5724
    %v5742 = vmul.f32 %v5705, %v5724
    %v5743 = vmul.f32 %v5707, %v5729
    %v5744 = vmul.f32 %v5709, %v5729
    %v5745 = vmul.f32 %v5713, %v5734
    %v5746 = vmul.f32 %v5715, %v5734
    %v5747 = vmul.f32 %v5717, %v5739
    %v5748 = vmul.f32 %v5719, %v5739
    %5749 = vst [vmem:[#allocation16] sm:$0xff] %v5741
    %5750 = vst [vmem:[#allocation16 + $0x8] sm:$0xff] %v5742
    %5751 = vst [vmem:[#allocation16 + $0x10] sm:$0xff] %v5743
    %5752 = vst [vmem:[#allocation16 + $0x18] sm:$0xff] %v5744
    %5753 = vst [vmem:[#allocation16 + $0x20] sm:$0xff] %v5745
    %5754 = vst [vmem:[#allocation16 + $0x28] sm:$0xff] %v5746
    %5755 = vst [vmem:[#allocation16 + $0x30] sm:$0xff] %v5747
    %5756 = vst [vmem:[#allocation16 + $0x38] sm:$0xff] %v5748
    // Predicated region
    $region118: #{tpu_custom_call.1} parent=1 // pred_check
      _
    $region119: #{tpu_custom_call.1} parent=1 // pred_check_branch
      %5758 = sbr.rel (0) target = $region121
    $region120: #{tpu_custom_call.1} parent=1 // pred_region
      %s5760 = ssub.s32 1024, 1024
      %5761 = vsyncadd [#allocation4], %s5760
      %s5762 = sshll.u32 [#allocation16], 4
      %s5763 = int_to_ptr.vmem [resolvable:$true] %s5762
      %5768 = dma.vmem_to_hbm [thread:$0]  %s5763, 1024, %s21, [#allocation4], 256, 256, 16
    $region121: #{tpu_custom_call.1} parent=1 // pred_fallthru
      _
    // Predicated region
    $region122: #{tpu_custom_call.1} parent=1 // pred_check
      _
    $region123: #{tpu_custom_call.1} parent=1 // pred_check_branch
      %5770 = sbr.rel (0) target = $region125
    $region124: #{tpu_custom_call.1} parent=1 // pred_region
      %5771 = dma.done [#allocation4], 1024
    $region125: #{tpu_custom_call.1} parent=1 // pred_fallthru
      _
    %5772 = vsyncpa [#allocation3], 1
    %5773 = vsyncpa [#allocation6], 1
    %5774 = vsyncpa [#allocation9], 1
    %5775 = vsyncpa [#allocation12], 1
    %5776 = vsyncpa [#allocation15], 1
    %5777 = vsyncpa [#allocation4], 1

</llo_original>
